<compile_context>
chip_gen: v5e
topology: v5e:2x2
jax: 0.10.0
libtpu: 0.0.40
codegen_flags: <defaults>
</compile_context>

<pallas_src>
import functools
import numpy as np

import jax
import jax.numpy as jnp
from jax import lax
from jax.experimental import pallas as pl
from jax.experimental.pallas import tpu as pltpu

LANES = 128
SUBLANES = 8


def get_padding(k, d):
    return (k * d - d) // 2


def _round_up(x, m):
    return (x + m - 1) // m * m


def _leaky(x):
    return jnp.where(x >= 0, x, 0.1 * x)


def _vmem_limit(est_bytes):
    # Scoped-VMEM ceiling derived from the actual block/scratch footprint (defaults are only
    # 16/32 MiB).  v7x users should keep this under ~56 MiB of the 64 MiB physical.
    return int(min(96 * 2**20, max(32 * 2**20, 2 * est_bytes)))


def _build_halos(x, tile, halo):
    """x: (N, T*tile, C).  Returns (lo, hi), each (N, T, halo, C):
       lo[n, t] = rows [t*tile - halo, t*tile) of x (zeros out of range),
       hi[n, t] = rows [(t+1)*tile, (t+1)*tile + halo)."""
    N, Lp, C = x.shape
    T = Lp // tile
    assert halo <= tile
    xp = jnp.pad(x, ((0, 0), (halo, halo + tile), (0, 0)))
    lo = xp[:, :T * tile, :].reshape(N, T, tile, C)[:, :, :halo, :]
    hi = xp[:, halo + tile:halo + tile + T * tile, :].reshape(N, T, tile, C)[:, :, :halo, :]
    return lo, hi


# ----------------------------------------------------------------------------
# Kernel A: fused LeakyReLU(0.1) + ConvTranspose1d(k, stride=s=k//2, padding=k//4).
# Output phases are lane-concatenated: block (1, tile, s*cp_out) -> the length interleave in the
# wrapper is a free row-major reshape.  Only the non-zero pieces of the fold are multiplied:
#   phase r < s/2 : y = x[m]   @ W[r+p]      + x[m-1] @ W[s+r+p]
#   phase r >= s/2: y = x[m]   @ W[r+p]      + x[m+1] @ W[r+p-s]
# ----------------------------------------------------------------------------
def _up_kernel(x_ref, lo_ref, hi_ref, wc_ref, wp_ref, wn_ref, b_ref, o_ref, ext_ref,
               *, tile, halo):
    dt = wc_ref.dtype
    # haloed, already-activated window (halo is 8 rows for sublane alignment; only +-1 is used)
    ext_ref[0:halo, :] = _leaky(lo_ref[0, 0])
    ext_ref[halo:halo + tile, :] = _leaky(x_ref[0])
    ext_ref[halo + tile:tile + 2 * halo, :] = _leaky(hi_ref[0, 0])

    half = wp_ref.shape[1]                       # (s//2) * cp_out lanes
    xc = ext_ref[halo:halo + tile, :]            # x[m]
    xm = ext_ref[halo - 1:halo - 1 + tile, :]    # x[m-1]
    xn = ext_ref[halo + 1:halo + 1 + tile, :]    # x[m+1]
    if dt != xc.dtype:
        xc, xm, xn = (v.astype(dt) for v in (xc, xm, xn))

    y = jnp.dot(xc, wc_ref[...], preferred_element_type=jnp.float32) + b_ref[...]
    y_lo = y[:, :half] + jnp.dot(xm, wp_ref[...], preferred_element_type=jnp.float32)
    y_hi = y[:, half:] + jnp.dot(xn, wn_ref[...], preferred_element_type=jnp.float32)
    o_ref[0, :, :half] = y_lo.astype(o_ref.dtype)      # lane-aligned phase stores
    o_ref[0, :, half:] = y_hi.astype(o_ref.dtype)


def _fold_convT_weights(w, b, cp_in, cp_out, k, weight_dtype):
    """w: ConvTranspose1d weight (Cin, Cout, k).  Returns centre/prev/next folds + tiled bias."""
    s = k // 2
    half = s // 2
    p = k // 4
    cin, cout, _ = w.shape
    wk = jnp.transpose(w, (2, 0, 1))                                      # (k, Cin, Cout)
    wk = jnp.pad(wk, ((0, 0), (0, cp_in - cin), (0, cp_out - cout)))
    wc = jnp.concatenate([wk[r + p] for r in range(s)], axis=1)           # x[m]   -> all phases
    wp = jnp.concatenate([wk[s + r + p] for r in range(half)], axis=1)    # x[m-1] -> r <  s/2
    wn = jnp.concatenate([wk[r + p - s] for r in range(half, s)], axis=1)  # x[m+1] -> r >= s/2
    bt = jnp.tile(jnp.pad(b, (0, cp_out - cout)), s).reshape(1, s * cp_out)
    return (wc.astype(weight_dtype), wp.astype(weight_dtype),
            wn.astype(weight_dtype), bt)


def leaky_conv_transpose1d(xl, w, b, k, cp_in, cp_out, tile, halo, weight_dtype):
    """xl: (N, T*tile, cp_in) channel-padded NLC (zero rows past the true length).
       Returns (N, T*tile*s, cp_out) with s = k//2."""
    assert k % 4 == 0 and k >= 4, "phase fold needs k % 4 == 0 (stride=k//2, padding=k//4)"
    s = k // 2
    N, Lp, _ = xl.shape
    T = Lp // tile
    lo, hi = _build_halos(xl, tile, halo)
    wc, wp, wn, bt = _fold_convT_weights(w, b, cp_in, cp_out, k, weight_dtype)

    wbytes = (wc.size + wp.size + wn.size) * wc.dtype.itemsize + bt.size * 4
    blk = 4 * (tile * cp_in + 2 * halo * cp_in + tile * s * cp_out)
    est = 2 * (blk + wbytes) + 4 * (tile + 2 * halo) * cp_in

    out = pl.pallas_call(
        functools.partial(_up_kernel, tile=tile, halo=halo),
        out_shape=jax.ShapeDtypeStruct((N, Lp, s * cp_out), jnp.float32),
        grid=(N, T),
        in_specs=[
            pl.BlockSpec((1, tile, cp_in), lambda n, t: (n, t, 0)),
            pl.BlockSpec((1, 1, halo, cp_in), lambda n, t: (n, t, 0, 0)),
            pl.BlockSpec((1, 1, halo, cp_in), lambda n, t: (n, t, 0, 0)),
            pl.BlockSpec((cp_in, s * cp_out), lambda n, t: (0, 0)),
            pl.BlockSpec((cp_in, (s // 2) * cp_out), lambda n, t: (0, 0)),
            pl.BlockSpec((cp_in, (s // 2) * cp_out), lambda n, t: (0, 0)),
            pl.BlockSpec((1, s * cp_out), lambda n, t: (0, 0)),
        ],
        out_specs=pl.BlockSpec((1, tile, s * cp_out), lambda n, t: (n, t, 0)),
        scratch_shapes=[pltpu.VMEM((tile + 2 * halo, cp_in), jnp.float32)],
        compiler_params=pltpu.CompilerParams(
            dimension_semantics=("parallel", "parallel"),
            vmem_limit_bytes=_vmem_limit(est)),
    )(xl, lo, hi, wc, wp, wn, bt)
    # phases are lane-concatenated -> length interleave is a free row-major reshape
    return out.reshape(N, Lp * s, cp_out)


# ----------------------------------------------------------------------------
# Kernel B: the ENTIRE MRF fused.  One grid step = one (batch, length-tile): runs every
# ResBlock (all LeakyReLU + dilated conv chains + residual adds) on the haloed window,
# accumulates sum/len(k_r) in vregs, stores only the true `cout` lanes of the centre rows.
# Convs are tap-sums of shifted scratch views; the scratch halo is zeroed once and never
# rewritten; out-of-sequence rows are masked to emulate the reference's per-conv zero padding.
# ----------------------------------------------------------------------------
def _mrf_kernel(*refs, k_list, D_list, tile, halo, pmax, L_valid, inv_n, cout):
    n_rb = len(k_list)
    x_ref, lo_ref, hi_ref = refs[0], refs[1], refs[2]
    wb_refs = refs[3:3 + 2 * n_rb]
    o_ref = refs[3 + 2 * n_rb]
    pad_ref = refs[4 + 2 * n_rb]

    te = tile + 2 * halo
    cp = x_ref.shape[2]
    t = pl.program_id(1)

    # zero ONLY the conv-halo rows of the scratch; they are never written again
    pad_ref[0:pmax, :] = jnp.zeros((pmax, cp), jnp.float32)
    pad_ref[pmax + te:pmax + te + pmax, :] = jnp.zeros((pmax, cp), jnp.float32)

    # assemble the haloed activation window (raw, pre-activation) once
    pad_ref[pmax:pmax + halo, :] = lo_ref[0, 0]
    pad_ref[pmax + halo:pmax + halo + tile, :] = x_ref[0]
    pad_ref[pmax + halo + tile:pmax + te, :] = hi_ref[0, 0]
    x0 = pad_ref[pmax:pmax + te, :]                       # value copy, survives overwrites

    # rows whose global position lies outside the true upsampled length act as zeros for every
    # conv input (this reproduces the reference 'same' zero padding at the sequence ends and
    # neutralises the length-padding / upsampler-tail garbage).  Hoisted out of the loops.
    grow = lax.broadcasted_iota(jnp.int32, (te, 1), 0) + (t * tile - halo)
    maskf = jnp.broadcast_to(
        jnp.logical_and(grow >= 0, grow < L_valid).astype(jnp.float32), (te, cp))

    acc = jnp.zeros((tile, cp), jnp.float32)
    for r in range(n_rb):                                 # MRF: sum of ResBlocks
        w_ref, b_ref = wb_refs[2 * r], wb_refs[2 * r + 1]
        k = k_list[r]
        h = x0
        c = 0
        for Di in D_list[r]:                              # outer residual cycles
            g = h
            for d in Di:                                  # LeakyReLU + dilated conv chain
                p = d * (k - 1) // 2
                pad_ref[pmax:pmax + te, :] = _leaky(g) * maskf
                conv = jnp.zeros((te, cp), jnp.float32)
                for tau in range(k):                      # tap-sum conv -> k MXU dots
                    off = pmax - p + tau * d
                    lhs = pad_ref[off:off + te, :]
                    if w_ref.dtype != lhs.dtype:
                        lhs = lhs.astype(w_ref.dtype)
                    conv = conv + jnp.dot(lhs, w_ref[c, tau],
                                          preferred_element_type=jnp.float32)
                g = conv + b_ref[c]
                c += 1
            h = h + g
        acc = acc + h[halo:halo + tile, :]

    out = acc * inv_n
    o_ref[0] = out[:, :cout].astype(o_ref.dtype)          # store only the true channels


def _fold_res_weights(rb_params, cp, weight_dtype):
    ws, bs = [], []
    for inner in rb_params:
        for (w, b) in inner:
            co, ci, _ = w.shape
            wt = jnp.transpose(w, (2, 1, 0))                          # (k, Cin, Cout)
            wt = jnp.pad(wt, ((0, 0), (0, cp - ci), (0, cp - co)))
            ws.append(wt)
            bs.append(jnp.pad(b, (0, cp - co)).reshape(1, cp))
    return jnp.stack(ws).astype(weight_dtype), jnp.stack(bs)          # (n,k,cp,cp), (n,1,cp)


def mrf_fused(xup, mrf_params, k_r, D_r, L_valid, cout, cp, tile, halo, weight_dtype):
    N, Lp, _ = xup.shape
    T = Lp // tile
    pmax = _round_up(max(d * (k - 1) // 2 for k, D in zip(k_r, D_r) for Di in D for d in Di),
                     SUBLANES)
    lo, hi = _build_halos(xup, tile, halo)

    args = [xup, lo, hi]
    in_specs = [
        pl.BlockSpec((1, tile, cp), lambda n, t: (n, t, 0)),
        pl.BlockSpec((1, 1, halo, cp), lambda n, t: (n, t, 0, 0)),
        pl.BlockSpec((1, 1, halo, cp), lambda n, t: (n, t, 0, 0)),
    ]
    wbytes = 0
    for rb_params, k in zip(mrf_params, k_r):
        wf, bf = _fold_res_weights(rb_params, cp, weight_dtype)
        nc = wf.shape[0]
        in_specs.append(pl.BlockSpec((nc, k, cp, cp), lambda n, t: (0, 0, 0, 0)))
        in_specs.append(pl.BlockSpec((nc, 1, cp), lambda n, t: (0, 0, 0)))
        args += [wf, bf]
        wbytes += wf.size * wf.dtype.itemsize + bf.size * 4

    te = tile + 2 * halo
    est = 2 * (4 * (2 * tile * cp + 2 * halo * cp) + wbytes) + 4 * (te + 2 * pmax) * cp

    D_t = tuple(tuple(tuple(Di) for Di in D) for D in D_r)
    return pl.pallas_call(
        functools.partial(_mrf_kernel, k_list=tuple(k_r), D_list=D_t, tile=tile, halo=halo,
                          pmax=pmax, L_valid=L_valid, inv_n=1.0 / len(k_r), cout=cout),
        out_shape=jax.ShapeDtypeStruct((N, Lp, cout), jnp.float32),
        grid=(N, T),
        in_specs=in_specs,
        out_specs=pl.BlockSpec((1, tile, cout), lambda n, t: (n, t, 0)),
        scratch_shapes=[pltpu.VMEM((te + 2 * pmax, cp), jnp.float32)],
        compiler_params=pltpu.CompilerParams(
            dimension_semantics=("parallel", "parallel"),
            vmem_limit_bytes=_vmem_limit(est)),
    )(*args)


# ----------------------------------------------------------------------------
# GeneratorBlock forward (Pallas-backed; NLC + lane-padded channels end to end)
# ----------------------------------------------------------------------------
def generator_block_forward(x, params, k, k_r, D_r, *, tile_len=512,
                            weight_dtype=jnp.float32):
    """x: (N, Cin, L) NCL.  Returns (N, Cout, L * k//2)."""
    N, cin, L = x.shape
    w_t, b_t = params["up"]
    cout = w_t.shape[1]
    s = k // 2
    cp_in = _round_up(cin, LANES)
    cp = _round_up(cout, LANES)

    # Length tiling (input domain); the MRF tile is the upsampled image of it so kernel A's
    # output feeds kernel B with no crop / re-pad in between.
    tile_a = max(SUBLANES, min(_round_up(tile_len, SUBLANES), _round_up(L, SUBLANES)))
    L_pad = _round_up(L, tile_a)
    halo_a = SUBLANES                              # only +-1 row needed; rounded to a sublane
    tile_m = tile_a * s
    halo_m = _round_up(max(sum(d * (kr - 1) // 2 for Di in D for d in Di)
                           for kr, D in zip(k_r, D_r)), SUBLANES)
    assert halo_m <= tile_m, "increase tile_len: fused-MRF halo must fit inside one tile"

    # NCL -> NLC once; pad channels to a lane multiple and length to a tile multiple once
    # (zeros are transparent: leaky(0)=0 and padded weight rows/cols are zero).
    xl = jnp.transpose(x, (0, 2, 1))
    xl = jnp.pad(xl, ((0, 0), (0, L_pad - L), (0, cp_in - cin)))

    # fused LeakyReLU + ConvTranspose1d upsampler -> (N, L_pad*s, cp)
    xup = leaky_conv_transpose1d(xl, w_t, b_t, k, cp_in, cp, tile_a, halo_a, weight_dtype)

    # fused MRF (all ResBlocks + residuals + sum + 1/len(k_r)) -> (N, L_pad*s, cout)
    out = mrf_fused(xup, params["mrf"], k_r, D_r, L * s, cout, cp, tile_m, halo_m, weight_dtype)

    out = out[:, :L * s, :]
    return jnp.transpose(out, (0, 2, 1))           # back to NCL once at exit


# ----------------------------------------------------------------------------
# Pure-numpy reference (mirrors the PyTorch module semantics exactly)
# ----------------------------------------------------------------------------
def _np_leaky(x):
    return np.where(x >= 0, x, 0.1 * x)


def _np_conv_transpose1d(x, w, b, stride, padding):
    N, Cin, L = x.shape
    _, Cout, K = w.shape
    Lout = (L - 1) * stride - 2 * padding + K
    full = np.zeros((N, Cout, (L - 1) * stride + K), dtype=np.float64)
    for i in range(L):
        full[:, :, i * stride:i * stride + K] += np.einsum("nc,cok->nok", x[:, :, i], w)
    return full[:, :, padding:padding + Lout] + b[None, :, None]


def _np_conv1d(x, w, b, dilation, padding):
    N, Cin, L = x.shape
    Cout, _, K = w.shape
    xp = np.pad(x, ((0, 0), (0, 0), (padding, padding)))
    Lout = L + 2 * padding - dilation * (K - 1)
    out = np.zeros((N, Cout, Lout), dtype=np.float64)
    for t in range(K):
        out += np.einsum("ncl,oc->nol", xp[:, :, t * dilation:t * dilation + Lout], w[:, :, t])
    return out + b[None, :, None]


def reference_forward(x, params, k, k_r, D_r):
    x = np.asarray(x, np.float64)
    w_t, b_t = (np.asarray(a, np.float64) for a in params["up"])
    x = _np_conv_transpose1d(_np_leaky(x), w_t, b_t, k // 2, k // 4)
    out = np.zeros_like(x)
    for rb_params, D in zip(params["mrf"], D_r):
        h = x
        for i, Di in enumerate(D):
            g = h
            for j, d in enumerate(Di):
                w, b = rb_params[i][j]
                w = np.asarray(w, np.float64)
                b = np.asarray(b, np.float64)
                K = w.shape[2]
                g = _np_conv1d(_np_leaky(g), w, b, d, get_padding(K, d))
            h = h + g
        out = out + h
    return out / len(k_r)


if __name__ == "__main__":
    # Module hyperparameters (small, HiFi-GAN-style)
    IN_CH, OUT_CH = 8, 4
    K_UP = 4                                   # -> stride 2, padding 1
    K_R = (3, 5)
    D_R = (((1, 2), (3, 1)), ((1,), (2,)))

    key = jax.random.PRNGKey(0)

    def nrm(key, shape, scale=0.2):
        return scale * jax.random.normal(key, shape, jnp.float32)

    keys = iter(jax.random.split(key, 64))
    params = {
        "up": (nrm(next(keys), (IN_CH, OUT_CH, K_UP)), nrm(next(keys), (OUT_CH,))),
        "mrf": [],
    }
    for kr, D in zip(K_R, D_R):
        rb = []
        for Di in D:
            rb.append([(nrm(next(keys), (OUT_CH, OUT_CH, kr)), nrm(next(keys), (OUT_CH,)))
                       for _ in Di])
        params["mrf"].append(rb)

    # tile_len=8 forces multiple length tiles even at this toy length, exercising the halo path.
    fwd = jax.jit(lambda xx, pp: generator_block_forward(xx, pp, K_UP, K_R, D_R, tile_len=8))

    # f32 path: strict check (L=16 exact tile multiple; L=12 exercises tail padding + masking)
    for L_in in (16, 12):
        x = jax.random.normal(next(keys), (2, IN_CH, L_in), jnp.float32)
        y = jax.block_until_ready(fwd(x, params))
        y_ref = reference_forward(np.asarray(x), params, K_UP, K_R, D_R)
        assert y.shape == y_ref.shape, (y.shape, y_ref.shape)
        assert np.allclose(np.asarray(y), y_ref, rtol=1e-3, atol=1e-3), \
            float(np.max(np.abs(np.asarray(y) - y_ref)))

    # bf16 weights (f32 accumulation): halves weight HBM/VMEM bytes; looser tolerance
    fwd_bf16 = jax.jit(lambda xx, pp: generator_block_forward(
        xx, pp, K_UP, K_R, D_R, tile_len=8, weight_dtype=jnp.bfloat16))
    x = jax.random.normal(next(keys), (2, IN_CH, 16), jnp.float32)
    y = jax.block_until_ready(fwd_bf16(x, params))
    y_ref = reference_forward(np.asarray(x), params, K_UP, K_R, D_R)
    assert np.allclose(np.asarray(y), y_ref, rtol=2e-2, atol=2e-2), \
        float(np.max(np.abs(np.asarray(y) - y_ref)))

    print("KERNEL_OK")
</pallas_src>

<mosaic_0001>
module attributes {stable_mosaic.version = 11 : i64} {
  func.func @_up_kernel(%arg0: i32, %arg1: i32, %arg2: memref<1x8x128xf32, #tpu.memory_space<vmem>>, %arg3: memref<1x1x8x128xf32, #tpu.memory_space<vmem>>, %arg4: memref<1x1x8x128xf32, #tpu.memory_space<vmem>>, %arg5: memref<128x256xf32, #tpu.memory_space<vmem>>, %arg6: memref<128x128xf32, #tpu.memory_space<vmem>>, %arg7: memref<128x128xf32, #tpu.memory_space<vmem>>, %arg8: memref<1x256xf32, #tpu.memory_space<vmem>>, %arg9: memref<1x8x256xf32, #tpu.memory_space<vmem>>, %arg10: memref<24x128xf32, #tpu.memory_space<vmem>>) attributes {dimension_semantics = [#tpu.dimension_semantics<parallel>, #tpu.dimension_semantics<parallel>], iteration_bounds = array<i64: 2, 2>, scalar_prefetch = 0 : i64, scratch_operands = 1 : i64, tpu.core_type = #tpu.core_type<tc>, window_params = [{transform_indices = @transform_0, window_bounds = array<i64: 1, 8, 128>}, {transform_indices = @transform_1, window_bounds = array<i64: 1, 1, 8, 128>}, {transform_indices = @transform_2, window_bounds = array<i64: 1, 1, 8, 128>}, {pipeline_mode = #tpu.pipeline_mode<synchronous>, transform_indices = @transform_3, window_bounds = array<i64: 128, 256>}, {pipeline_mode = #tpu.pipeline_mode<synchronous>, transform_indices = @transform_4, window_bounds = array<i64: 128, 128>}, {pipeline_mode = #tpu.pipeline_mode<synchronous>, transform_indices = @transform_5, window_bounds = array<i64: 128, 128>}, {pipeline_mode = #tpu.pipeline_mode<synchronous>, transform_indices = @transform_6, window_bounds = array<i64: 1, 256>}, {transform_indices = @transform_7, window_bounds = array<i64: 1, 8, 256>}]} {
    %c0 = arith.constant 0 : index
    %c0_0 = arith.constant 0 : index
    %c0_1 = arith.constant 0 : index
    %c0_2 = arith.constant 0 : index
    %0 = vector.load %arg3[%c0, %c0_0, %c0_1, %c0_2] : memref<1x1x8x128xf32, #tpu.memory_space<vmem>>, vector<1x1x8x128xf32>
    %1 = vector.shape_cast %0 : vector<1x1x8x128xf32> to vector<8x128xf32>
    %cst = arith.constant 0.000000e+00 : f32
    %2 = vector.broadcast %cst : f32 to vector<8x128xf32>
    %3 = arith.cmpf oge, %1, %2 : vector<8x128xf32>
    %cst_3 = arith.constant 1.000000e-01 : f32
    %4 = vector.broadcast %cst_3 : f32 to vector<8x128xf32>
    %5 = arith.mulf %4, %1 : vector<8x128xf32>
    %6 = arith.select %3, %1, %5 : vector<8x128xi1>, vector<8x128xf32>
    %c0_4 = arith.constant 0 : index
    %c0_5 = arith.constant 0 : index
    %7 = vector.load %arg10[%c0_4, %c0_5] : memref<24x128xf32, #tpu.memory_space<vmem>>, vector<8x128xf32>
    tpu.vector_store %arg10[%c0_4, %c0_5], %6 {strides = array<i32>} : memref<24x128xf32, #tpu.memory_space<vmem>>, vector<8x128xf32>,
    %c0_6 = arith.constant 0 : index
    %c0_7 = arith.constant 0 : index
    %c0_8 = arith.constant 0 : index
    %8 = vector.load %arg2[%c0_6, %c0_7, %c0_8] : memref<1x8x128xf32, #tpu.memory_space<vmem>>, vector<1x8x128xf32>
    %9 = vector.shape_cast %8 : vector<1x8x128xf32> to vector<8x128xf32>
    %cst_9 = arith.constant 0.000000e+00 : f32
    %10 = vector.broadcast %cst_9 : f32 to vector<8x128xf32>
    %11 = arith.cmpf oge, %9, %10 : vector<8x128xf32>
    %cst_10 = arith.constant 1.000000e-01 : f32
    %12 = vector.broadcast %cst_10 : f32 to vector<8x128xf32>
    %13 = arith.mulf %12, %9 : vector<8x128xf32>
    %14 = arith.select %11, %9, %13 : vector<8x128xi1>, vector<8x128xf32>
    %c8 = arith.constant 8 : index
    %c0_11 = arith.constant 0 : index
    %15 = vector.load %arg10[%c8, %c0_11] : memref<24x128xf32, #tpu.memory_space<vmem>>, vector<8x128xf32>
    tpu.vector_store %arg10[%c8, %c0_11], %14 {strides = array<i32>} : memref<24x128xf32, #tpu.memory_space<vmem>>, vector<8x128xf32>,
    %c0_12 = arith.constant 0 : index
    %c0_13 = arith.constant 0 : index
    %c0_14 = arith.constant 0 : index
    %c0_15 = arith.constant 0 : index
    %16 = vector.load %arg4[%c0_12, %c0_13, %c0_14, %c0_15] : memref<1x1x8x128xf32, #tpu.memory_space<vmem>>, vector<1x1x8x128xf32>
    %17 = vector.shape_cast %16 : vector<1x1x8x128xf32> to vector<8x128xf32>
    %cst_16 = arith.constant 0.000000e+00 : f32
    %18 = vector.broadcast %cst_16 : f32 to vector<8x128xf32>
    %19 = arith.cmpf oge, %17, %18 : vector<8x128xf32>
    %cst_17 = arith.constant 1.000000e-01 : f32
    %20 = vector.broadcast %cst_17 : f32 to vector<8x128xf32>
    %21 = arith.mulf %20, %17 : vector<8x128xf32>
    %22 = arith.select %19, %17, %21 : vector<8x128xi1>, vector<8x128xf32>
    %c16 = arith.constant 16 : index
    %c0_18 = arith.constant 0 : index
    %23 = vector.load %arg10[%c16, %c0_18] : memref<24x128xf32, #tpu.memory_space<vmem>>, vector<8x128xf32>
    tpu.vector_store %arg10[%c16, %c0_18], %22 {strides = array<i32>} : memref<24x128xf32, #tpu.memory_space<vmem>>, vector<8x128xf32>,
    %c8_19 = arith.constant 8 : index
    %c0_20 = arith.constant 0 : index
    %24 = vector.load %arg10[%c8_19, %c0_20] : memref<24x128xf32, #tpu.memory_space<vmem>>, vector<8x128xf32>
    %c7 = arith.constant 7 : index
    %c0_21 = arith.constant 0 : index
    %25 = vector.load %arg10[%c7, %c0_21] : memref<24x128xf32, #tpu.memory_space<vmem>>, vector<8x128xf32>
    %c9 = arith.constant 9 : index
    %c0_22 = arith.constant 0 : index
    %26 = vector.load %arg10[%c9, %c0_22] : memref<24x128xf32, #tpu.memory_space<vmem>>, vector<8x128xf32>
    %c0_23 = arith.constant 0 : index
    %c0_24 = arith.constant 0 : index
    %27 = vector.load %arg5[%c0_23, %c0_24] : memref<128x256xf32, #tpu.memory_space<vmem>>, vector<128x256xf32>
    %cst_25 = arith.constant dense<0.000000e+00> : vector<8x256xf32>
    %28 = tpu.matmul %24, %27, %cst_25 {dimension_numbers = #tpu.dot_dimension_numbers<[1], [0], [0], [1], [0, 0, 1, 1], [], []>} : vector<8x128xf32>, vector<128x256xf32>, vector<8x256xf32> -> vector<8x256xf32>
    %c0_26 = arith.constant 0 : index
    %c0_27 = arith.constant 0 : index
    %29 = vector.load %arg8[%c0_26, %c0_27] : memref<1x256xf32, #tpu.memory_space<vmem>>, vector<1x256xf32>
    %30 = vector.broadcast %29 : vector<1x256xf32> to vector<8x256xf32>
    %31 = arith.addf %28, %30 : vector<8x256xf32>
    %32 = vector.extract_strided_slice %31 {offsets = [0, 0], sizes = [8, 128], strides = [1, 1]} : vector<8x256xf32> to vector<8x128xf32>
    %c0_28 = arith.constant 0 : index
    %c0_29 = arith.constant 0 : index
    %33 = vector.load %arg6[%c0_28, %c0_29] : memref<128x128xf32, #tpu.memory_space<vmem>>, vector<128x128xf32>
    %cst_30 = arith.constant dense<0.000000e+00> : vector<8x128xf32>
    %34 = tpu.matmul %25, %33, %cst_30 {dimension_numbers = #tpu.dot_dimension_numbers<[1], [0], [0], [1], [0, 0, 1, 1], [], []>} : vector<8x128xf32>, vector<128x128xf32>, vector<8x128xf32> -> vector<8x128xf32>
    %35 = arith.addf %32, %34 : vector<8x128xf32>
    %36 = vector.extract_strided_slice %31 {offsets = [0, 128], sizes = [8, 128], strides = [1, 1]} : vector<8x256xf32> to vector<8x128xf32>
    %c0_31 = arith.constant 0 : index
    %c0_32 = arith.constant 0 : index
    %37 = vector.load %arg7[%c0_31, %c0_32] : memref<128x128xf32, #tpu.memory_space<vmem>>, vector<128x128xf32>
    %cst_33 = arith.constant dense<0.000000e+00> : vector<8x128xf32>
    %38 = tpu.matmul %26, %37, %cst_33 {dimension_numbers = #tpu.dot_dimension_numbers<[1], [0], [0], [1], [0, 0, 1, 1], [], []>} : vector<8x128xf32>, vector<128x128xf32>, vector<8x128xf32> -> vector<8x128xf32>
    %39 = arith.addf %36, %38 : vector<8x128xf32>
    %c0_34 = arith.constant 0 : index
    %c0_35 = arith.constant 0 : index
    %c0_36 = arith.constant 0 : index
    %40 = vector.load %arg9[%c0_34, %c0_35, %c0_36] : memref<1x8x256xf32, #tpu.memory_space<vmem>>, vector<1x8x128xf32>
    %41 = vector.shape_cast %40 : vector<1x8x128xf32> to vector<8x128xf32>
    %42 = vector.shape_cast %35 : vector<8x128xf32> to vector<1x8x128xf32>
    tpu.vector_store %arg9[%c0_34, %c0_35, %c0_36], %42 {strides = array<i32>} : memref<1x8x256xf32, #tpu.memory_space<vmem>>, vector<1x8x128xf32>,
    %c0_37 = arith.constant 0 : index
    %c0_38 = arith.constant 0 : index
    %c128 = arith.constant 128 : index
    %43 = vector.load %arg9[%c0_37, %c0_38, %c128] : memref<1x8x256xf32, #tpu.memory_space<vmem>>, vector<1x8x128xf32>
    %44 = vector.shape_cast %43 : vector<1x8x128xf32> to vector<8x128xf32>
    %45 = vector.shape_cast %39 : vector<8x128xf32> to vector<1x8x128xf32>
    tpu.vector_store %arg9[%c0_37, %c0_38, %c128], %45 {strides = array<i32>} : memref<1x8x256xf32, #tpu.memory_space<vmem>>, vector<1x8x128xf32>,
    return
  }
  func.func @transform_0(%arg0: i32, %arg1: i32) -> (i32, i32, i32) {
    %c0_i32 = arith.constant 0 : i32
    %c0_i32_0 = arith.constant 0 : i32
    return %arg0, %arg1, %c0_i32 : i32, i32, i32
  }
  func.func @transform_1(%arg0: i32, %arg1: i32) -> (i32, i32, i32, i32) {
    %c0_i32 = arith.constant 0 : i32
    %c0_i32_0 = arith.constant 0 : i32
    %c0_i32_1 = arith.constant 0 : i32
    return %arg0, %arg1, %c0_i32, %c0_i32_0 : i32, i32, i32, i32
  }
  func.func @transform_2(%arg0: i32, %arg1: i32) -> (i32, i32, i32, i32) {
    %c0_i32 = arith.constant 0 : i32
    %c0_i32_0 = arith.constant 0 : i32
    %c0_i32_1 = arith.constant 0 : i32
    return %arg0, %arg1, %c0_i32, %c0_i32_0 : i32, i32, i32, i32
  }
  func.func @transform_3(%arg0: i32, %arg1: i32) -> (i32, i32) {
    %c0_i32 = arith.constant 0 : i32
    %c0_i32_0 = arith.constant 0 : i32
    %c0_i32_1 = arith.constant 0 : i32
    return %c0_i32, %c0_i32_0 : i32, i32
  }
  func.func @transform_4(%arg0: i32, %arg1: i32) -> (i32, i32) {
    %c0_i32 = arith.constant 0 : i32
    %c0_i32_0 = arith.constant 0 : i32
    %c0_i32_1 = arith.constant 0 : i32
    return %c0_i32, %c0_i32_0 : i32, i32
  }
  func.func @transform_5(%arg0: i32, %arg1: i32) -> (i32, i32) {
    %c0_i32 = arith.constant 0 : i32
    %c0_i32_0 = arith.constant 0 : i32
    %c0_i32_1 = arith.constant 0 : i32
    return %c0_i32, %c0_i32_0 : i32, i32
  }
  func.func @transform_6(%arg0: i32, %arg1: i32) -> (i32, i32) {
    %c0_i32 = arith.constant 0 : i32
    %c0_i32_0 = arith.constant 0 : i32
    %c0_i32_1 = arith.constant 0 : i32
    return %c0_i32, %c0_i32_0 : i32, i32
  }
  func.func @transform_7(%arg0: i32, %arg1: i32) -> (i32, i32, i32) {
    %c0_i32 = arith.constant 0 : i32
    %c0_i32_0 = arith.constant 0 : i32
    return %arg0, %arg1, %c0_i32 : i32, i32, i32
  }
}

module attributes {stable_mosaic.version = 11 : i64} {
  func.func @_mrf_kernel(%arg0: i32, %arg1: i32, %arg2: memref<1x16x128xf32, #tpu.memory_space<vmem>>, %arg3: memref<1x1x8x128xf32, #tpu.memory_space<vmem>>, %arg4: memref<1x1x8x128xf32, #tpu.memory_space<vmem>>, %arg5: memref<4x3x128x128xf32, #tpu.memory_space<vmem>>, %arg6: memref<4x1x128xf32, #tpu.memory_space<vmem>>, %arg7: memref<2x5x128x128xf32, #tpu.memory_space<vmem>>, %arg8: memref<2x1x128xf32, #tpu.memory_space<vmem>>, %arg9: memref<1x16x4xf32, #tpu.memory_space<vmem>>, %arg10: memref<48x128xf32, #tpu.memory_space<vmem>>) attributes {dimension_semantics = [#tpu.dimension_semantics<parallel>, #tpu.dimension_semantics<parallel>], iteration_bounds = array<i64: 2, 2>, scalar_prefetch = 0 : i64, scratch_operands = 1 : i64, tpu.core_type = #tpu.core_type<tc>, window_params = [{transform_indices = @transform_0, window_bounds = array<i64: 1, 16, 128>}, {transform_indices = @transform_1, window_bounds = array<i64: 1, 1, 8, 128>}, {transform_indices = @transform_2, window_bounds = array<i64: 1, 1, 8, 128>}, {pipeline_mode = #tpu.pipeline_mode<synchronous>, transform_indices = @transform_3, window_bounds = array<i64: 4, 3, 128, 128>}, {pipeline_mode = #tpu.pipeline_mode<synchronous>, transform_indices = @transform_4, window_bounds = array<i64: 4, 1, 128>}, {pipeline_mode = #tpu.pipeline_mode<synchronous>, transform_indices = @transform_5, window_bounds = array<i64: 2, 5, 128, 128>}, {pipeline_mode = #tpu.pipeline_mode<synchronous>, transform_indices = @transform_6, window_bounds = array<i64: 2, 1, 128>}, {transform_indices = @transform_7, window_bounds = array<i64: 1, 16, 4>}]} {
    %cst = arith.constant 0.000000e+00 : f32
    %0 = vector.broadcast %cst : f32 to vector<8x128xf32>
    %c0 = arith.constant 0 : index
    %c0_0 = arith.constant 0 : index
    %1 = vector.load %arg10[%c0, %c0_0] : memref<48x128xf32, #tpu.memory_space<vmem>>, vector<8x128xf32>
    tpu.vector_store %arg10[%c0, %c0_0], %0 {strides = array<i32>} : memref<48x128xf32, #tpu.memory_space<vmem>>, vector<8x128xf32>,
    %cst_1 = arith.constant 0.000000e+00 : f32
    %2 = vector.broadcast %cst_1 : f32 to vector<8x128xf32>
    %c40 = arith.constant 40 : index
    %c0_2 = arith.constant 0 : index
    %3 = vector.load %arg10[%c40, %c0_2] : memref<48x128xf32, #tpu.memory_space<vmem>>, vector<8x128xf32>
    tpu.vector_store %arg10[%c40, %c0_2], %2 {strides = array<i32>} : memref<48x128xf32, #tpu.memory_space<vmem>>, vector<8x128xf32>,
    %c0_3 = arith.constant 0 : index
    %c0_4 = arith.constant 0 : index
    %c0_5 = arith.constant 0 : index
    %c0_6 = arith.constant 0 : index
    %4 = vector.load %arg3[%c0_3, %c0_4, %c0_5, %c0_6] : memref<1x1x8x128xf32, #tpu.memory_space<vmem>>, vector<1x1x8x128xf32>
    %5 = vector.shape_cast %4 : vector<1x1x8x128xf32> to vector<8x128xf32>
    %c8 = arith.constant 8 : index
    %c0_7 = arith.constant 0 : index
    %6 = vector.load %arg10[%c8, %c0_7] : memref<48x128xf32, #tpu.memory_space<vmem>>, vector<8x128xf32>
    tpu.vector_store %arg10[%c8, %c0_7], %5 {strides = array<i32>} : memref<48x128xf32, #tpu.memory_space<vmem>>, vector<8x128xf32>,
    %c0_8 = arith.constant 0 : index
    %c0_9 = arith.constant 0 : index
    %c0_10 = arith.constant 0 : index
    %7 = vector.load %arg2[%c0_8, %c0_9, %c0_10] : memref<1x16x128xf32, #tpu.memory_space<vmem>>, vector<1x16x128xf32>
    %8 = vector.shape_cast %7 : vector<1x16x128xf32> to vector<16x128xf32>
    %c16 = arith.constant 16 : index
    %c0_11 = arith.constant 0 : index
    %9 = vector.load %arg10[%c16, %c0_11] : memref<48x128xf32, #tpu.memory_space<vmem>>, vector<16x128xf32>
    tpu.vector_store %arg10[%c16, %c0_11], %8 {strides = array<i32>} : memref<48x128xf32, #tpu.memory_space<vmem>>, vector<16x128xf32>,
    %c0_12 = arith.constant 0 : index
    %c0_13 = arith.constant 0 : index
    %c0_14 = arith.constant 0 : index
    %c0_15 = arith.constant 0 : index
    %10 = vector.load %arg4[%c0_12, %c0_13, %c0_14, %c0_15] : memref<1x1x8x128xf32, #tpu.memory_space<vmem>>, vector<1x1x8x128xf32>
    %11 = vector.shape_cast %10 : vector<1x1x8x128xf32> to vector<8x128xf32>
    %c32 = arith.constant 32 : index
    %c0_16 = arith.constant 0 : index
    %12 = vector.load %arg10[%c32, %c0_16] : memref<48x128xf32, #tpu.memory_space<vmem>>, vector<8x128xf32>
    tpu.vector_store %arg10[%c32, %c0_16], %11 {strides = array<i32>} : memref<48x128xf32, #tpu.memory_space<vmem>>, vector<8x128xf32>,
    %c8_17 = arith.constant 8 : index
    %c0_18 = arith.constant 0 : index
    %13 = vector.load %arg10[%c8_17, %c0_18] : memref<48x128xf32, #tpu.memory_space<vmem>>, vector<32x128xf32>
    %14 = tpu.iota {dimensions = array<i32: 0>} : vector<32x1xi32>
    %c16_i32 = arith.constant 16 : i32
    %15 = arith.muli %arg1, %c16_i32 : i32
    %c8_i32 = arith.constant 8 : i32
    %16 = arith.subi %15, %c8_i32 : i32
    %17 = vector.broadcast %16 : i32 to vector<32x1xi32>
    %18 = arith.addi %14, %17 : vector<32x1xi32>
    %c0_i32 = arith.constant 0 : i32
    %19 = vector.broadcast %c0_i32 : i32 to vector<32x1xi32>
    %20 = arith.cmpi sge, %18, %19 : vector<32x1xi32>
    %c32_i32 = arith.constant 32 : i32
    %21 = vector.broadcast %c32_i32 : i32 to vector<32x1xi32>
    %22 = arith.cmpi slt, %18, %21 : vector<32x1xi32>
    %23 = arith.andi %20, %22 : vector<32x1xi1>
    %24 = arith.extui %23 : vector<32x1xi1> to vector<32x1xi32>
    %25 = arith.sitofp %24 : vector<32x1xi32> to vector<32x1xf32>
    %26 = vector.shape_cast %25 : vector<32x1xf32> to vector<32x1xf32>
    %27 = vector.broadcast %26 : vector<32x1xf32> to vector<32x128xf32>
    %cst_19 = arith.constant 0.000000e+00 : f32
    %28 = vector.broadcast %cst_19 : f32 to vector<16x128xf32>
    %cst_20 = arith.constant 0.000000e+00 : f32
    %29 = vector.broadcast %cst_20 : f32 to vector<32x128xf32>
    %30 = arith.cmpf oge, %13, %29 : vector<32x128xf32>
    %cst_21 = arith.constant 1.000000e-01 : f32
    %31 = vector.broadcast %cst_21 : f32 to vector<32x128xf32>
    %32 = arith.mulf %31, %13 : vector<32x128xf32>
    %33 = arith.select %30, %13, %32 : vector<32x128xi1>, vector<32x128xf32>
    %34 = arith.mulf %33, %27 : vector<32x128xf32>
    %c8_22 = arith.constant 8 : index
    %c0_23 = arith.constant 0 : index
    %35 = vector.load %arg10[%c8_22, %c0_23] : memref<48x128xf32, #tpu.memory_space<vmem>>, vector<32x128xf32>
    tpu.vector_store %arg10[%c8_22, %c0_23], %34 {strides = array<i32>} : memref<48x128xf32, #tpu.memory_space<vmem>>, vector<32x128xf32>,
    %cst_24 = arith.constant 0.000000e+00 : f32
    %36 = vector.broadcast %cst_24 : f32 to vector<32x128xf32>
    %c7 = arith.constant 7 : index
    %c0_25 = arith.constant 0 : index
    %37 = vector.load %arg10[%c7, %c0_25] : memref<48x128xf32, #tpu.memory_space<vmem>>, vector<32x128xf32>
    %c0_26 = arith.constant 0 : index
    %c0_27 = arith.constant 0 : index
    %c0_28 = arith.constant 0 : index
    %c0_29 = arith.constant 0 : index
    %38 = vector.load %arg5[%c0_26, %c0_27, %c0_28, %c0_29] : memref<4x3x128x128xf32, #tpu.memory_space<vmem>>, vector<1x1x128x128xf32>
    %39 = vector.shape_cast %38 : vector<1x1x128x128xf32> to vector<128x128xf32>
    %cst_30 = arith.constant dense<0.000000e+00> : vector<32x128xf32>
    %40 = tpu.matmul %37, %39, %cst_30 {dimension_numbers = #tpu.dot_dimension_numbers<[1], [0], [0], [1], [0, 0, 1, 1], [], []>} : vector<32x128xf32>, vector<128x128xf32>, vector<32x128xf32> -> vector<32x128xf32>
    %41 = arith.addf %36, %40 : vector<32x128xf32>
    %c8_31 = arith.constant 8 : index
    %c0_32 = arith.constant 0 : index
    %42 = vector.load %arg10[%c8_31, %c0_32] : memref<48x128xf32, #tpu.memory_space<vmem>>, vector<32x128xf32>
    %c0_33 = arith.constant 0 : index
    %c1 = arith.constant 1 : index
    %c0_34 = arith.constant 0 : index
    %c0_35 = arith.constant 0 : index
    %43 = vector.load %arg5[%c0_33, %c1, %c0_34, %c0_35] : memref<4x3x128x128xf32, #tpu.memory_space<vmem>>, vector<1x1x128x128xf32>
    %44 = vector.shape_cast %43 : vector<1x1x128x128xf32> to vector<128x128xf32>
    %cst_36 = arith.constant dense<0.000000e+00> : vector<32x128xf32>
    %45 = tpu.matmul %42, %44, %cst_36 {dimension_numbers = #tpu.dot_dimension_numbers<[1], [0], [0], [1], [0, 0, 1, 1], [], []>} : vector<32x128xf32>, vector<128x128xf32>, vector<32x128xf32> -> vector<32x128xf32>
    %46 = arith.addf %41, %45 : vector<32x128xf32>
    %c9 = arith.constant 9 : index
    %c0_37 = arith.constant 0 : index
    %47 = vector.load %arg10[%c9, %c0_37] : memref<48x128xf32, #tpu.memory_space<vmem>>, vector<32x128xf32>
    %c0_38 = arith.constant 0 : index
    %c2 = arith.constant 2 : index
    %c0_39 = arith.constant 0 : index
    %c0_40 = arith.constant 0 : index
    %48 = vector.load %arg5[%c0_38, %c2, %c0_39, %c0_40] : memref<4x3x128x128xf32, #tpu.memory_space<vmem>>, vector<1x1x128x128xf32>
    %49 = vector.shape_cast %48 : vector<1x1x128x128xf32> to vector<128x128xf32>
    %cst_41 = arith.constant dense<0.000000e+00> : vector<32x128xf32>
    %50 = tpu.matmul %47, %49, %cst_41 {dimension_numbers = #tpu.dot_dimension_numbers<[1], [0], [0], [1], [0, 0, 1, 1], [], []>} : vector<32x128xf32>, vector<128x128xf32>, vector<32x128xf32> -> vector<32x128xf32>
    %51 = arith.addf %46, %50 : vector<32x128xf32>
    %c0_42 = arith.constant 0 : index
    %c0_43 = arith.constant 0 : index
    %c0_44 = arith.constant 0 : index
    %52 = vector.load %arg6[%c0_42, %c0_43, %c0_44] : memref<4x1x128xf32, #tpu.memory_space<vmem>>, vector<1x1x128xf32>
    %53 = vector.shape_cast %52 : vector<1x1x128xf32> to vector<1x128xf32>
    %54 = vector.broadcast %53 : vector<1x128xf32> to vector<32x128xf32>
    %55 = arith.addf %51, %54 : vector<32x128xf32>
    %cst_45 = arith.constant 0.000000e+00 : f32
    %56 = vector.broadcast %cst_45 : f32 to vector<32x128xf32>
    %57 = arith.cmpf oge, %55, %56 : vector<32x128xf32>
    %cst_46 = arith.constant 1.000000e-01 : f32
    %58 = vector.broadcast %cst_46 : f32 to vector<32x128xf32>
    %59 = arith.mulf %58, %55 : vector<32x128xf32>
    %60 = arith.select %57, %55, %59 : vector<32x128xi1>, vector<32x128xf32>
    %61 = arith.mulf %60, %27 : vector<32x128xf32>
    %c8_47 = arith.constant 8 : index
    %c0_48 = arith.constant 0 : index
    %62 = vector.load %arg10[%c8_47, %c0_48] : memref<48x128xf32, #tpu.memory_space<vmem>>, vector<32x128xf32>
    tpu.vector_store %arg10[%c8_47, %c0_48], %61 {strides = array<i32>} : memref<48x128xf32, #tpu.memory_space<vmem>>, vector<32x128xf32>,
    %cst_49 = arith.constant 0.000000e+00 : f32
    %63 = vector.broadcast %cst_49 : f32 to vector<32x128xf32>
    %c6 = arith.constant 6 : index
    %c0_50 = arith.constant 0 : index
    %64 = vector.load %arg10[%c6, %c0_50] : memref<48x128xf32, #tpu.memory_space<vmem>>, vector<32x128xf32>
    %c1_51 = arith.constant 1 : index
    %c0_52 = arith.constant 0 : index
    %c0_53 = arith.constant 0 : index
    %c0_54 = arith.constant 0 : index
    %65 = vector.load %arg5[%c1_51, %c0_52, %c0_53, %c0_54] : memref<4x3x128x128xf32, #tpu.memory_space<vmem>>, vector<1x1x128x128xf32>
    %66 = vector.shape_cast %65 : vector<1x1x128x128xf32> to vector<128x128xf32>
    %cst_55 = arith.constant dense<0.000000e+00> : vector<32x128xf32>
    %67 = tpu.matmul %64, %66, %cst_55 {dimension_numbers = #tpu.dot_dimension_numbers<[1], [0], [0], [1], [0, 0, 1, 1], [], []>} : vector<32x128xf32>, vector<128x128xf32>, vector<32x128xf32> -> vector<32x128xf32>
    %68 = arith.addf %63, %67 : vector<32x128xf32>
    %c8_56 = arith.constant 8 : index
    %c0_57 = arith.constant 0 : index
    %69 = vector.load %arg10[%c8_56, %c0_57] : memref<48x128xf32, #tpu.memory_space<vmem>>, vector<32x128xf32>
    %c1_58 = arith.constant 1 : index
    %c1_59 = arith.constant 1 : index
    %c0_60 = arith.constant 0 : index
    %c0_61 = arith.constant 0 : index
    %70 = vector.load %arg5[%c1_58, %c1_59, %c0_60, %c0_61] : memref<4x3x128x128xf32, #tpu.memory_space<vmem>>, vector<1x1x128x128xf32>
    %71 = vector.shape_cast %70 : vector<1x1x128x128xf32> to vector<128x128xf32>
    %cst_62 = arith.constant dense<0.000000e+00> : vector<32x128xf32>
    %72 = tpu.matmul %69, %71, %cst_62 {dimension_numbers = #tpu.dot_dimension_numbers<[1], [0], [0], [1], [0, 0, 1, 1], [], []>} : vector<32x128xf32>, vector<128x128xf32>, vector<32x128xf32> -> vector<32x128xf32>
    %73 = arith.addf %68, %72 : vector<32x128xf32>
    %c10 = arith.constant 10 : index
    %c0_63 = arith.constant 0 : index
    %74 = vector.load %arg10[%c10, %c0_63] : memref<48x128xf32, #tpu.memory_space<vmem>>, vector<32x128xf32>
    %c1_64 = arith.constant 1 : index
    %c2_65 = arith.constant 2 : index
    %c0_66 = arith.constant 0 : index
    %c0_67 = arith.constant 0 : index
    %75 = vector.load %arg5[%c1_64, %c2_65, %c0_66, %c0_67] : memref<4x3x128x128xf32, #tpu.memory_space<vmem>>, vector<1x1x128x128xf32>
    %76 = vector.shape_cast %75 : vector<1x1x128x128xf32> to vector<128x128xf32>
    %cst_68 = arith.constant dense<0.000000e+00> : vector<32x128xf32>
    %77 = tpu.matmul %74, %76, %cst_68 {dimension_numbers = #tpu.dot_dimension_numbers<[1], [0], [0], [1], [0, 0, 1, 1], [], []>} : vector<32x128xf32>, vector<128x128xf32>, vector<32x128xf32> -> vector<32x128xf32>
    %78 = arith.addf %73, %77 : vector<32x128xf32>
    %c1_69 = arith.constant 1 : index
    %c0_70 = arith.constant 0 : index
    %c0_71 = arith.constant 0 : index
    %79 = vector.load %arg6[%c1_69, %c0_70, %c0_71] : memref<4x1x128xf32, #tpu.memory_space<vmem>>, vector<1x1x128xf32>
    %80 = vector.shape_cast %79 : vector<1x1x128xf32> to vector<1x128xf32>
    %81 = vector.broadcast %80 : vector<1x128xf32> to vector<32x128xf32>
    %82 = arith.addf %78, %81 : vector<32x128xf32>
    %83 = arith.addf %13, %82 : vector<32x128xf32>
    %cst_72 = arith.constant 0.000000e+00 : f32
    %84 = vector.broadcast %cst_72 : f32 to vector<32x128xf32>
    %85 = arith.cmpf oge, %83, %84 : vector<32x128xf32>
    %cst_73 = arith.constant 1.000000e-01 : f32
    %86 = vector.broadcast %cst_73 : f32 to vector<32x128xf32>
    %87 = arith.mulf %86, %83 : vector<32x128xf32>
    %88 = arith.select %85, %83, %87 : vector<32x128xi1>, vector<32x128xf32>
    %89 = arith.mulf %88, %27 : vector<32x128xf32>
    %c8_74 = arith.constant 8 : index
    %c0_75 = arith.constant 0 : index
    %90 = vector.load %arg10[%c8_74, %c0_75] : memref<48x128xf32, #tpu.memory_space<vmem>>, vector<32x128xf32>
    tpu.vector_store %arg10[%c8_74, %c0_75], %89 {strides = array<i32>} : memref<48x128xf32, #tpu.memory_space<vmem>>, vector<32x128xf32>,
    %cst_76 = arith.constant 0.000000e+00 : f32
    %91 = vector.broadcast %cst_76 : f32 to vector<32x128xf32>
    %c5 = arith.constant 5 : index
    %c0_77 = arith.constant 0 : index
    %92 = vector.load %arg10[%c5, %c0_77] : memref<48x128xf32, #tpu.memory_space<vmem>>, vector<32x128xf32>
    %c2_78 = arith.constant 2 : index
    %c0_79 = arith.constant 0 : index
    %c0_80 = arith.constant 0 : index
    %c0_81 = arith.constant 0 : index
    %93 = vector.load %arg5[%c2_78, %c0_79, %c0_80, %c0_81] : memref<4x3x128x128xf32, #tpu.memory_space<vmem>>, vector<1x1x128x128xf32>
    %94 = vector.shape_cast %93 : vector<1x1x128x128xf32> to vector<128x128xf32>
    %cst_82 = arith.constant dense<0.000000e+00> : vector<32x128xf32>
    %95 = tpu.matmul %92, %94, %cst_82 {dimension_numbers = #tpu.dot_dimension_numbers<[1], [0], [0], [1], [0, 0, 1, 1], [], []>} : vector<32x128xf32>, vector<128x128xf32>, vector<32x128xf32> -> vector<32x128xf32>
    %96 = arith.addf %91, %95 : vector<32x128xf32>
    %c8_83 = arith.constant 8 : index
    %c0_84 = arith.constant 0 : index
    %97 = vector.load %arg10[%c8_83, %c0_84] : memref<48x128xf32, #tpu.memory_space<vmem>>, vector<32x128xf32>
    %c2_85 = arith.constant 2 : index
    %c1_86 = arith.constant 1 : index
    %c0_87 = arith.constant 0 : index
    %c0_88 = arith.constant 0 : index
    %98 = vector.load %arg5[%c2_85, %c1_86, %c0_87, %c0_88] : memref<4x3x128x128xf32, #tpu.memory_space<vmem>>, vector<1x1x128x128xf32>
    %99 = vector.shape_cast %98 : vector<1x1x128x128xf32> to vector<128x128xf32>
    %cst_89 = arith.constant dense<0.000000e+00> : vector<32x128xf32>
    %100 = tpu.matmul %97, %99, %cst_89 {dimension_numbers = #tpu.dot_dimension_numbers<[1], [0], [0], [1], [0, 0, 1, 1], [], []>} : vector<32x128xf32>, vector<128x128xf32>, vector<32x128xf32> -> vector<32x128xf32>
    %101 = arith.addf %96, %100 : vector<32x128xf32>
    %c11 = arith.constant 11 : index
    %c0_90 = arith.constant 0 : index
    %102 = vector.load %arg10[%c11, %c0_90] : memref<48x128xf32, #tpu.memory_space<vmem>>, vector<32x128xf32>
    %c2_91 = arith.constant 2 : index
    %c2_92 = arith.constant 2 : index
    %c0_93 = arith.constant 0 : index
    %c0_94 = arith.constant 0 : index
    %103 = vector.load %arg5[%c2_91, %c2_92, %c0_93, %c0_94] : memref<4x3x128x128xf32, #tpu.memory_space<vmem>>, vector<1x1x128x128xf32>
    %104 = vector.shape_cast %103 : vector<1x1x128x128xf32> to vector<128x128xf32>
    %cst_95 = arith.constant dense<0.000000e+00> : vector<32x128xf32>
    %105 = tpu.matmul %102, %104, %cst_95 {dimension_numbers = #tpu.dot_dimension_numbers<[1], [0], [0], [1], [0, 0, 1, 1], [], []>} : vector<32x128xf32>, vector<128x128xf32>, vector<32x128xf32> -> vector<32x128xf32>
    %106 = arith.addf %101, %105 : vector<32x128xf32>
    %c2_96 = arith.constant 2 : index
    %c0_97 = arith.constant 0 : index
    %c0_98 = arith.constant 0 : index
    %107 = vector.load %arg6[%c2_96, %c0_97, %c0_98] : memref<4x1x128xf32, #tpu.memory_space<vmem>>, vector<1x1x128xf32>
    %108 = vector.shape_cast %107 : vector<1x1x128xf32> to vector<1x128xf32>
    %109 = vector.broadcast %108 : vector<1x128xf32> to vector<32x128xf32>
    %110 = arith.addf %106, %109 : vector<32x128xf32>
    %cst_99 = arith.constant 0.000000e+00 : f32
    %111 = vector.broadcast %cst_99 : f32 to vector<32x128xf32>
    %112 = arith.cmpf oge, %110, %111 : vector<32x128xf32>
    %cst_100 = arith.constant 1.000000e-01 : f32
    %113 = vector.broadcast %cst_100 : f32 to vector<32x128xf32>
    %114 = arith.mulf %113, %110 : vector<32x128xf32>
    %115 = arith.select %112, %110, %114 : vector<32x128xi1>, vector<32x128xf32>
    %116 = arith.mulf %115, %27 : vector<32x128xf32>
    %c8_101 = arith.constant 8 : index
    %c0_102 = arith.constant 0 : index
    %117 = vector.load %arg10[%c8_101, %c0_102] : memref<48x128xf32, #tpu.memory_space<vmem>>, vector<32x128xf32>
    tpu.vector_store %arg10[%c8_101, %c0_102], %116 {strides = array<i32>} : memref<48x128xf32, #tpu.memory_space<vmem>>, vector<32x128xf32>,
    %cst_103 = arith.constant 0.000000e+00 : f32
    %118 = vector.broadcast %cst_103 : f32 to vector<32x128xf32>
    %c7_104 = arith.constant 7 : index
    %c0_105 = arith.constant 0 : index
    %119 = vector.load %arg10[%c7_104, %c0_105] : memref<48x128xf32, #tpu.memory_space<vmem>>, vector<32x128xf32>
    %c3 = arith.constant 3 : index
    %c0_106 = arith.constant 0 : index
    %c0_107 = arith.constant 0 : index
    %c0_108 = arith.constant 0 : index
    %120 = vector.load %arg5[%c3, %c0_106, %c0_107, %c0_108] : memref<4x3x128x128xf32, #tpu.memory_space<vmem>>, vector<1x1x128x128xf32>
    %121 = vector.shape_cast %120 : vector<1x1x128x128xf32> to vector<128x128xf32>
    %cst_109 = arith.constant dense<0.000000e+00> : vector<32x128xf32>
    %122 = tpu.matmul %119, %121, %cst_109 {dimension_numbers = #tpu.dot_dimension_numbers<[1], [0], [0], [1], [0, 0, 1, 1], [], []>} : vector<32x128xf32>, vector<128x128xf32>, vector<32x128xf32> -> vector<32x128xf32>
    %123 = arith.addf %118, %122 : vector<32x128xf32>
    %c8_110 = arith.constant 8 : index
    %c0_111 = arith.constant 0 : index
    %124 = vector.load %arg10[%c8_110, %c0_111] : memref<48x128xf32, #tpu.memory_space<vmem>>, vector<32x128xf32>
    %c3_112 = arith.constant 3 : index
    %c1_113 = arith.constant 1 : index
    %c0_114 = arith.constant 0 : index
    %c0_115 = arith.constant 0 : index
    %125 = vector.load %arg5[%c3_112, %c1_113, %c0_114, %c0_115] : memref<4x3x128x128xf32, #tpu.memory_space<vmem>>, vector<1x1x128x128xf32>
    %126 = vector.shape_cast %125 : vector<1x1x128x128xf32> to vector<128x128xf32>
    %cst_116 = arith.constant dense<0.000000e+00> : vector<32x128xf32>
    %127 = tpu.matmul %124, %126, %cst_116 {dimension_numbers = #tpu.dot_dimension_numbers<[1], [0], [0], [1], [0, 0, 1, 1], [], []>} : vector<32x128xf32>, vector<128x128xf32>, vector<32x128xf32> -> vector<32x128xf32>
    %128 = arith.addf %123, %127 : vector<32x128xf32>
    %c9_117 = arith.constant 9 : index
    %c0_118 = arith.constant 0 : index
    %129 = vector.load %arg10[%c9_117, %c0_118] : memref<48x128xf32, #tpu.memory_space<vmem>>, vector<32x128xf32>
    %c3_119 = arith.constant 3 : index
    %c2_120 = arith.constant 2 : index
    %c0_121 = arith.constant 0 : index
    %c0_122 = arith.constant 0 : index
    %130 = vector.load %arg5[%c3_119, %c2_120, %c0_121, %c0_122] : memref<4x3x128x128xf32, #tpu.memory_space<vmem>>, vector<1x1x128x128xf32>
    %131 = vector.shape_cast %130 : vector<1x1x128x128xf32> to vector<128x128xf32>
    %cst_123 = arith.constant dense<0.000000e+00> : vector<32x128xf32>
    %132 = tpu.matmul %129, %131, %cst_123 {dimension_numbers = #tpu.dot_dimension_numbers<[1], [0], [0], [1], [0, 0, 1, 1], [], []>} : vector<32x128xf32>, vector<128x128xf32>, vector<32x128xf32> -> vector<32x128xf32>
    %133 = arith.addf %128, %132 : vector<32x128xf32>
    %c3_124 = arith.constant 3 : index
    %c0_125 = arith.constant 0 : index
    %c0_126 = arith.constant 0 : index
    %134 = vector.load %arg6[%c3_124, %c0_125, %c0_126] : memref<4x1x128xf32, #tpu.memory_space<vmem>>, vector<1x1x128xf32>
    %135 = vector.shape_cast %134 : vector<1x1x128xf32> to vector<1x128xf32>
    %136 = vector.broadcast %135 : vector<1x128xf32> to vector<32x128xf32>
    %137 = arith.addf %133, %136 : vector<32x128xf32>
    %138 = arith.addf %83, %137 : vector<32x128xf32>
    %139 = vector.extract_strided_slice %138 {offsets = [8, 0], sizes = [16, 128], strides = [1, 1]} : vector<32x128xf32> to vector<16x128xf32>
    %140 = arith.addf %28, %139 : vector<16x128xf32>
    %cst_127 = arith.constant 0.000000e+00 : f32
    %141 = vector.broadcast %cst_127 : f32 to vector<32x128xf32>
    %142 = arith.cmpf oge, %13, %141 : vector<32x128xf32>
    %cst_128 = arith.constant 1.000000e-01 : f32
    %143 = vector.broadcast %cst_128 : f32 to vector<32x128xf32>
    %144 = arith.mulf %143, %13 : vector<32x128xf32>
    %145 = arith.select %142, %13, %144 : vector<32x128xi1>, vector<32x128xf32>
    %146 = arith.mulf %145, %27 : vector<32x128xf32>
    %c8_129 = arith.constant 8 : index
    %c0_130 = arith.constant 0 : index
    %147 = vector.load %arg10[%c8_129, %c0_130] : memref<48x128xf32, #tpu.memory_space<vmem>>, vector<32x128xf32>
    tpu.vector_store %arg10[%c8_129, %c0_130], %146 {strides = array<i32>} : memref<48x128xf32, #tpu.memory_space<vmem>>, vector<32x128xf32>,
    %cst_131 = arith.constant 0.000000e+00 : f32
    %148 = vector.broadcast %cst_131 : f32 to vector<32x128xf32>
    %c6_132 = arith.constant 6 : index
    %c0_133 = arith.constant 0 : index
    %149 = vector.load %arg10[%c6_132, %c0_133] : memref<48x128xf32, #tpu.memory_space<vmem>>, vector<32x128xf32>
    %c0_134 = arith.constant 0 : index
    %c0_135 = arith.constant 0 : index
    %c0_136 = arith.constant 0 : index
    %c0_137 = arith.constant 0 : index
    %150 = vector.load %arg7[%c0_134, %c0_135, %c0_136, %c0_137] : memref<2x5x128x128xf32, #tpu.memory_space<vmem>>, vector<1x1x128x128xf32>
    %151 = vector.shape_cast %150 : vector<1x1x128x128xf32> to vector<128x128xf32>
    %cst_138 = arith.constant dense<0.000000e+00> : vector<32x128xf32>
    %152 = tpu.matmul %149, %151, %cst_138 {dimension_numbers = #tpu.dot_dimension_numbers<[1], [0], [0], [1], [0, 0, 1, 1], [], []>} : vector<32x128xf32>, vector<128x128xf32>, vector<32x128xf32> -> vector<32x128xf32>
    %153 = arith.addf %148, %152 : vector<32x128xf32>
    %c7_139 = arith.constant 7 : index
    %c0_140 = arith.constant 0 : index
    %154 = vector.load %arg10[%c7_139, %c0_140] : memref<48x128xf32, #tpu.memory_space<vmem>>, vector<32x128xf32>
    %c0_141 = arith.constant 0 : index
    %c1_142 = arith.constant 1 : index
    %c0_143 = arith.constant 0 : index
    %c0_144 = arith.constant 0 : index
    %155 = vector.load %arg7[%c0_141, %c1_142, %c0_143, %c0_144] : memref<2x5x128x128xf32, #tpu.memory_space<vmem>>, vector<1x1x128x128xf32>
    %156 = vector.shape_cast %155 : vector<1x1x128x128xf32> to vector<128x128xf32>
    %cst_145 = arith.constant dense<0.000000e+00> : vector<32x128xf32>
    %157 = tpu.matmul %154, %156, %cst_145 {dimension_numbers = #tpu.dot_dimension_numbers<[1], [0], [0], [1], [0, 0, 1, 1], [], []>} : vector<32x128xf32>, vector<128x128xf32>, vector<32x128xf32> -> vector<32x128xf32>
    %158 = arith.addf %153, %157 : vector<32x128xf32>
    %c8_146 = arith.constant 8 : index
    %c0_147 = arith.constant 0 : index
    %159 = vector.load %arg10[%c8_146, %c0_147] : memref<48x128xf32, #tpu.memory_space<vmem>>, vector<32x128xf32>
    %c0_148 = arith.constant 0 : index
    %c2_149 = arith.constant 2 : index
    %c0_150 = arith.constant 0 : index
    %c0_151 = arith.constant 0 : index
    %160 = vector.load %arg7[%c0_148, %c2_149, %c0_150, %c0_151] : memref<2x5x128x128xf32, #tpu.memory_space<vmem>>, vector<1x1x128x128xf32>
    %161 = vector.shape_cast %160 : vector<1x1x128x128xf32> to vector<128x128xf32>
    %cst_152 = arith.constant dense<0.000000e+00> : vector<32x128xf32>
    %162 = tpu.matmul %159, %161, %cst_152 {dimension_numbers = #tpu.dot_dimension_numbers<[1], [0], [0], [1], [0, 0, 1, 1], [], []>} : vector<32x128xf32>, vector<128x128xf32>, vector<32x128xf32> -> vector<32x128xf32>
    %163 = arith.addf %158, %162 : vector<32x128xf32>
    %c9_153 = arith.constant 9 : index
    %c0_154 = arith.constant 0 : index
    %164 = vector.load %arg10[%c9_153, %c0_154] : memref<48x128xf32, #tpu.memory_space<vmem>>, vector<32x128xf32>
    %c0_155 = arith.constant 0 : index
    %c3_156 = arith.constant 3 : index
    %c0_157 = arith.constant 0 : index
    %c0_158 = arith.constant 0 : index
    %165 = vector.load %arg7[%c0_155, %c3_156, %c0_157, %c0_158] : memref<2x5x128x128xf32, #tpu.memory_space<vmem>>, vector<1x1x128x128xf32>
    %166 = vector.shape_cast %165 : vector<1x1x128x128xf32> to vector<128x128xf32>
    %cst_159 = arith.constant dense<0.000000e+00> : vector<32x128xf32>
    %167 = tpu.matmul %164, %166, %cst_159 {dimension_numbers = #tpu.dot_dimension_numbers<[1], [0], [0], [1], [0, 0, 1, 1], [], []>} : vector<32x128xf32>, vector<128x128xf32>, vector<32x128xf32> -> vector<32x128xf32>
    %168 = arith.addf %163, %167 : vector<32x128xf32>
    %c10_160 = arith.constant 10 : index
    %c0_161 = arith.constant 0 : index
    %169 = vector.load %arg10[%c10_160, %c0_161] : memref<48x128xf32, #tpu.memory_space<vmem>>, vector<32x128xf32>
    %c0_162 = arith.constant 0 : index
    %c4 = arith.constant 4 : index
    %c0_163 = arith.constant 0 : index
    %c0_164 = arith.constant 0 : index
    %170 = vector.load %arg7[%c0_162, %c4, %c0_163, %c0_164] : memref<2x5x128x128xf32, #tpu.memory_space<vmem>>, vector<1x1x128x128xf32>
    %171 = vector.shape_cast %170 : vector<1x1x128x128xf32> to vector<128x128xf32>
    %cst_165 = arith.constant dense<0.000000e+00> : vector<32x128xf32>
    %172 = tpu.matmul %169, %171, %cst_165 {dimension_numbers = #tpu.dot_dimension_numbers<[1], [0], [0], [1], [0, 0, 1, 1], [], []>} : vector<32x128xf32>, vector<128x128xf32>, vector<32x128xf32> -> vector<32x128xf32>
    %173 = arith.addf %168, %172 : vector<32x128xf32>
    %c0_166 = arith.constant 0 : index
    %c0_167 = arith.constant 0 : index
    %c0_168 = arith.constant 0 : index
    %174 = vector.load %arg8[%c0_166, %c0_167, %c0_168] : memref<2x1x128xf32, #tpu.memory_space<vmem>>, vector<1x1x128xf32>
    %175 = vector.shape_cast %174 : vector<1x1x128xf32> to vector<1x128xf32>
    %176 = vector.broadcast %175 : vector<1x128xf32> to vector<32x128xf32>
    %177 = arith.addf %173, %176 : vector<32x128xf32>
    %178 = arith.addf %13, %177 : vector<32x128xf32>
    %cst_169 = arith.constant 0.000000e+00 : f32
    %179 = vector.broadcast %cst_169 : f32 to vector<32x128xf32>
    %180 = arith.cmpf oge, %178, %179 : vector<32x128xf32>
    %cst_170 = arith.constant 1.000000e-01 : f32
    %181 = vector.broadcast %cst_170 : f32 to vector<32x128xf32>
    %182 = arith.mulf %181, %178 : vector<32x128xf32>
    %183 = arith.select %180, %178, %182 : vector<32x128xi1>, vector<32x128xf32>
    %184 = arith.mulf %183, %27 : vector<32x128xf32>
    %c8_171 = arith.constant 8 : index
    %c0_172 = arith.constant 0 : index
    %185 = vector.load %arg10[%c8_171, %c0_172] : memref<48x128xf32, #tpu.memory_space<vmem>>, vector<32x128xf32>
    tpu.vector_store %arg10[%c8_171, %c0_172], %184 {strides = array<i32>} : memref<48x128xf32, #tpu.memory_space<vmem>>, vector<32x128xf32>,
    %cst_173 = arith.constant 0.000000e+00 : f32
    %186 = vector.broadcast %cst_173 : f32 to vector<32x128xf32>
    %c4_174 = arith.constant 4 : index
    %c0_175 = arith.constant 0 : index
    %187 = vector.load %arg10[%c4_174, %c0_175] : memref<48x128xf32, #tpu.memory_space<vmem>>, vector<32x128xf32>
    %c1_176 = arith.constant 1 : index
    %c0_177 = arith.constant 0 : index
    %c0_178 = arith.constant 0 : index
    %c0_179 = arith.constant 0 : index
    %188 = vector.load %arg7[%c1_176, %c0_177, %c0_178, %c0_179] : memref<2x5x128x128xf32, #tpu.memory_space<vmem>>, vector<1x1x128x128xf32>
    %189 = vector.shape_cast %188 : vector<1x1x128x128xf32> to vector<128x128xf32>
    %cst_180 = arith.constant dense<0.000000e+00> : vector<32x128xf32>
    %190 = tpu.matmul %187, %189, %cst_180 {dimension_numbers = #tpu.dot_dimension_numbers<[1], [0], [0], [1], [0, 0, 1, 1], [], []>} : vector<32x128xf32>, vector<128x128xf32>, vector<32x128xf32> -> vector<32x128xf32>
    %191 = arith.addf %186, %190 : vector<32x128xf32>
    %c6_181 = arith.constant 6 : index
    %c0_182 = arith.constant 0 : index
    %192 = vector.load %arg10[%c6_181, %c0_182] : memref<48x128xf32, #tpu.memory_space<vmem>>, vector<32x128xf32>
    %c1_183 = arith.constant 1 : index
    %c1_184 = arith.constant 1 : index
    %c0_185 = arith.constant 0 : index
    %c0_186 = arith.constant 0 : index
    %193 = vector.load %arg7[%c1_183, %c1_184, %c0_185, %c0_186] : memref<2x5x128x128xf32, #tpu.memory_space<vmem>>, vector<1x1x128x128xf32>
    %194 = vector.shape_cast %193 : vector<1x1x128x128xf32> to vector<128x128xf32>
    %cst_187 = arith.constant dense<0.000000e+00> : vector<32x128xf32>
    %195 = tpu.matmul %192, %194, %cst_187 {dimension_numbers = #tpu.dot_dimension_numbers<[1], [0], [0], [1], [0, 0, 1, 1], [], []>} : vector<32x128xf32>, vector<128x128xf32>, vector<32x128xf32> -> vector<32x128xf32>
    %196 = arith.addf %191, %195 : vector<32x128xf32>
    %c8_188 = arith.constant 8 : index
    %c0_189 = arith.constant 0 : index
    %197 = vector.load %arg10[%c8_188, %c0_189] : memref<48x128xf32, #tpu.memory_space<vmem>>, vector<32x128xf32>
    %c1_190 = arith.constant 1 : index
    %c2_191 = arith.constant 2 : index
    %c0_192 = arith.constant 0 : index
    %c0_193 = arith.constant 0 : index
    %198 = vector.load %arg7[%c1_190, %c2_191, %c0_192, %c0_193] : memref<2x5x128x128xf32, #tpu.memory_space<vmem>>, vector<1x1x128x128xf32>
    %199 = vector.shape_cast %198 : vector<1x1x128x128xf32> to vector<128x128xf32>
    %cst_194 = arith.constant dense<0.000000e+00> : vector<32x128xf32>
    %200 = tpu.matmul %197, %199, %cst_194 {dimension_numbers = #tpu.dot_dimension_numbers<[1], [0], [0], [1], [0, 0, 1, 1], [], []>} : vector<32x128xf32>, vector<128x128xf32>, vector<32x128xf32> -> vector<32x128xf32>
    %201 = arith.addf %196, %200 : vector<32x128xf32>
    %c10_195 = arith.constant 10 : index
    %c0_196 = arith.constant 0 : index
    %202 = vector.load %arg10[%c10_195, %c0_196] : memref<48x128xf32, #tpu.memory_space<vmem>>, vector<32x128xf32>
    %c1_197 = arith.constant 1 : index
    %c3_198 = arith.constant 3 : index
    %c0_199 = arith.constant 0 : index
    %c0_200 = arith.constant 0 : index
    %203 = vector.load %arg7[%c1_197, %c3_198, %c0_199, %c0_200] : memref<2x5x128x128xf32, #tpu.memory_space<vmem>>, vector<1x1x128x128xf32>
    %204 = vector.shape_cast %203 : vector<1x1x128x128xf32> to vector<128x128xf32>
    %cst_201 = arith.constant dense<0.000000e+00> : vector<32x128xf32>
    %205 = tpu.matmul %202, %204, %cst_201 {dimension_numbers = #tpu.dot_dimension_numbers<[1], [0], [0], [1], [0, 0, 1, 1], [], []>} : vector<32x128xf32>, vector<128x128xf32>, vector<32x128xf32> -> vector<32x128xf32>
    %206 = arith.addf %201, %205 : vector<32x128xf32>
    %c12 = arith.constant 12 : index
    %c0_202 = arith.constant 0 : index
    %207 = vector.load %arg10[%c12, %c0_202] : memref<48x128xf32, #tpu.memory_space<vmem>>, vector<32x128xf32>
    %c1_203 = arith.constant 1 : index
    %c4_204 = arith.constant 4 : index
    %c0_205 = arith.constant 0 : index
    %c0_206 = arith.constant 0 : index
    %208 = vector.load %arg7[%c1_203, %c4_204, %c0_205, %c0_206] : memref<2x5x128x128xf32, #tpu.memory_space<vmem>>, vector<1x1x128x128xf32>
    %209 = vector.shape_cast %208 : vector<1x1x128x128xf32> to vector<128x128xf32>
    %cst_207 = arith.constant dense<0.000000e+00> : vector<32x128xf32>
    %210 = tpu.matmul %207, %209, %cst_207 {dimension_numbers = #tpu.dot_dimension_numbers<[1], [0], [0], [1], [0, 0, 1, 1], [], []>} : vector<32x128xf32>, vector<128x128xf32>, vector<32x128xf32> -> vector<32x128xf32>
    %211 = arith.addf %206, %210 : vector<32x128xf32>
    %c1_208 = arith.constant 1 : index
    %c0_209 = arith.constant 0 : index
    %c0_210 = arith.constant 0 : index
    %212 = vector.load %arg8[%c1_208, %c0_209, %c0_210] : memref<2x1x128xf32, #tpu.memory_space<vmem>>, vector<1x1x128xf32>
    %213 = vector.shape_cast %212 : vector<1x1x128xf32> to vector<1x128xf32>
    %214 = vector.broadcast %213 : vector<1x128xf32> to vector<32x128xf32>
    %215 = arith.addf %211, %214 : vector<32x128xf32>
    %216 = arith.addf %178, %215 : vector<32x128xf32>
    %217 = vector.extract_strided_slice %216 {offsets = [8, 0], sizes = [16, 128], strides = [1, 1]} : vector<32x128xf32> to vector<16x128xf32>
    %218 = arith.addf %140, %217 : vector<16x128xf32>
    %cst_211 = arith.constant 5.000000e-01 : f32
    %219 = vector.broadcast %cst_211 : f32 to vector<16x128xf32>
    %220 = arith.mulf %218, %219 : vector<16x128xf32>
    %221 = vector.extract_strided_slice %220 {offsets = [0, 0], sizes = [16, 4], strides = [1, 1]} : vector<16x128xf32> to vector<16x4xf32>
    %c0_212 = arith.constant 0 : index
    %c0_213 = arith.constant 0 : index
    %c0_214 = arith.constant 0 : index
    %222 = vector.load %arg9[%c0_212, %c0_213, %c0_214] : memref<1x16x4xf32, #tpu.memory_space<vmem>>, vector<1x16x4xf32>
    %223 = vector.shape_cast %222 : vector<1x16x4xf32> to vector<16x4xf32>
    %224 = vector.shape_cast %221 : vector<16x4xf32> to vector<1x16x4xf32>
    tpu.vector_store %arg9[%c0_212, %c0_213, %c0_214], %224 {strides = array<i32>} : memref<1x16x4xf32, #tpu.memory_space<vmem>>, vector<1x16x4xf32>,
    return
  }
  func.func @transform_0(%arg0: i32, %arg1: i32) -> (i32, i32, i32) {
    %c0_i32 = arith.constant 0 : i32
    %c0_i32_0 = arith.constant 0 : i32
    return %arg0, %arg1, %c0_i32 : i32, i32, i32
  }
  func.func @transform_1(%arg0: i32, %arg1: i32) -> (i32, i32, i32, i32) {
    %c0_i32 = arith.constant 0 : i32
    %c0_i32_0 = arith.constant 0 : i32
    %c0_i32_1 = arith.constant 0 : i32
    return %arg0, %arg1, %c0_i32, %c0_i32_0 : i32, i32, i32, i32
  }
  func.func @transform_2(%arg0: i32, %arg1: i32) -> (i32, i32, i32, i32) {
    %c0_i32 = arith.constant 0 : i32
    %c0_i32_0 = arith.constant 0 : i32
    %c0_i32_1 = arith.constant 0 : i32
    return %arg0, %arg1, %c0_i32, %c0_i32_0 : i32, i32, i32, i32
  }
  func.func @transform_3(%arg0: i32, %arg1: i32) -> (i32, i32, i32, i32) {
    %c0_i32 = arith.constant 0 : i32
    %c0_i32_0 = arith.constant 0 : i32
    %c0_i32_1 = arith.constant 0 : i32
    %c0_i32_2 = arith.constant 0 : i32
    %c0_i32_3 = arith.constant 0 : i32
    return %c0_i32, %c0_i32_0, %c0_i32_1, %c0_i32_2 : i32, i32, i32, i32
  }
  func.func @transform_4(%arg0: i32, %arg1: i32) -> (i32, i32, i32) {
    %c0_i32 = arith.constant 0 : i32
    %c0_i32_0 = arith.constant 0 : i32
    %c0_i32_1 = arith.constant 0 : i32
    %c0_i32_2 = arith.constant 0 : i32
    return %c0_i32, %c0_i32_0, %c0_i32_1 : i32, i32, i32
  }
  func.func @transform_5(%arg0: i32, %arg1: i32) -> (i32, i32, i32, i32) {
    %c0_i32 = arith.constant 0 : i32
    %c0_i32_0 = arith.constant 0 : i32
    %c0_i32_1 = arith.constant 0 : i32
    %c0_i32_2 = arith.constant 0 : i32
    %c0_i32_3 = arith.constant 0 : i32
    return %c0_i32, %c0_i32_0, %c0_i32_1, %c0_i32_2 : i32, i32, i32, i32
  }
  func.func @transform_6(%arg0: i32, %arg1: i32) -> (i32, i32, i32) {
    %c0_i32 = arith.constant 0 : i32
    %c0_i32_0 = arith.constant 0 : i32
    %c0_i32_1 = arith.constant 0 : i32
    %c0_i32_2 = arith.constant 0 : i32
    return %c0_i32, %c0_i32_0, %c0_i32_1 : i32, i32, i32
  }
  func.func @transform_7(%arg0: i32, %arg1: i32) -> (i32, i32, i32) {
    %c0_i32 = arith.constant 0 : i32
    %c0_i32_0 = arith.constant 0 : i32
    return %arg0, %arg1, %c0_i32 : i32, i32, i32
  }
}

</mosaic_0001>

<llo_original>
// kernel: tile.8
$region0: #{tile.8}
  #allocation0 [shape = 's32[1]{0}', space=sflag, size = 0x4, scoped, tag = 'scoped memory for tile.8']
  %s0 = inlined_call_operand.vmem [shape: f32[128], index: 0, kind: input, shape index: {}]
  %s1 = inlined_call_operand.vmem [shape: f32[2,128], index: 1, kind: output, shape index: {}]
  // Predicated region
  $region2: #{tile.8} parent=0 // pred_check
    _
  $region3: #{tile.8} parent=0 // pred_check_branch
    %3 = sbr.rel (0) target = $region5
  $region4: #{tile.8} parent=0 // pred_region
    _
  $region5: #{tile.8} parent=0 // pred_fallthru
    _
  %v4 = vld [vmem:[%s0] ss:$0 sm:$0xff]
  %5 = vst [vmem:[%s1] sm:$0x3] %v4

// kernel: _lambda_.2
$region0: #{_lambda_.2}
  #allocation0 [shape = 'u32[]', space=smem, size = 0x4, offset = 0x4, fixed_abs, tag = 'smem constant byte address 0x4 - core index']
  #allocation1 [shape = 'u32[72,128]{1,0:T(1,128)}', space=vmem, size = 0x9000, scoped, tag = 'internal scratch']
  #allocation2 [shape = 'f32[24,128]{1,0:T(8,128)}', space=vmem, size = 0x3000, scoped, tag = 'scratch operand']
  %s0 = inlined_call_operand.vmem [shape: f32[2,16,128], index: 0, kind: input, shape index: {}]
  %s1 = inlined_call_operand.vmem [shape: f32[2,2,8,128], index: 1, kind: input, shape index: {}]
  %s2 = inlined_call_operand.vmem [shape: f32[2,2,8,128], index: 2, kind: input, shape index: {}]
  %s3 = inlined_call_operand.vmem [shape: f32[128,256], index: 3, kind: input, shape index: {}]
  %s4 = inlined_call_operand.vmem [shape: f32[128,128], index: 4, kind: input, shape index: {}]
  %s5 = inlined_call_operand.vmem [shape: f32[128,128], index: 5, kind: input, shape index: {}]
  %s6 = inlined_call_operand.vmem [shape: f32[1,256], index: 6, kind: input, shape index: {}]
  %s7 = inlined_call_operand.vmem [shape: f32[2,16,256], index: 7, kind: output, shape index: {}]
  %s8 = sld [smem:[#allocation0]]
  $region61: #{_lambda_.2} parent=0
    _
  %s10 = ssub.s32 1, %s8
  %s11 = scalar_select 0, %s10, %s8
  loop: start=0, step=1, limit=6
  $region2: #{_lambda_.2} parent=0 // loop_pre_header
    _
  $region3: #{_lambda_.2} parent=0 // loop_header
    %s13 = sphi 0, %s17
    %p14 = scmp.ge.s32.totalorder %s13, 6
    %s20 = sphi 0, %s32
    %s21 = sphi 0, %s28
    %s22 = sphi 0, %s20
    %s23 = sphi 0, %s21
    %s24 = sphi 0, %s22
    %s25 = sphi 0, %s23
    %s37 = sphi 0, %s39
    %s40 = sphi 0, %s37
    %s41 = sphi 0, %s40
    %s57 = sphi 0, %s41
    %s65 = sphi 0, %s67
    %s68 = sphi 0, %s65
    %s69 = sphi 0, %s68
    %s85 = sphi 0, %s69
    %s93 = sphi 0, %s95
    %s96 = sphi 0, %s93
    %s97 = sphi 0, %s96
    %s113 = sphi 0, %s97
    %s117 = sphi 0, %s117
    %s119 = sphi 0, %s117
    %s120 = sphi 0, %s119
    %s134 = sphi 0, %s120
    %s138 = sphi 0, %s138
    %s140 = sphi 0, %s138
    %s141 = sphi 0, %s140
    %s155 = sphi 0, %s141
    %s159 = sphi 0, %s159
    %s161 = sphi 0, %s159
    %s162 = sphi 0, %s161
    %s176 = sphi 0, %s162
    %s180 = sphi 0, %s180
    %s182 = sphi 0, %s180
    %s183 = sphi 0, %s182
    %s197 = sphi 0, %s183
    %s205 = sphi 0, %s207
    %s208 = sphi 0, %s205
    %s209 = sphi 0, %s208
    %s225 = sphi 0, %s209
  $region4: #{_lambda_.2} parent=0 // loop_header_branch
    %16 = sbr.rel (%p14) target = $region8
  $region5: #{_lambda_.2} parent=0 // loop_body
    %s18 = ssub.s32 %s13, 1
    %s19 = ssub.s32 %s13, 2
    %s26 = sadd.s32 1, %s21
    %p27 = scmp.ge.s32.totalorder %s26, 2
    %s28 = scalar_select %p27, 0, %s26
    %s29 = sadd.s32 1, %s20
    %s30 = scalar_select %p27, %s29, %s20
    %p31 = scmp.ge.s32.totalorder %s30, 2
    %s32 = scalar_select %p31, 0, %s30
    %s33 = ssub.s32 %s20, %s32
    %s34 = ssub.s32 %s21, %s28
    %s35 = sor.u32 %s33, %s34
    %p36 = scmp.eq.s32.totalorder %s35, 0
    %s38 = sadd.s32 %s37, 1
    %s39 = scalar_select %p36, %s37, %s38
    %p42 = pneg %p36
    %p43 = scmp.eq.s32.totalorder %s13, 3
    %p44 = por %p42, %p43
    %p45 = scmp.ne.s32.totalorder %s37, %s40
    %p46 = scmp.eq.s32.totalorder %s13, 0
    %p47 = por %p45, %p46
    %p48 = scmp.ne.s32.totalorder %s37, %s40
    %p49 = scmp.eq.s32.totalorder %s18, 3
    %p50 = por %p48, %p49
    %p51 = scmp.ne.s32.totalorder %s40, %s41
    %p52 = scmp.eq.s32.totalorder %s18, 0
    %p53 = por %p51, %p52
    %p54 = scmp.ne.s32.totalorder %s40, %s41
    %p55 = scmp.eq.s32.totalorder %s19, 3
    %p56 = por %p54, %p55
    %p58 = scmp.ne.s32.totalorder %s41, %s57
    %p59 = scmp.eq.s32.totalorder %s19, 0
    %p60 = por %p58, %p59
    %s61 = ssub.s32 %s20, %s32
    %s62 = ssub.s32 %s21, %s28
    %s63 = sor.u32 %s61, %s62
    %p64 = scmp.eq.s32.totalorder %s63, 0
    %s66 = sadd.s32 %s65, 1
    %s67 = scalar_select %p64, %s65, %s66
    %p70 = pneg %p64
    %p71 = scmp.eq.s32.totalorder %s13, 3
    %p72 = por %p70, %p71
    %p73 = scmp.ne.s32.totalorder %s65, %s68
    %p74 = scmp.eq.s32.totalorder %s13, 0
    %p75 = por %p73, %p74
    %p76 = scmp.ne.s32.totalorder %s65, %s68
    %p77 = scmp.eq.s32.totalorder %s18, 3
    %p78 = por %p76, %p77
    %p79 = scmp.ne.s32.totalorder %s68, %s69
    %p80 = scmp.eq.s32.totalorder %s18, 0
    %p81 = por %p79, %p80
    %p82 = scmp.ne.s32.totalorder %s68, %s69
    %p83 = scmp.eq.s32.totalorder %s19, 3
    %p84 = por %p82, %p83
    %p86 = scmp.ne.s32.totalorder %s69, %s85
    %p87 = scmp.eq.s32.totalorder %s19, 0
    %p88 = por %p86, %p87
    %s89 = ssub.s32 %s20, %s32
    %s90 = ssub.s32 %s21, %s28
    %s91 = sor.u32 %s89, %s90
    %p92 = scmp.eq.s32.totalorder %s91, 0
    %s94 = sadd.s32 %s93, 1
    %s95 = scalar_select %p92, %s93, %s94
    %p98 = pneg %p92
    %p99 = scmp.eq.s32.totalorder %s13, 3
    %p100 = por %p98, %p99
    %p101 = scmp.ne.s32.totalorder %s93, %s96
    %p102 = scmp.eq.s32.totalorder %s13, 0
    %p103 = por %p101, %p102
    %p104 = scmp.ne.s32.totalorder %s93, %s96
    %p105 = scmp.eq.s32.totalorder %s18, 3
    %p106 = por %p104, %p105
    %p107 = scmp.ne.s32.totalorder %s96, %s97
    %p108 = scmp.eq.s32.totalorder %s18, 0
    %p109 = por %p107, %p108
    %p110 = scmp.ne.s32.totalorder %s96, %s97
    %p111 = scmp.eq.s32.totalorder %s19, 3
    %p112 = por %p110, %p111
    %p114 = scmp.ne.s32.totalorder %s97, %s113
    %p115 = scmp.eq.s32.totalorder %s19, 0
    %p116 = por %p114, %p115
    %s118 = sadd.s32 %s117, 1
    %p121 = scmp.eq.s32.totalorder %s13, 3
    %p122 = scmp.ne.s32.totalorder %s117, %s119
    %p123 = scmp.eq.s32.totalorder %s13, 0
    %p124 = por %p122, %p123
    %p125 = scmp.ne.s32.totalorder %s117, %s119
    %p126 = scmp.eq.s32.totalorder %s18, 3
    %p127 = por %p125, %p126
    %p128 = scmp.ne.s32.totalorder %s119, %s120
    %p129 = scmp.eq.s32.totalorder %s18, 0
    %p130 = por %p128, %p129
    %p131 = scmp.ne.s32.totalorder %s119, %s120
    %p132 = scmp.eq.s32.totalorder %s19, 3
    %p133 = por %p131, %p132
    %p135 = scmp.ne.s32.totalorder %s120, %s134
    %p136 = scmp.eq.s32.totalorder %s19, 0
    %p137 = por %p135, %p136
    %s139 = sadd.s32 %s138, 1
    %p142 = scmp.eq.s32.totalorder %s13, 3
    %p143 = scmp.ne.s32.totalorder %s138, %s140
    %p144 = scmp.eq.s32.totalorder %s13, 0
    %p145 = por %p143, %p144
    %p146 = scmp.ne.s32.totalorder %s138, %s140
    %p147 = scmp.eq.s32.totalorder %s18, 3
    %p148 = por %p146, %p147
    %p149 = scmp.ne.s32.totalorder %s140, %s141
    %p150 = scmp.eq.s32.totalorder %s18, 0
    %p151 = por %p149, %p150
    %p152 = scmp.ne.s32.totalorder %s140, %s141
    %p153 = scmp.eq.s32.totalorder %s19, 3
    %p154 = por %p152, %p153
    %p156 = scmp.ne.s32.totalorder %s141, %s155
    %p157 = scmp.eq.s32.totalorder %s19, 0
    %p158 = por %p156, %p157
    %s160 = sadd.s32 %s159, 1
    %p163 = scmp.eq.s32.totalorder %s13, 3
    %p164 = scmp.ne.s32.totalorder %s159, %s161
    %p165 = scmp.eq.s32.totalorder %s13, 0
    %p166 = por %p164, %p165
    %p167 = scmp.ne.s32.totalorder %s159, %s161
    %p168 = scmp.eq.s32.totalorder %s18, 3
    %p169 = por %p167, %p168
    %p170 = scmp.ne.s32.totalorder %s161, %s162
    %p171 = scmp.eq.s32.totalorder %s18, 0
    %p172 = por %p170, %p171
    %p173 = scmp.ne.s32.totalorder %s161, %s162
    %p174 = scmp.eq.s32.totalorder %s19, 3
    %p175 = por %p173, %p174
    %p177 = scmp.ne.s32.totalorder %s162, %s176
    %p178 = scmp.eq.s32.totalorder %s19, 0
    %p179 = por %p177, %p178
    %s181 = sadd.s32 %s180, 1
    %p184 = scmp.eq.s32.totalorder %s13, 3
    %p185 = scmp.ne.s32.totalorder %s180, %s182
    %p186 = scmp.eq.s32.totalorder %s13, 0
    %p187 = por %p185, %p186
    %p188 = scmp.ne.s32.totalorder %s180, %s182
    %p189 = scmp.eq.s32.totalorder %s18, 3
    %p190 = por %p188, %p189
    %p191 = scmp.ne.s32.totalorder %s182, %s183
    %p192 = scmp.eq.s32.totalorder %s18, 0
    %p193 = por %p191, %p192
    %p194 = scmp.ne.s32.totalorder %s182, %s183
    %p195 = scmp.eq.s32.totalorder %s19, 3
    %p196 = por %p194, %p195
    %p198 = scmp.ne.s32.totalorder %s183, %s197
    %p199 = scmp.eq.s32.totalorder %s19, 0
    %p200 = por %p198, %p199
    %s201 = ssub.s32 %s20, %s32
    %s202 = ssub.s32 %s21, %s28
    %s203 = sor.u32 %s201, %s202
    %p204 = scmp.eq.s32.totalorder %s203, 0
    %s206 = sadd.s32 %s205, 1
    %s207 = scalar_select %p204, %s205, %s206
    %p210 = pneg %p204
    %p211 = scmp.eq.s32.totalorder %s13, 3
    %p212 = por %p210, %p211
    %p213 = scmp.ne.s32.totalorder %s205, %s208
    %p214 = scmp.eq.s32.totalorder %s13, 0
    %p215 = por %p213, %p214
    %p216 = scmp.ne.s32.totalorder %s205, %s208
    %p217 = scmp.eq.s32.totalorder %s18, 3
    %p218 = por %p216, %p217
    %p219 = scmp.ne.s32.totalorder %s208, %s209
    %p220 = scmp.eq.s32.totalorder %s18, 0
    %p221 = por %p219, %p220
    %p222 = scmp.ne.s32.totalorder %s208, %s209
    %p223 = scmp.eq.s32.totalorder %s19, 3
    %p224 = por %p222, %p223
    %p226 = scmp.ne.s32.totalorder %s209, %s225
    %p227 = scmp.eq.s32.totalorder %s19, 0
    %p228 = por %p226, %p227
    %p229 = scmp.le.s32.totalorder 1, %s13
    %p230 = scmp.lt.s32.totalorder %s13, 5
    %p231 = pnand %p229, %p230
    %p232 = pneg %p231
    // Predicated region
    $region9: #{_lambda_.2} parent=5 // pred_check
      _
    $region10: #{_lambda_.2} parent=5 // pred_check_branch
      %234 = sbr.rel (%p231) target = $region12
    $region11: #{_lambda_.2} parent=5 // pred_region
      %s235 = ssub.s32 %s13, 1
      // Predicated region
      $region13: #{_lambda_.2} parent=11 // pred_check
        %p236 = pneg %p130
      $region14: #{_lambda_.2} parent=11 // pred_check_branch
        %238 = sbr.rel (%p236) target = $region16
      $region15: #{_lambda_.2} parent=11 // pred_region
        _
      $region16: #{_lambda_.2} parent=11 // pred_fallthru
        _
      // Predicated region
      $region17: #{_lambda_.2} parent=11 // pred_check
        %p239 = pneg %p151
      $region18: #{_lambda_.2} parent=11 // pred_check_branch
        %241 = sbr.rel (%p239) target = $region20
      $region19: #{_lambda_.2} parent=11 // pred_region
        _
      $region20: #{_lambda_.2} parent=11 // pred_fallthru
        _
      // Predicated region
      $region21: #{_lambda_.2} parent=11 // pred_check
        %p242 = pneg %p172
      $region22: #{_lambda_.2} parent=11 // pred_check_branch
        %244 = sbr.rel (%p242) target = $region24
      $region23: #{_lambda_.2} parent=11 // pred_region
        _
      $region24: #{_lambda_.2} parent=11 // pred_fallthru
        _
      // Predicated region
      $region25: #{_lambda_.2} parent=11 // pred_check
        %p245 = pneg %p193
      $region26: #{_lambda_.2} parent=11 // pred_check_branch
        %247 = sbr.rel (%p245) target = $region28
      $region27: #{_lambda_.2} parent=11 // pred_region
        _
      $region28: #{_lambda_.2} parent=11 // pred_fallthru
        _
    $region12: #{_lambda_.2} parent=5 // pred_fallthru
      _
    %p248 = scmp.lt.s32.totalorder %s13, 4
    // Predicated region
    $region29: #{_lambda_.2} parent=5 // pred_check
      %p249 = pneg %p248
    $region30: #{_lambda_.2} parent=5 // pred_check_branch
      %251 = sbr.rel (%p249) target = $region32
    $region31: #{_lambda_.2} parent=5 // pred_region
      // Predicated region
      $region33: #{_lambda_.2} parent=31 // pred_check
        %p252 = pneg %p47
      $region34: #{_lambda_.2} parent=31 // pred_check_branch
        %254 = sbr.rel (%p252) target = $region36
      $region35: #{_lambda_.2} parent=31 // pred_region
        %p255 = scmp.lt.s32.totalorder %s20, 1
        %s256 = scalar_select %p255, %s20, 1
        %p257 = scmp.lt.s32.totalorder %s21, 1
        %s258 = scalar_select %p257, %s21, 1
        %s259 = smul.addr %s256, 2
        %s260 = sadd.s32 %s258, %s259
        %s261 = smul.addr %s260, 8
        %s262 = scalar_lea.vmem %s0, %s261
      $region36: #{_lambda_.2} parent=31 // pred_fallthru
        _
      // Predicated region
      $region37: #{_lambda_.2} parent=31 // pred_check
        %p263 = pneg %p75
      $region38: #{_lambda_.2} parent=31 // pred_check_branch
        %265 = sbr.rel (%p263) target = $region40
      $region39: #{_lambda_.2} parent=31 // pred_region
        %p266 = scmp.lt.s32.totalorder %s20, 1
        %s267 = scalar_select %p266, %s20, 1
        %p268 = scmp.lt.s32.totalorder %s21, 1
        %s269 = scalar_select %p268, %s21, 1
        %s270 = smul.addr %s267, 2
        %s271 = sadd.s32 %s269, %s270
        %s272 = smul.addr %s271, 8
        %s273 = scalar_lea.vmem %s1, %s272
      $region40: #{_lambda_.2} parent=31 // pred_fallthru
        _
      // Predicated region
      $region41: #{_lambda_.2} parent=31 // pred_check
        %p274 = pneg %p103
      $region42: #{_lambda_.2} parent=31 // pred_check_branch
        %276 = sbr.rel (%p274) target = $region44
      $region43: #{_lambda_.2} parent=31 // pred_region
        %p277 = scmp.lt.s32.totalorder %s20, 1
        %s278 = scalar_select %p277, %s20, 1
        %p279 = scmp.lt.s32.totalorder %s21, 1
        %s280 = scalar_select %p279, %s21, 1
        %s281 = smul.addr %s278, 2
        %s282 = sadd.s32 %s280, %s281
        %s283 = smul.addr %s282, 8
        %s284 = scalar_lea.vmem %s2, %s283
      $region44: #{_lambda_.2} parent=31 // pred_fallthru
        _
    $region32: #{_lambda_.2} parent=5 // pred_fallthru
      _
    %p285 = scmp.le.s32.totalorder 1, %s13
    %p286 = scmp.lt.s32.totalorder %s13, 5
    %p287 = pnand %p285, %p286
    %p288 = pneg %p287
    // Predicated region
    $region45: #{_lambda_.2} parent=5 // pred_check
      _
    $region46: #{_lambda_.2} parent=5 // pred_check_branch
      %290 = sbr.rel (%p287) target = $region48
    $region47: #{_lambda_.2} parent=5 // pred_region
      %s291 = ssub.s32 %s13, 1
      %p292 = scmp.lt.s32.totalorder %s22, 1
      %s293 = scalar_select %p292, %s22, 1
      %p294 = scmp.lt.s32.totalorder %s23, 1
      %s295 = scalar_select %p294, %s23, 1
      %s296 = smul.addr %s293, 2
      %s297 = sadd.s32 %s295, %s296
      %s298 = smul.addr %s297, 8
      %s299 = scalar_lea.vmem %s0, %s298
      %p300 = pneg %p53
      %p301 = pneg %p50
      %p302 = scmp.lt.s32.totalorder %s22, 1
      %s303 = scalar_select %p302, %s22, 1
      %p304 = scmp.lt.s32.totalorder %s23, 1
      %s305 = scalar_select %p304, %s23, 1
      %s306 = smul.addr %s303, 2
      %s307 = sadd.s32 %s305, %s306
      %s308 = smul.addr %s307, 8
      %s309 = scalar_lea.vmem %s1, %s308
      %p310 = pneg %p81
      %p311 = pneg %p78
      %p312 = scmp.lt.s32.totalorder %s22, 1
      %s313 = scalar_select %p312, %s22, 1
      %p314 = scmp.lt.s32.totalorder %s23, 1
      %s315 = scalar_select %p314, %s23, 1
      %s316 = smul.addr %s313, 2
      %s317 = sadd.s32 %s315, %s316
      %s318 = smul.addr %s317, 8
      %s319 = scalar_lea.vmem %s2, %s318
      %p320 = pneg %p109
      %p321 = pneg %p106
      %p322 = pneg %p130
      %p323 = pneg %p127
      %p324 = pneg %p151
      %p325 = pneg %p148
      %p326 = pneg %p172
      %p327 = pneg %p169
      %p328 = pneg %p193
      %p329 = pneg %p190
      %p330 = pneg %p221
      %p331 = pneg %p218
      %p332 = scmp.lt.s32.totalorder %s22, 1
      %s333 = scalar_select %p332, %s22, 1
      %p334 = scmp.lt.s32.totalorder %s23, 1
      %s335 = scalar_select %p334, %s23, 1
      %s336 = smul.addr %s335, 2
      %s337 = smul.addr %s333, 4
      %s338 = sadd.s32 %s336, %s337
      %s339 = smul.addr %s338, 8
      %s340 = scalar_lea.vmem %s7, %s339
      %p341 = scmp.lt.s32.totalorder %s22, 1
      %s342 = scalar_select %p341, %s22, 1
      %p343 = scmp.lt.s32.totalorder %s23, 1
      %s344 = scalar_select %p343, %s23, 1
      %s345 = smul.addr %s342, 2
      %s346 = sadd.s32 %s344, %s345
      %s347 = smul.addr %s346, 8
      %s348 = scalar_lea.vmem %s0, %s347
      %p349 = scmp.lt.s32.totalorder %s22, 1
      %s350 = scalar_select %p349, %s22, 1
      %p351 = scmp.lt.s32.totalorder %s23, 1
      %s352 = scalar_select %p351, %s23, 1
      %s353 = smul.addr %s350, 2
      %s354 = sadd.s32 %s352, %s353
      %s355 = smul.addr %s354, 8
      %s356 = scalar_lea.vmem %s1, %s355
      %p357 = scmp.lt.s32.totalorder %s22, 1
      %s358 = scalar_select %p357, %s22, 1
      %p359 = scmp.lt.s32.totalorder %s23, 1
      %s360 = scalar_select %p359, %s23, 1
      %s361 = smul.addr %s358, 2
      %s362 = sadd.s32 %s360, %s361
      %s363 = smul.addr %s362, 8
      %s364 = scalar_lea.vmem %s2, %s363
      %p365 = scmp.lt.s32.totalorder %s22, 1
      %s366 = scalar_select %p365, %s22, 1
      %p367 = scmp.lt.s32.totalorder %s23, 1
      %s368 = scalar_select %p367, %s23, 1
      %s369 = smul.addr %s368, 2
      %s370 = smul.addr %s366, 4
      %s371 = sadd.s32 %s369, %s370
      %s372 = smul.addr %s371, 8
      %s373 = scalar_lea.vmem %s7, %s372
      %v374 = vld [vmem:[%s356] sm:$0xff]
      %vm375 = vcmp.ge.f32.partialorder %v374, 0.0
      %v376 = vmul.f32 %v374, 0.1
      %v377 = vsel %vm375, %v374, %v376
      %378 = vst [vmem:[#allocation2] sm:$0xff] %v377
      %v379 = vld [vmem:[%s348] sm:$0xff]
      %vm380 = vcmp.ge.f32.partialorder %v379, 0.0
      %v381 = vmul.f32 %v379, 0.1
      %v382 = vsel %vm380, %v379, %v381
      %383 = vst [vmem:[#allocation2 + $0x8] sm:$0xff] %v382
      %v384 = vld [vmem:[%s364] sm:$0xff]
      %vm385 = vcmp.ge.f32.partialorder %v384, 0.0
      %v386 = vmul.f32 %v384, 0.1
      %v387 = vsel %vm385, %v384, %v386
      %388 = vst [vmem:[#allocation2 + $0x10] sm:$0xff] %v387
      %v389 = vld [vmem:[#allocation2 + $0x8] sm:$0xff]
      %v390 = vld [vmem:[#allocation2 + $0x7] sm:$0xff]
      %v391 = vld [vmem:[#allocation2 + $0x9] sm:$0xff]
      %v392 = vld [vmem:[%s3] sm:$0xff]
      %v393 = vld [vmem:[%s3 + $0x8] sm:$0xff]
      %v394 = vld [vmem:[%s3 + $0x10] sm:$0xff]
      %v395 = vld [vmem:[%s3 + $0x18] sm:$0xff]
      %v396 = vld [vmem:[%s3 + $0x20] sm:$0xff]
      %v397 = vld [vmem:[%s3 + $0x28] sm:$0xff]
      %v398 = vld [vmem:[%s3 + $0x30] sm:$0xff]
      %v399 = vld [vmem:[%s3 + $0x38] sm:$0xff]
      %v400 = vld [vmem:[%s3 + $0x40] sm:$0xff]
      %v401 = vld [vmem:[%s3 + $0x48] sm:$0xff]
      %v402 = vld [vmem:[%s3 + $0x50] sm:$0xff]
      %v403 = vld [vmem:[%s3 + $0x58] sm:$0xff]
      %v404 = vld [vmem:[%s3 + $0x60] sm:$0xff]
      %v405 = vld [vmem:[%s3 + $0x68] sm:$0xff]
      %v406 = vld [vmem:[%s3 + $0x70] sm:$0xff]
      %v407 = vld [vmem:[%s3 + $0x78] sm:$0xff]
      %v408 = vld [vmem:[%s3 + $0x80] sm:$0xff]
      %v409 = vld [vmem:[%s3 + $0x88] sm:$0xff]
      %v410 = vld [vmem:[%s3 + $0x90] sm:$0xff]
      %v411 = vld [vmem:[%s3 + $0x98] sm:$0xff]
      %v412 = vld [vmem:[%s3 + $0xa0] sm:$0xff]
      %v413 = vld [vmem:[%s3 + $0xa8] sm:$0xff]
      %v414 = vld [vmem:[%s3 + $0xb0] sm:$0xff]
      %v415 = vld [vmem:[%s3 + $0xb8] sm:$0xff]
      %v416 = vld [vmem:[%s3 + $0xc0] sm:$0xff]
      %v417 = vld [vmem:[%s3 + $0xc8] sm:$0xff]
      %v418 = vld [vmem:[%s3 + $0xd0] sm:$0xff]
      %v419 = vld [vmem:[%s3 + $0xd8] sm:$0xff]
      %v420 = vld [vmem:[%s3 + $0xe0] sm:$0xff]
      %v421 = vld [vmem:[%s3 + $0xe8] sm:$0xff]
      %v422 = vld [vmem:[%s3 + $0xf0] sm:$0xff]
      %v423 = vld [vmem:[%s3 + $0xf8] sm:$0xff]
      %v424 = vld [vmem:[%s6] sm:$0x3]
      %v426 = vperm.slane %v424, 0
      %v427 = vperm.slane %v424, 1
      %430 = vmatpush.msra.mxu0 %v422
      %431 = vmatpush.msra.mxu0 %v420
      %432 = vmatpush.msra.mxu0 %v418
      %433 = vmatpush.msra.mxu0 %v416
      %434 = vmatpush.msra.mxu0 %v414
      %435 = vmatpush.msra.mxu0 %v412
      %436 = vmatpush.msra.mxu0 %v410
      %437 = vmatpush.msra.mxu0 %v408
      %438 = vmatpush.msra.mxu0 %v406
      %439 = vmatpush.msra.mxu0 %v404
      %440 = vmatpush.msra.mxu0 %v402
      %441 = vmatpush.msra.mxu0 %v400
      %442 = vmatpush.msra.mxu0 %v398
      %443 = vmatpush.msra.mxu0 %v396
      %444 = vmatpush.msra.mxu0 %v394
      %445 = vmatpush.msra.mxu0 %v392
      %446 = vmatmul.f32.gmra.mxu0 %v389
      %v447 = vpop.f32.mrf.mxu0
      %v448 = vadd.f32 %v426, %v447
      %449 = vdwg.mxu0
      %450 = vmatpush.msra.mxu0 %v423
      %451 = vmatpush.msra.mxu0 %v421
      %452 = vmatpush.msra.mxu0 %v419
      %453 = vmatpush.msra.mxu0 %v417
      %454 = vmatpush.msra.mxu0 %v415
      %455 = vmatpush.msra.mxu0 %v413
      %456 = vmatpush.msra.mxu0 %v411
      %457 = vmatpush.msra.mxu0 %v409
      %458 = vmatpush.msra.mxu0 %v407
      %459 = vmatpush.msra.mxu0 %v405
      %460 = vmatpush.msra.mxu0 %v403
      %461 = vmatpush.msra.mxu0 %v401
      %462 = vmatpush.msra.mxu0 %v399
      %463 = vmatpush.msra.mxu0 %v397
      %464 = vmatpush.msra.mxu0 %v395
      %465 = vmatpush.msra.mxu0 %v393
      %466 = vmatmul.f32.gmra.mxu0 %v389
      %v467 = vpop.f32.mrf.mxu0
      %v468 = vadd.f32 %v427, %v467
      %469 = vdwg.mxu0
      %v470 = vld [vmem:[%s4] sm:$0xff]
      %v471 = vld [vmem:[%s4 + $0x8] sm:$0xff]
      %v472 = vld [vmem:[%s4 + $0x10] sm:$0xff]
      %v473 = vld [vmem:[%s4 + $0x18] sm:$0xff]
      %v474 = vld [vmem:[%s4 + $0x20] sm:$0xff]
      %v475 = vld [vmem:[%s4 + $0x28] sm:$0xff]
      %v476 = vld [vmem:[%s4 + $0x30] sm:$0xff]
      %v477 = vld [vmem:[%s4 + $0x38] sm:$0xff]
      %v478 = vld [vmem:[%s4 + $0x40] sm:$0xff]
      %v479 = vld [vmem:[%s4 + $0x48] sm:$0xff]
      %v480 = vld [vmem:[%s4 + $0x50] sm:$0xff]
      %v481 = vld [vmem:[%s4 + $0x58] sm:$0xff]
      %v482 = vld [vmem:[%s4 + $0x60] sm:$0xff]
      %v483 = vld [vmem:[%s4 + $0x68] sm:$0xff]
      %v484 = vld [vmem:[%s4 + $0x70] sm:$0xff]
      %v485 = vld [vmem:[%s4 + $0x78] sm:$0xff]
      %486 = vmatpush.msra.mxu0 %v485
      %487 = vmatpush.msra.mxu0 %v484
      %488 = vmatpush.msra.mxu0 %v483
      %489 = vmatpush.msra.mxu0 %v482
      %490 = vmatpush.msra.mxu0 %v481
      %491 = vmatpush.msra.mxu0 %v480
      %492 = vmatpush.msra.mxu0 %v479
      %493 = vmatpush.msra.mxu0 %v478
      %494 = vmatpush.msra.mxu0 %v477
      %495 = vmatpush.msra.mxu0 %v476
      %496 = vmatpush.msra.mxu0 %v475
      %497 = vmatpush.msra.mxu0 %v474
      %498 = vmatpush.msra.mxu0 %v473
      %499 = vmatpush.msra.mxu0 %v472
      %500 = vmatpush.msra.mxu0 %v471
      %501 = vmatpush.msra.mxu0 %v470
      %502 = vmatmul.f32.gmra.mxu0 %v390
      %v503 = vpop.f32.mrf.mxu0
      %v504 = vadd.f32 0.0, %v503
      %505 = vdwg.mxu0
      %v506 = vadd.f32 %v448, %v504
      %v507 = vld [vmem:[%s5] sm:$0xff]
      %v508 = vld [vmem:[%s5 + $0x8] sm:$0xff]
      %v509 = vld [vmem:[%s5 + $0x10] sm:$0xff]
      %v510 = vld [vmem:[%s5 + $0x18] sm:$0xff]
      %v511 = vld [vmem:[%s5 + $0x20] sm:$0xff]
      %v512 = vld [vmem:[%s5 + $0x28] sm:$0xff]
      %v513 = vld [vmem:[%s5 + $0x30] sm:$0xff]
      %v514 = vld [vmem:[%s5 + $0x38] sm:$0xff]
      %v515 = vld [vmem:[%s5 + $0x40] sm:$0xff]
      %v516 = vld [vmem:[%s5 + $0x48] sm:$0xff]
      %v517 = vld [vmem:[%s5 + $0x50] sm:$0xff]
      %v518 = vld [vmem:[%s5 + $0x58] sm:$0xff]
      %v519 = vld [vmem:[%s5 + $0x60] sm:$0xff]
      %v520 = vld [vmem:[%s5 + $0x68] sm:$0xff]
      %v521 = vld [vmem:[%s5 + $0x70] sm:$0xff]
      %v522 = vld [vmem:[%s5 + $0x78] sm:$0xff]
      %523 = vmatpush.msra.mxu0 %v522
      %524 = vmatpush.msra.mxu0 %v521
      %525 = vmatpush.msra.mxu0 %v520
      %526 = vmatpush.msra.mxu0 %v519
      %527 = vmatpush.msra.mxu0 %v518
      %528 = vmatpush.msra.mxu0 %v517
      %529 = vmatpush.msra.mxu0 %v516
      %530 = vmatpush.msra.mxu0 %v515
      %531 = vmatpush.msra.mxu0 %v514
      %532 = vmatpush.msra.mxu0 %v513
      %533 = vmatpush.msra.mxu0 %v512
      %534 = vmatpush.msra.mxu0 %v511
      %535 = vmatpush.msra.mxu0 %v510
      %536 = vmatpush.msra.mxu0 %v509
      %537 = vmatpush.msra.mxu0 %v508
      %538 = vmatpush.msra.mxu0 %v507
      %539 = vmatmul.f32.gmra.mxu0 %v391
      %v540 = vpop.f32.mrf.mxu0
      %v541 = vadd.f32 0.0, %v540
      %542 = vdwg.mxu0
      %v543 = vadd.f32 %v468, %v541
      %544 = vst [vmem:[%s373] sm:$0xff] %v506
      %545 = vst [vmem:[%s373 + $0x8] sm:$0xff] %v543
      %p546 = scmp.lt.s32.totalorder %s22, 1
      %s547 = scalar_select %p546, %s22, 1
      %p548 = scmp.lt.s32.totalorder %s23, 1
      %s549 = scalar_select %p548, %s23, 1
      %s550 = smul.addr %s549, 2
      %s551 = smul.addr %s547, 4
      %s552 = sadd.s32 %s550, %s551
      %s553 = smul.addr %s552, 8
      %s554 = scalar_lea.vmem %s7, %s553
      // Predicated region
      $region49: #{_lambda_.2} parent=47 // pred_check
        %p555 = pneg %p218
      $region50: #{_lambda_.2} parent=47 // pred_check_branch
        %557 = sbr.rel (%p555) target = $region52
      $region51: #{_lambda_.2} parent=47 // pred_region
        _
      $region52: #{_lambda_.2} parent=47 // pred_fallthru
        _
    $region48: #{_lambda_.2} parent=5 // pred_fallthru
      _
    %p558 = scmp.le.s32.totalorder 2, %s13
    // Predicated region
    $region53: #{_lambda_.2} parent=5 // pred_check
      %p559 = pneg %p558
    $region54: #{_lambda_.2} parent=5 // pred_check_branch
      %561 = sbr.rel (%p559) target = $region56
    $region55: #{_lambda_.2} parent=5 // pred_region
      %s562 = ssub.s32 %s13, 2
      // Predicated region
      $region57: #{_lambda_.2} parent=55 // pred_check
        %p563 = pneg %p224
      $region58: #{_lambda_.2} parent=55 // pred_check_branch
        %565 = sbr.rel (%p563) target = $region60
      $region59: #{_lambda_.2} parent=55 // pred_region
        %p566 = scmp.lt.s32.totalorder %s24, 1
        %s567 = scalar_select %p566, %s24, 1
        %p568 = scmp.lt.s32.totalorder %s25, 1
        %s569 = scalar_select %p568, %s25, 1
        %s570 = smul.addr %s569, 2
        %s571 = smul.addr %s567, 4
        %s572 = sadd.s32 %s570, %s571
        %s573 = smul.addr %s572, 8
        %s574 = scalar_lea.vmem %s7, %s573
      $region60: #{_lambda_.2} parent=55 // pred_fallthru
        _
    $region56: #{_lambda_.2} parent=5 // pred_fallthru
      _
  $region6: #{_lambda_.2} parent=0 // loop_footer
    %s17 = sadd.s32 1, %s13
  $region7: #{_lambda_.2} parent=0 // loop_footer_branch
    %12 = sbr.rel target = $region3
  $region8: #{_lambda_.2} parent=0 // loop_exit
    _

// kernel: _lambda_.3
$region0: #{_lambda_.3}
  #allocation0 [shape = 'u32[]', space=smem, size = 0x4, offset = 0x4, fixed_abs, tag = 'smem constant byte address 0x4 - core index']
  #allocation1 [shape = 'u32[72,128]{1,0:T(1,128)}', space=vmem, size = 0x9000, scoped, tag = 'internal scratch']
  #allocation2 [shape = 'f32[48,128]{1,0:T(8,128)}', space=vmem, size = 0x6000, scoped, tag = 'scratch operand']
  %s0 = inlined_call_operand.vmem [shape: f32[2,32,128], index: 0, kind: input, shape index: {}]
  %s1 = inlined_call_operand.vmem [shape: f32[2,2,8,128], index: 1, kind: input, shape index: {}]
  %s2 = inlined_call_operand.vmem [shape: f32[2,2,8,128], index: 2, kind: input, shape index: {}]
  %s3 = inlined_call_operand.vmem [shape: f32[4,3,128,128], index: 3, kind: input, shape index: {}]
  %s4 = inlined_call_operand.vmem [shape: f32[4,1,128], index: 4, kind: input, shape index: {}]
  %s5 = inlined_call_operand.vmem [shape: f32[2,5,128,128], index: 5, kind: input, shape index: {}]
  %s6 = inlined_call_operand.vmem [shape: f32[2,1,128], index: 6, kind: input, shape index: {}]
  %s7 = inlined_call_operand.vmem [shape: f32[2,32,4], index: 7, kind: output, shape index: {}]
  %s8 = sld [smem:[#allocation0]]
  $region61: #{_lambda_.3} parent=0
    _
  %s10 = ssub.s32 1, %s8
  %s11 = scalar_select 0, %s10, %s8
  loop: start=0, step=1, limit=6
  $region2: #{_lambda_.3} parent=0 // loop_pre_header
    _
  $region3: #{_lambda_.3} parent=0 // loop_header
    %s13 = sphi 0, %s17
    %p14 = scmp.ge.s32.totalorder %s13, 6
    %s20 = sphi 0, %s32
    %s21 = sphi 0, %s28
    %s22 = sphi 0, %s20
    %s23 = sphi 0, %s21
    %s24 = sphi 0, %s22
    %s25 = sphi 0, %s23
    %s37 = sphi 0, %s39
    %s40 = sphi 0, %s37
    %s41 = sphi 0, %s40
    %s57 = sphi 0, %s41
    %s65 = sphi 0, %s67
    %s68 = sphi 0, %s65
    %s69 = sphi 0, %s68
    %s85 = sphi 0, %s69
    %s93 = sphi 0, %s95
    %s96 = sphi 0, %s93
    %s97 = sphi 0, %s96
    %s113 = sphi 0, %s97
    %s117 = sphi 0, %s117
    %s119 = sphi 0, %s117
    %s120 = sphi 0, %s119
    %s134 = sphi 0, %s120
    %s138 = sphi 0, %s138
    %s140 = sphi 0, %s138
    %s141 = sphi 0, %s140
    %s155 = sphi 0, %s141
    %s159 = sphi 0, %s159
    %s161 = sphi 0, %s159
    %s162 = sphi 0, %s161
    %s176 = sphi 0, %s162
    %s180 = sphi 0, %s180
    %s182 = sphi 0, %s180
    %s183 = sphi 0, %s182
    %s197 = sphi 0, %s183
    %s205 = sphi 0, %s207
    %s208 = sphi 0, %s205
    %s209 = sphi 0, %s208
    %s225 = sphi 0, %s209
  $region4: #{_lambda_.3} parent=0 // loop_header_branch
    %16 = sbr.rel (%p14) target = $region8
  $region5: #{_lambda_.3} parent=0 // loop_body
    %s18 = ssub.s32 %s13, 1
    %s19 = ssub.s32 %s13, 2
    %s26 = sadd.s32 1, %s21
    %p27 = scmp.ge.s32.totalorder %s26, 2
    %s28 = scalar_select %p27, 0, %s26
    %s29 = sadd.s32 1, %s20
    %s30 = scalar_select %p27, %s29, %s20
    %p31 = scmp.ge.s32.totalorder %s30, 2
    %s32 = scalar_select %p31, 0, %s30
    %s33 = ssub.s32 %s20, %s32
    %s34 = ssub.s32 %s21, %s28
    %s35 = sor.u32 %s33, %s34
    %p36 = scmp.eq.s32.totalorder %s35, 0
    %s38 = sadd.s32 %s37, 1
    %s39 = scalar_select %p36, %s37, %s38
    %p42 = pneg %p36
    %p43 = scmp.eq.s32.totalorder %s13, 3
    %p44 = por %p42, %p43
    %p45 = scmp.ne.s32.totalorder %s37, %s40
    %p46 = scmp.eq.s32.totalorder %s13, 0
    %p47 = por %p45, %p46
    %p48 = scmp.ne.s32.totalorder %s37, %s40
    %p49 = scmp.eq.s32.totalorder %s18, 3
    %p50 = por %p48, %p49
    %p51 = scmp.ne.s32.totalorder %s40, %s41
    %p52 = scmp.eq.s32.totalorder %s18, 0
    %p53 = por %p51, %p52
    %p54 = scmp.ne.s32.totalorder %s40, %s41
    %p55 = scmp.eq.s32.totalorder %s19, 3
    %p56 = por %p54, %p55
    %p58 = scmp.ne.s32.totalorder %s41, %s57
    %p59 = scmp.eq.s32.totalorder %s19, 0
    %p60 = por %p58, %p59
    %s61 = ssub.s32 %s20, %s32
    %s62 = ssub.s32 %s21, %s28
    %s63 = sor.u32 %s61, %s62
    %p64 = scmp.eq.s32.totalorder %s63, 0
    %s66 = sadd.s32 %s65, 1
    %s67 = scalar_select %p64, %s65, %s66
    %p70 = pneg %p64
    %p71 = scmp.eq.s32.totalorder %s13, 3
    %p72 = por %p70, %p71
    %p73 = scmp.ne.s32.totalorder %s65, %s68
    %p74 = scmp.eq.s32.totalorder %s13, 0
    %p75 = por %p73, %p74
    %p76 = scmp.ne.s32.totalorder %s65, %s68
    %p77 = scmp.eq.s32.totalorder %s18, 3
    %p78 = por %p76, %p77
    %p79 = scmp.ne.s32.totalorder %s68, %s69
    %p80 = scmp.eq.s32.totalorder %s18, 0
    %p81 = por %p79, %p80
    %p82 = scmp.ne.s32.totalorder %s68, %s69
    %p83 = scmp.eq.s32.totalorder %s19, 3
    %p84 = por %p82, %p83
    %p86 = scmp.ne.s32.totalorder %s69, %s85
    %p87 = scmp.eq.s32.totalorder %s19, 0
    %p88 = por %p86, %p87
    %s89 = ssub.s32 %s20, %s32
    %s90 = ssub.s32 %s21, %s28
    %s91 = sor.u32 %s89, %s90
    %p92 = scmp.eq.s32.totalorder %s91, 0
    %s94 = sadd.s32 %s93, 1
    %s95 = scalar_select %p92, %s93, %s94
    %p98 = pneg %p92
    %p99 = scmp.eq.s32.totalorder %s13, 3
    %p100 = por %p98, %p99
    %p101 = scmp.ne.s32.totalorder %s93, %s96
    %p102 = scmp.eq.s32.totalorder %s13, 0
    %p103 = por %p101, %p102
    %p104 = scmp.ne.s32.totalorder %s93, %s96
    %p105 = scmp.eq.s32.totalorder %s18, 3
    %p106 = por %p104, %p105
    %p107 = scmp.ne.s32.totalorder %s96, %s97
    %p108 = scmp.eq.s32.totalorder %s18, 0
    %p109 = por %p107, %p108
    %p110 = scmp.ne.s32.totalorder %s96, %s97
    %p111 = scmp.eq.s32.totalorder %s19, 3
    %p112 = por %p110, %p111
    %p114 = scmp.ne.s32.totalorder %s97, %s113
    %p115 = scmp.eq.s32.totalorder %s19, 0
    %p116 = por %p114, %p115
    %s118 = sadd.s32 %s117, 1
    %p121 = scmp.eq.s32.totalorder %s13, 3
    %p122 = scmp.ne.s32.totalorder %s117, %s119
    %p123 = scmp.eq.s32.totalorder %s13, 0
    %p124 = por %p122, %p123
    %p125 = scmp.ne.s32.totalorder %s117, %s119
    %p126 = scmp.eq.s32.totalorder %s18, 3
    %p127 = por %p125, %p126
    %p128 = scmp.ne.s32.totalorder %s119, %s120
    %p129 = scmp.eq.s32.totalorder %s18, 0
    %p130 = por %p128, %p129
    %p131 = scmp.ne.s32.totalorder %s119, %s120
    %p132 = scmp.eq.s32.totalorder %s19, 3
    %p133 = por %p131, %p132
    %p135 = scmp.ne.s32.totalorder %s120, %s134
    %p136 = scmp.eq.s32.totalorder %s19, 0
    %p137 = por %p135, %p136
    %s139 = sadd.s32 %s138, 1
    %p142 = scmp.eq.s32.totalorder %s13, 3
    %p143 = scmp.ne.s32.totalorder %s138, %s140
    %p144 = scmp.eq.s32.totalorder %s13, 0
    %p145 = por %p143, %p144
    %p146 = scmp.ne.s32.totalorder %s138, %s140
    %p147 = scmp.eq.s32.totalorder %s18, 3
    %p148 = por %p146, %p147
    %p149 = scmp.ne.s32.totalorder %s140, %s141
    %p150 = scmp.eq.s32.totalorder %s18, 0
    %p151 = por %p149, %p150
    %p152 = scmp.ne.s32.totalorder %s140, %s141
    %p153 = scmp.eq.s32.totalorder %s19, 3
    %p154 = por %p152, %p153
    %p156 = scmp.ne.s32.totalorder %s141, %s155
    %p157 = scmp.eq.s32.totalorder %s19, 0
    %p158 = por %p156, %p157
    %s160 = sadd.s32 %s159, 1
    %p163 = scmp.eq.s32.totalorder %s13, 3
    %p164 = scmp.ne.s32.totalorder %s159, %s161
    %p165 = scmp.eq.s32.totalorder %s13, 0
    %p166 = por %p164, %p165
    %p167 = scmp.ne.s32.totalorder %s159, %s161
    %p168 = scmp.eq.s32.totalorder %s18, 3
    %p169 = por %p167, %p168
    %p170 = scmp.ne.s32.totalorder %s161, %s162
    %p171 = scmp.eq.s32.totalorder %s18, 0
    %p172 = por %p170, %p171
    %p173 = scmp.ne.s32.totalorder %s161, %s162
    %p174 = scmp.eq.s32.totalorder %s19, 3
    %p175 = por %p173, %p174
    %p177 = scmp.ne.s32.totalorder %s162, %s176
    %p178 = scmp.eq.s32.totalorder %s19, 0
    %p179 = por %p177, %p178
    %s181 = sadd.s32 %s180, 1
    %p184 = scmp.eq.s32.totalorder %s13, 3
    %p185 = scmp.ne.s32.totalorder %s180, %s182
    %p186 = scmp.eq.s32.totalorder %s13, 0
    %p187 = por %p185, %p186
    %p188 = scmp.ne.s32.totalorder %s180, %s182
    %p189 = scmp.eq.s32.totalorder %s18, 3
    %p190 = por %p188, %p189
    %p191 = scmp.ne.s32.totalorder %s182, %s183
    %p192 = scmp.eq.s32.totalorder %s18, 0
    %p193 = por %p191, %p192
    %p194 = scmp.ne.s32.totalorder %s182, %s183
    %p195 = scmp.eq.s32.totalorder %s19, 3
    %p196 = por %p194, %p195
    %p198 = scmp.ne.s32.totalorder %s183, %s197
    %p199 = scmp.eq.s32.totalorder %s19, 0
    %p200 = por %p198, %p199
    %s201 = ssub.s32 %s20, %s32
    %s202 = ssub.s32 %s21, %s28
    %s203 = sor.u32 %s201, %s202
    %p204 = scmp.eq.s32.totalorder %s203, 0
    %s206 = sadd.s32 %s205, 1
    %s207 = scalar_select %p204, %s205, %s206
    %p210 = pneg %p204
    %p211 = scmp.eq.s32.totalorder %s13, 3
    %p212 = por %p210, %p211
    %p213 = scmp.ne.s32.totalorder %s205, %s208
    %p214 = scmp.eq.s32.totalorder %s13, 0
    %p215 = por %p213, %p214
    %p216 = scmp.ne.s32.totalorder %s205, %s208
    %p217 = scmp.eq.s32.totalorder %s18, 3
    %p218 = por %p216, %p217
    %p219 = scmp.ne.s32.totalorder %s208, %s209
    %p220 = scmp.eq.s32.totalorder %s18, 0
    %p221 = por %p219, %p220
    %p222 = scmp.ne.s32.totalorder %s208, %s209
    %p223 = scmp.eq.s32.totalorder %s19, 3
    %p224 = por %p222, %p223
    %p226 = scmp.ne.s32.totalorder %s209, %s225
    %p227 = scmp.eq.s32.totalorder %s19, 0
    %p228 = por %p226, %p227
    %p229 = scmp.le.s32.totalorder 1, %s13
    %p230 = scmp.lt.s32.totalorder %s13, 5
    %p231 = pnand %p229, %p230
    %p232 = pneg %p231
    // Predicated region
    $region9: #{_lambda_.3} parent=5 // pred_check
      _
    $region10: #{_lambda_.3} parent=5 // pred_check_branch
      %234 = sbr.rel (%p231) target = $region12
    $region11: #{_lambda_.3} parent=5 // pred_region
      %s235 = ssub.s32 %s13, 1
      // Predicated region
      $region13: #{_lambda_.3} parent=11 // pred_check
        %p236 = pneg %p130
      $region14: #{_lambda_.3} parent=11 // pred_check_branch
        %238 = sbr.rel (%p236) target = $region16
      $region15: #{_lambda_.3} parent=11 // pred_region
        _
      $region16: #{_lambda_.3} parent=11 // pred_fallthru
        _
      // Predicated region
      $region17: #{_lambda_.3} parent=11 // pred_check
        %p239 = pneg %p151
      $region18: #{_lambda_.3} parent=11 // pred_check_branch
        %241 = sbr.rel (%p239) target = $region20
      $region19: #{_lambda_.3} parent=11 // pred_region
        _
      $region20: #{_lambda_.3} parent=11 // pred_fallthru
        _
      // Predicated region
      $region21: #{_lambda_.3} parent=11 // pred_check
        %p242 = pneg %p172
      $region22: #{_lambda_.3} parent=11 // pred_check_branch
        %244 = sbr.rel (%p242) target = $region24
      $region23: #{_lambda_.3} parent=11 // pred_region
        _
      $region24: #{_lambda_.3} parent=11 // pred_fallthru
        _
      // Predicated region
      $region25: #{_lambda_.3} parent=11 // pred_check
        %p245 = pneg %p193
      $region26: #{_lambda_.3} parent=11 // pred_check_branch
        %247 = sbr.rel (%p245) target = $region28
      $region27: #{_lambda_.3} parent=11 // pred_region
        _
      $region28: #{_lambda_.3} parent=11 // pred_fallthru
        _
    $region12: #{_lambda_.3} parent=5 // pred_fallthru
      _
    %p248 = scmp.lt.s32.totalorder %s13, 4
    // Predicated region
    $region29: #{_lambda_.3} parent=5 // pred_check
      %p249 = pneg %p248
    $region30: #{_lambda_.3} parent=5 // pred_check_branch
      %251 = sbr.rel (%p249) target = $region32
    $region31: #{_lambda_.3} parent=5 // pred_region
      // Predicated region
      $region33: #{_lambda_.3} parent=31 // pred_check
        %p252 = pneg %p47
      $region34: #{_lambda_.3} parent=31 // pred_check_branch
        %254 = sbr.rel (%p252) target = $region36
      $region35: #{_lambda_.3} parent=31 // pred_region
        %s255 = smul.u32 2, %s21
        %p256 = scmp.lt.s32.totalorder %s20, 1
        %s257 = scalar_select %p256, %s20, 1
        %p258 = scmp.lt.s32.totalorder %s255, 3
        %s259 = scalar_select %p258, %s255, 3
        %s260 = smul.addr %s257, 4
        %s261 = sadd.s32 %s259, %s260
        %s262 = smul.addr %s261, 8
        %s263 = scalar_lea.vmem %s0, %s262
        %s264 = smul.u32 2, %s21
      $region36: #{_lambda_.3} parent=31 // pred_fallthru
        _
      // Predicated region
      $region37: #{_lambda_.3} parent=31 // pred_check
        %p265 = pneg %p75
      $region38: #{_lambda_.3} parent=31 // pred_check_branch
        %267 = sbr.rel (%p265) target = $region40
      $region39: #{_lambda_.3} parent=31 // pred_region
        %p268 = scmp.lt.s32.totalorder %s20, 1
        %s269 = scalar_select %p268, %s20, 1
        %p270 = scmp.lt.s32.totalorder %s21, 1
        %s271 = scalar_select %p270, %s21, 1
        %s272 = smul.addr %s269, 2
        %s273 = sadd.s32 %s271, %s272
        %s274 = smul.addr %s273, 8
        %s275 = scalar_lea.vmem %s1, %s274
      $region40: #{_lambda_.3} parent=31 // pred_fallthru
        _
      // Predicated region
      $region41: #{_lambda_.3} parent=31 // pred_check
        %p276 = pneg %p103
      $region42: #{_lambda_.3} parent=31 // pred_check_branch
        %278 = sbr.rel (%p276) target = $region44
      $region43: #{_lambda_.3} parent=31 // pred_region
        %p279 = scmp.lt.s32.totalorder %s20, 1
        %s280 = scalar_select %p279, %s20, 1
        %p281 = scmp.lt.s32.totalorder %s21, 1
        %s282 = scalar_select %p281, %s21, 1
        %s283 = smul.addr %s280, 2
        %s284 = sadd.s32 %s282, %s283
        %s285 = smul.addr %s284, 8
        %s286 = scalar_lea.vmem %s2, %s285
      $region44: #{_lambda_.3} parent=31 // pred_fallthru
        _
    $region32: #{_lambda_.3} parent=5 // pred_fallthru
      _
    %p287 = scmp.le.s32.totalorder 1, %s13
    %p288 = scmp.lt.s32.totalorder %s13, 5
    %p289 = pnand %p287, %p288
    %p290 = pneg %p289
    // Predicated region
    $region45: #{_lambda_.3} parent=5 // pred_check
      _
    $region46: #{_lambda_.3} parent=5 // pred_check_branch
      %292 = sbr.rel (%p289) target = $region48
    $region47: #{_lambda_.3} parent=5 // pred_region
      %s293 = ssub.s32 %s13, 1
      %s294 = smul.u32 2, %s23
      %p295 = scmp.lt.s32.totalorder %s22, 1
      %s296 = scalar_select %p295, %s22, 1
      %p297 = scmp.lt.s32.totalorder %s294, 3
      %s298 = scalar_select %p297, %s294, 3
      %s299 = smul.addr %s296, 4
      %s300 = sadd.s32 %s298, %s299
      %s301 = smul.addr %s300, 8
      %s302 = scalar_lea.vmem %s0, %s301
      %p303 = pneg %p53
      %p304 = pneg %p50
      %p305 = scmp.lt.s32.totalorder %s22, 1
      %s306 = scalar_select %p305, %s22, 1
      %p307 = scmp.lt.s32.totalorder %s23, 1
      %s308 = scalar_select %p307, %s23, 1
      %s309 = smul.addr %s306, 2
      %s310 = sadd.s32 %s308, %s309
      %s311 = smul.addr %s310, 8
      %s312 = scalar_lea.vmem %s1, %s311
      %p313 = pneg %p81
      %p314 = pneg %p78
      %p315 = scmp.lt.s32.totalorder %s22, 1
      %s316 = scalar_select %p315, %s22, 1
      %p317 = scmp.lt.s32.totalorder %s23, 1
      %s318 = scalar_select %p317, %s23, 1
      %s319 = smul.addr %s316, 2
      %s320 = sadd.s32 %s318, %s319
      %s321 = smul.addr %s320, 8
      %s322 = scalar_lea.vmem %s2, %s321
      %p323 = pneg %p109
      %p324 = pneg %p106
      %p325 = pneg %p130
      %p326 = pneg %p127
      %p327 = pneg %p151
      %p328 = pneg %p148
      %p329 = pneg %p172
      %p330 = pneg %p169
      %p331 = pneg %p193
      %p332 = pneg %p190
      %p333 = pneg %p221
      %p334 = pneg %p218
      %s335 = smul.u32 2, %s23
      %p336 = scmp.lt.s32.totalorder %s22, 1
      %s337 = scalar_select %p336, %s22, 1
      %p338 = scmp.lt.s32.totalorder %s335, 3
      %s339 = scalar_select %p338, %s335, 3
      %s340 = smul.addr %s337, 4
      %s341 = sadd.s32 %s339, %s340
      %s342 = smul.addr %s341, 8
      %s343 = scalar_lea.vmem %s7, %s342
      %s344 = smul.u32 2, %s23
      %p345 = scmp.lt.s32.totalorder %s22, 1
      %s346 = scalar_select %p345, %s22, 1
      %p347 = scmp.lt.s32.totalorder %s344, 3
      %s348 = scalar_select %p347, %s344, 3
      %s349 = smul.addr %s346, 4
      %s350 = sadd.s32 %s348, %s349
      %s351 = smul.addr %s350, 8
      %s352 = scalar_lea.vmem %s0, %s351
      %s353 = smul.u32 2, %s23
      %p354 = scmp.lt.s32.totalorder %s22, 1
      %s355 = scalar_select %p354, %s22, 1
      %p356 = scmp.lt.s32.totalorder %s23, 1
      %s357 = scalar_select %p356, %s23, 1
      %s358 = smul.addr %s355, 2
      %s359 = sadd.s32 %s357, %s358
      %s360 = smul.addr %s359, 8
      %s361 = scalar_lea.vmem %s1, %s360
      %p362 = scmp.lt.s32.totalorder %s22, 1
      %s363 = scalar_select %p362, %s22, 1
      %p364 = scmp.lt.s32.totalorder %s23, 1
      %s365 = scalar_select %p364, %s23, 1
      %s366 = smul.addr %s363, 2
      %s367 = sadd.s32 %s365, %s366
      %s368 = smul.addr %s367, 8
      %s369 = scalar_lea.vmem %s2, %s368
      %s370 = smul.u32 2, %s23
      %p371 = scmp.lt.s32.totalorder %s22, 1
      %s372 = scalar_select %p371, %s22, 1
      %p373 = scmp.lt.s32.totalorder %s370, 3
      %s374 = scalar_select %p373, %s370, 3
      %s375 = smul.addr %s372, 4
      %s376 = sadd.s32 %s374, %s375
      %s377 = smul.addr %s376, 8
      %s378 = scalar_lea.vmem %s7, %s377
      %s379 = smul.u32 2, %s23
      %380 = vst [vmem:[#allocation2] sm:$0xff] 0.0
      %381 = vst [vmem:[#allocation2 + $0x28] sm:$0xff] 0.0
      %v382 = vld [vmem:[%s361] sm:$0xff]
      %383 = vst [vmem:[#allocation2 + $0x8] sm:$0xff] %v382
      %v384 = vld [vmem:[%s352] sm:$0xff]
      %v385 = vld [vmem:[%s352 + $0x8] sm:$0xff]
      %386 = vst [vmem:[#allocation2 + $0x10] sm:$0xff] %v384
      %387 = vst [vmem:[#allocation2 + $0x18] sm:$0xff] %v385
      %v388 = vld [vmem:[%s369] sm:$0xff]
      %389 = vst [vmem:[#allocation2 + $0x20] sm:$0xff] %v388
      %v390 = vld [vmem:[#allocation2 + $0x8] sm:$0xff]
      %v391 = vld [vmem:[#allocation2 + $0x10] sm:$0xff]
      %v392 = vld [vmem:[#allocation2 + $0x18] sm:$0xff]
      %v393 = vld [vmem:[#allocation2 + $0x20] sm:$0xff]
      %v394 = vlaneseq
      %v395 = vshrl.u32 %v394, 7
      %v396 = vadd.s32 %v395, 8
      %v397 = vadd.s32 %v395, 16
      %v398 = vadd.s32 %v395, 24
      %s399 = smul.u32 %s23, 16
      %s400 = ssub.s32 %s399, 8
      %v401 = vstv %s400
      %v402 = vadd.s32 %v395, %v401
      %v403 = vadd.s32 %v396, %v401
      %v404 = vadd.s32 %v397, %v401
      %v405 = vadd.s32 %v398, %v401
      %vm406 = vcmp.ge.s32.totalorder %v402, 0
      %vm407 = vcmp.ge.s32.totalorder %v403, 0
      %vm408 = vcmp.ge.s32.totalorder %v404, 0
      %vm409 = vcmp.ge.s32.totalorder %v405, 0
      %vm410 = vcmp.lt.s32.totalorder %v402, 32
      %vm411 = vcmp.lt.s32.totalorder %v403, 32
      %vm412 = vcmp.lt.s32.totalorder %v404, 32
      %vm413 = vcmp.lt.s32.totalorder %v405, 32
      %vm414 = vmand %vm406, %vm410
      %vm415 = vmand %vm407, %vm411
      %vm416 = vmand %vm408, %vm412
      %vm417 = vmand %vm409, %vm413
      %v418 = vsel %vm414, 1, 0
      %v419 = vsel %vm415, 1, 0
      %v420 = vsel %vm416, 1, 0
      %v421 = vsel %vm417, 1, 0
      %v422 = vcvt.s32.f32 %v418
      %v423 = vcvt.s32.f32 %v419
      %v424 = vcvt.s32.f32 %v420
      %v425 = vcvt.s32.f32 %v421
      %vm426 = vcmp.ge.f32.partialorder %v390, 0.0
      %vm427 = vcmp.ge.f32.partialorder %v391, 0.0
      %vm428 = vcmp.ge.f32.partialorder %v392, 0.0
      %vm429 = vcmp.ge.f32.partialorder %v393, 0.0
      %v430 = vmul.f32 %v390, 0.1
      %v431 = vmul.f32 %v391, 0.1
      %v432 = vmul.f32 %v392, 0.1
      %v433 = vmul.f32 %v393, 0.1
      %v434 = vsel %vm426, %v390, %v430
      %v435 = vsel %vm427, %v391, %v431
      %v436 = vsel %vm428, %v392, %v432
      %v437 = vsel %vm429, %v393, %v433
      %v438 = vmul.f32 %v434, %v422
      %v439 = vmul.f32 %v435, %v423
      %v440 = vmul.f32 %v436, %v424
      %v441 = vmul.f32 %v437, %v425
      %442 = vst [vmem:[#allocation2 + $0x8] sm:$0xff] %v438
      %443 = vst [vmem:[#allocation2 + $0x10] sm:$0xff] %v439
      %444 = vst [vmem:[#allocation2 + $0x18] sm:$0xff] %v440
      %445 = vst [vmem:[#allocation2 + $0x20] sm:$0xff] %v441
      %v446 = vld [vmem:[#allocation2 + $0x7] sm:$0xff]
      %v447 = vld [vmem:[#allocation2 + $0xf] sm:$0xff]
      %v448 = vld [vmem:[#allocation2 + $0x17] sm:$0xff]
      %v449 = vld [vmem:[#allocation2 + $0x1f] sm:$0xff]
      %v450 = vld [vmem:[%s3] sm:$0xff]
      %v451 = vld [vmem:[%s3 + $0x8] sm:$0xff]
      %v452 = vld [vmem:[%s3 + $0x10] sm:$0xff]
      %v453 = vld [vmem:[%s3 + $0x18] sm:$0xff]
      %v454 = vld [vmem:[%s3 + $0x20] sm:$0xff]
      %v455 = vld [vmem:[%s3 + $0x28] sm:$0xff]
      %v456 = vld [vmem:[%s3 + $0x30] sm:$0xff]
      %v457 = vld [vmem:[%s3 + $0x38] sm:$0xff]
      %v458 = vld [vmem:[%s3 + $0x40] sm:$0xff]
      %v459 = vld [vmem:[%s3 + $0x48] sm:$0xff]
      %v460 = vld [vmem:[%s3 + $0x50] sm:$0xff]
      %v461 = vld [vmem:[%s3 + $0x58] sm:$0xff]
      %v462 = vld [vmem:[%s3 + $0x60] sm:$0xff]
      %v463 = vld [vmem:[%s3 + $0x68] sm:$0xff]
      %v464 = vld [vmem:[%s3 + $0x70] sm:$0xff]
      %v465 = vld [vmem:[%s3 + $0x78] sm:$0xff]
      %v466 = vld [vmem:[#allocation2 + $0x8] sm:$0xff]
      %v467 = vld [vmem:[#allocation2 + $0x10] sm:$0xff]
      %v468 = vld [vmem:[#allocation2 + $0x18] sm:$0xff]
      %v469 = vld [vmem:[#allocation2 + $0x20] sm:$0xff]
      %s470 = scalar_lea.vmem %s3, 128
      %v471 = vld [vmem:[%s470] sm:$0xff]
      %v472 = vld [vmem:[%s470 + $0x8] sm:$0xff]
      %v473 = vld [vmem:[%s470 + $0x10] sm:$0xff]
      %v474 = vld [vmem:[%s470 + $0x18] sm:$0xff]
      %v475 = vld [vmem:[%s470 + $0x20] sm:$0xff]
      %v476 = vld [vmem:[%s470 + $0x28] sm:$0xff]
      %v477 = vld [vmem:[%s470 + $0x30] sm:$0xff]
      %v478 = vld [vmem:[%s470 + $0x38] sm:$0xff]
      %v479 = vld [vmem:[%s470 + $0x40] sm:$0xff]
      %v480 = vld [vmem:[%s470 + $0x48] sm:$0xff]
      %v481 = vld [vmem:[%s470 + $0x50] sm:$0xff]
      %v482 = vld [vmem:[%s470 + $0x58] sm:$0xff]
      %v483 = vld [vmem:[%s470 + $0x60] sm:$0xff]
      %v484 = vld [vmem:[%s470 + $0x68] sm:$0xff]
      %v485 = vld [vmem:[%s470 + $0x70] sm:$0xff]
      %v486 = vld [vmem:[%s470 + $0x78] sm:$0xff]
      %487 = vmatpush.msra.mxu0 %v486
      %488 = vmatpush.msra.mxu0 %v485
      %489 = vmatpush.msra.mxu0 %v484
      %490 = vmatpush.msra.mxu0 %v483
      %491 = vmatpush.msra.mxu0 %v482
      %492 = vmatpush.msra.mxu0 %v481
      %493 = vmatpush.msra.mxu0 %v480
      %494 = vmatpush.msra.mxu0 %v479
      %495 = vmatpush.msra.mxu0 %v478
      %496 = vmatpush.msra.mxu0 %v477
      %497 = vmatpush.msra.mxu0 %v476
      %498 = vmatpush.msra.mxu0 %v475
      %499 = vmatpush.msra.mxu0 %v474
      %500 = vmatpush.msra.mxu0 %v473
      %501 = vmatpush.msra.mxu0 %v472
      %502 = vmatpush.msra.mxu0 %v471
      %503 = vmatmul.f32.gmra.mxu0 %v466
      %v504 = vpop.f32.mrf.mxu0
      %v505 = vadd.f32 0.0, %v504
      %506 = vmatmul.f32.gmra.mxu0 %v467
      %v507 = vpop.f32.mrf.mxu0
      %v508 = vadd.f32 0.0, %v507
      %509 = vmatmul.f32.gmra.mxu0 %v468
      %v510 = vpop.f32.mrf.mxu0
      %v511 = vadd.f32 0.0, %v510
      %512 = vmatmul.f32.gmra.mxu0 %v469
      %v513 = vpop.f32.mrf.mxu0
      %v514 = vadd.f32 0.0, %v513
      %515 = vdwg.mxu0
      %516 = vmatpush.msra.mxu0 %v465
      %517 = vmatpush.msra.mxu0 %v464
      %518 = vmatpush.msra.mxu0 %v463
      %519 = vmatpush.msra.mxu0 %v462
      %520 = vmatpush.msra.mxu0 %v461
      %521 = vmatpush.msra.mxu0 %v460
      %522 = vmatpush.msra.mxu0 %v459
      %523 = vmatpush.msra.mxu0 %v458
      %524 = vmatpush.msra.mxu0 %v457
      %525 = vmatpush.msra.mxu0 %v456
      %526 = vmatpush.msra.mxu0 %v455
      %527 = vmatpush.msra.mxu0 %v454
      %528 = vmatpush.msra.mxu0 %v453
      %529 = vmatpush.msra.mxu0 %v452
      %530 = vmatpush.msra.mxu0 %v451
      %531 = vmatpush.msra.mxu0 %v450
      %532 = vmatmul.f32.gmra.mxu0 %v446
      %v533 = vpop.f32.mrf.mxu0
      %v534 = vadd.f32 %v505, %v533
      %535 = vmatmul.f32.gmra.mxu0 %v447
      %v536 = vpop.f32.mrf.mxu0
      %v537 = vadd.f32 %v508, %v536
      %538 = vmatmul.f32.gmra.mxu0 %v448
      %v539 = vpop.f32.mrf.mxu0
      %v540 = vadd.f32 %v511, %v539
      %541 = vmatmul.f32.gmra.mxu0 %v449
      %v542 = vpop.f32.mrf.mxu0
      %v543 = vadd.f32 %v514, %v542
      %544 = vdwg.mxu0
      %v545 = vld [vmem:[#allocation2 + $0x9] sm:$0xff]
      %v546 = vld [vmem:[#allocation2 + $0x11] sm:$0xff]
      %v547 = vld [vmem:[#allocation2 + $0x19] sm:$0xff]
      %v548 = vld [vmem:[#allocation2 + $0x21] sm:$0xff]
      %s549 = scalar_lea.vmem %s3, 256
      %v550 = vld [vmem:[%s549] sm:$0xff]
      %v551 = vld [vmem:[%s549 + $0x8] sm:$0xff]
      %v552 = vld [vmem:[%s549 + $0x10] sm:$0xff]
      %v553 = vld [vmem:[%s549 + $0x18] sm:$0xff]
      %v554 = vld [vmem:[%s549 + $0x20] sm:$0xff]
      %v555 = vld [vmem:[%s549 + $0x28] sm:$0xff]
      %v556 = vld [vmem:[%s549 + $0x30] sm:$0xff]
      %v557 = vld [vmem:[%s549 + $0x38] sm:$0xff]
      %v558 = vld [vmem:[%s549 + $0x40] sm:$0xff]
      %v559 = vld [vmem:[%s549 + $0x48] sm:$0xff]
      %v560 = vld [vmem:[%s549 + $0x50] sm:$0xff]
      %v561 = vld [vmem:[%s549 + $0x58] sm:$0xff]
      %v562 = vld [vmem:[%s549 + $0x60] sm:$0xff]
      %v563 = vld [vmem:[%s549 + $0x68] sm:$0xff]
      %v564 = vld [vmem:[%s549 + $0x70] sm:$0xff]
      %v565 = vld [vmem:[%s549 + $0x78] sm:$0xff]
      %566 = vmatpush.msra.mxu0 %v565
      %567 = vmatpush.msra.mxu0 %v564
      %568 = vmatpush.msra.mxu0 %v563
      %569 = vmatpush.msra.mxu0 %v562
      %570 = vmatpush.msra.mxu0 %v561
      %571 = vmatpush.msra.mxu0 %v560
      %572 = vmatpush.msra.mxu0 %v559
      %573 = vmatpush.msra.mxu0 %v558
      %574 = vmatpush.msra.mxu0 %v557
      %575 = vmatpush.msra.mxu0 %v556
      %576 = vmatpush.msra.mxu0 %v555
      %577 = vmatpush.msra.mxu0 %v554
      %578 = vmatpush.msra.mxu0 %v553
      %579 = vmatpush.msra.mxu0 %v552
      %580 = vmatpush.msra.mxu0 %v551
      %581 = vmatpush.msra.mxu0 %v550
      %582 = vmatmul.f32.gmra.mxu0 %v545
      %v583 = vpop.f32.mrf.mxu0
      %v584 = vadd.f32 0.0, %v583
      %585 = vmatmul.f32.gmra.mxu0 %v546
      %v586 = vpop.f32.mrf.mxu0
      %v587 = vadd.f32 0.0, %v586
      %588 = vmatmul.f32.gmra.mxu0 %v547
      %v589 = vpop.f32.mrf.mxu0
      %v590 = vadd.f32 0.0, %v589
      %591 = vmatmul.f32.gmra.mxu0 %v548
      %v592 = vpop.f32.mrf.mxu0
      %v593 = vadd.f32 0.0, %v592
      %594 = vdwg.mxu0
      %v595 = vadd.f32 %v534, %v584
      %v596 = vadd.f32 %v537, %v587
      %v597 = vadd.f32 %v540, %v590
      %v598 = vadd.f32 %v543, %v593
      %v599 = vld [vmem:[%s4] sm:$0x1]
      %v601 = vperm.slane %v599, 0
      %v603 = vadd.f32 %v595, %v601
      %v604 = vadd.f32 %v596, %v601
      %v605 = vadd.f32 %v597, %v601
      %v606 = vadd.f32 %v598, %v601
      %vm607 = vcmp.ge.f32.partialorder %v603, 0.0
      %vm608 = vcmp.ge.f32.partialorder %v604, 0.0
      %vm609 = vcmp.ge.f32.partialorder %v605, 0.0
      %vm610 = vcmp.ge.f32.partialorder %v606, 0.0
      %v611 = vmul.f32 %v603, 0.1
      %v612 = vmul.f32 %v604, 0.1
      %v613 = vmul.f32 %v605, 0.1
      %v614 = vmul.f32 %v606, 0.1
      %v615 = vsel %vm607, %v603, %v611
      %v616 = vsel %vm608, %v604, %v612
      %v617 = vsel %vm609, %v605, %v613
      %v618 = vsel %vm610, %v606, %v614
      %v619 = vmul.f32 %v615, %v422
      %v620 = vmul.f32 %v616, %v423
      %v621 = vmul.f32 %v617, %v424
      %v622 = vmul.f32 %v618, %v425
      %623 = vst [vmem:[#allocation2 + $0x8] sm:$0xff] %v619
      %624 = vst [vmem:[#allocation2 + $0x10] sm:$0xff] %v620
      %625 = vst [vmem:[#allocation2 + $0x18] sm:$0xff] %v621
      %626 = vst [vmem:[#allocation2 + $0x20] sm:$0xff] %v622
      %v627 = vld [vmem:[#allocation2 + $0x6] sm:$0xff]
      %v628 = vld [vmem:[#allocation2 + $0xe] sm:$0xff]
      %v629 = vld [vmem:[#allocation2 + $0x16] sm:$0xff]
      %v630 = vld [vmem:[#allocation2 + $0x1e] sm:$0xff]
      %s631 = scalar_lea.vmem %s3, 384
      %v632 = vld [vmem:[%s631] sm:$0xff]
      %v633 = vld [vmem:[%s631 + $0x8] sm:$0xff]
      %v634 = vld [vmem:[%s631 + $0x10] sm:$0xff]
      %v635 = vld [vmem:[%s631 + $0x18] sm:$0xff]
      %v636 = vld [vmem:[%s631 + $0x20] sm:$0xff]
      %v637 = vld [vmem:[%s631 + $0x28] sm:$0xff]
      %v638 = vld [vmem:[%s631 + $0x30] sm:$0xff]
      %v639 = vld [vmem:[%s631 + $0x38] sm:$0xff]
      %v640 = vld [vmem:[%s631 + $0x40] sm:$0xff]
      %v641 = vld [vmem:[%s631 + $0x48] sm:$0xff]
      %v642 = vld [vmem:[%s631 + $0x50] sm:$0xff]
      %v643 = vld [vmem:[%s631 + $0x58] sm:$0xff]
      %v644 = vld [vmem:[%s631 + $0x60] sm:$0xff]
      %v645 = vld [vmem:[%s631 + $0x68] sm:$0xff]
      %v646 = vld [vmem:[%s631 + $0x70] sm:$0xff]
      %v647 = vld [vmem:[%s631 + $0x78] sm:$0xff]
      %v648 = vld [vmem:[#allocation2 + $0x8] sm:$0xff]
      %v649 = vld [vmem:[#allocation2 + $0x10] sm:$0xff]
      %v650 = vld [vmem:[#allocation2 + $0x18] sm:$0xff]
      %v651 = vld [vmem:[#allocation2 + $0x20] sm:$0xff]
      %s652 = scalar_lea.vmem %s3, 512
      %v653 = vld [vmem:[%s652] sm:$0xff]
      %v654 = vld [vmem:[%s652 + $0x8] sm:$0xff]
      %v655 = vld [vmem:[%s652 + $0x10] sm:$0xff]
      %v656 = vld [vmem:[%s652 + $0x18] sm:$0xff]
      %v657 = vld [vmem:[%s652 + $0x20] sm:$0xff]
      %v658 = vld [vmem:[%s652 + $0x28] sm:$0xff]
      %v659 = vld [vmem:[%s652 + $0x30] sm:$0xff]
      %v660 = vld [vmem:[%s652 + $0x38] sm:$0xff]
      %v661 = vld [vmem:[%s652 + $0x40] sm:$0xff]
      %v662 = vld [vmem:[%s652 + $0x48] sm:$0xff]
      %v663 = vld [vmem:[%s652 + $0x50] sm:$0xff]
      %v664 = vld [vmem:[%s652 + $0x58] sm:$0xff]
      %v665 = vld [vmem:[%s652 + $0x60] sm:$0xff]
      %v666 = vld [vmem:[%s652 + $0x68] sm:$0xff]
      %v667 = vld [vmem:[%s652 + $0x70] sm:$0xff]
      %v668 = vld [vmem:[%s652 + $0x78] sm:$0xff]
      %669 = vmatpush.msra.mxu0 %v668
      %670 = vmatpush.msra.mxu0 %v667
      %671 = vmatpush.msra.mxu0 %v666
      %672 = vmatpush.msra.mxu0 %v665
      %673 = vmatpush.msra.mxu0 %v664
      %674 = vmatpush.msra.mxu0 %v663
      %675 = vmatpush.msra.mxu0 %v662
      %676 = vmatpush.msra.mxu0 %v661
      %677 = vmatpush.msra.mxu0 %v660
      %678 = vmatpush.msra.mxu0 %v659
      %679 = vmatpush.msra.mxu0 %v658
      %680 = vmatpush.msra.mxu0 %v657
      %681 = vmatpush.msra.mxu0 %v656
      %682 = vmatpush.msra.mxu0 %v655
      %683 = vmatpush.msra.mxu0 %v654
      %684 = vmatpush.msra.mxu0 %v653
      %685 = vmatmul.f32.gmra.mxu0 %v648
      %v686 = vpop.f32.mrf.mxu0
      %v687 = vadd.f32 0.0, %v686
      %688 = vmatmul.f32.gmra.mxu0 %v649
      %v689 = vpop.f32.mrf.mxu0
      %v690 = vadd.f32 0.0, %v689
      %691 = vmatmul.f32.gmra.mxu0 %v650
      %v692 = vpop.f32.mrf.mxu0
      %v693 = vadd.f32 0.0, %v692
      %694 = vmatmul.f32.gmra.mxu0 %v651
      %v695 = vpop.f32.mrf.mxu0
      %v696 = vadd.f32 0.0, %v695
      %697 = vdwg.mxu0
      %698 = vmatpush.msra.mxu0 %v647
      %699 = vmatpush.msra.mxu0 %v646
      %700 = vmatpush.msra.mxu0 %v645
      %701 = vmatpush.msra.mxu0 %v644
      %702 = vmatpush.msra.mxu0 %v643
      %703 = vmatpush.msra.mxu0 %v642
      %704 = vmatpush.msra.mxu0 %v641
      %705 = vmatpush.msra.mxu0 %v640
      %706 = vmatpush.msra.mxu0 %v639
      %707 = vmatpush.msra.mxu0 %v638
      %708 = vmatpush.msra.mxu0 %v637
      %709 = vmatpush.msra.mxu0 %v636
      %710 = vmatpush.msra.mxu0 %v635
      %711 = vmatpush.msra.mxu0 %v634
      %712 = vmatpush.msra.mxu0 %v633
      %713 = vmatpush.msra.mxu0 %v632
      %714 = vmatmul.f32.gmra.mxu0 %v627
      %v715 = vpop.f32.mrf.mxu0
      %v716 = vadd.f32 %v687, %v715
      %717 = vmatmul.f32.gmra.mxu0 %v628
      %v718 = vpop.f32.mrf.mxu0
      %v719 = vadd.f32 %v690, %v718
      %720 = vmatmul.f32.gmra.mxu0 %v629
      %v721 = vpop.f32.mrf.mxu0
      %v722 = vadd.f32 %v693, %v721
      %723 = vmatmul.f32.gmra.mxu0 %v630
      %v724 = vpop.f32.mrf.mxu0
      %v725 = vadd.f32 %v696, %v724
      %726 = vdwg.mxu0
      %v727 = vld [vmem:[#allocation2 + $0xa] sm:$0xff]
      %v728 = vld [vmem:[#allocation2 + $0x12] sm:$0xff]
      %v729 = vld [vmem:[#allocation2 + $0x1a] sm:$0xff]
      %v730 = vld [vmem:[#allocation2 + $0x22] sm:$0xff]
      %s731 = scalar_lea.vmem %s3, 640
      %v732 = vld [vmem:[%s731] sm:$0xff]
      %v733 = vld [vmem:[%s731 + $0x8] sm:$0xff]
      %v734 = vld [vmem:[%s731 + $0x10] sm:$0xff]
      %v735 = vld [vmem:[%s731 + $0x18] sm:$0xff]
      %v736 = vld [vmem:[%s731 + $0x20] sm:$0xff]
      %v737 = vld [vmem:[%s731 + $0x28] sm:$0xff]
      %v738 = vld [vmem:[%s731 + $0x30] sm:$0xff]
      %v739 = vld [vmem:[%s731 + $0x38] sm:$0xff]
      %v740 = vld [vmem:[%s731 + $0x40] sm:$0xff]
      %v741 = vld [vmem:[%s731 + $0x48] sm:$0xff]
      %v742 = vld [vmem:[%s731 + $0x50] sm:$0xff]
      %v743 = vld [vmem:[%s731 + $0x58] sm:$0xff]
      %v744 = vld [vmem:[%s731 + $0x60] sm:$0xff]
      %v745 = vld [vmem:[%s731 + $0x68] sm:$0xff]
      %v746 = vld [vmem:[%s731 + $0x70] sm:$0xff]
      %v747 = vld [vmem:[%s731 + $0x78] sm:$0xff]
      %748 = vmatpush.msra.mxu0 %v747
      %749 = vmatpush.msra.mxu0 %v746
      %750 = vmatpush.msra.mxu0 %v745
      %751 = vmatpush.msra.mxu0 %v744
      %752 = vmatpush.msra.mxu0 %v743
      %753 = vmatpush.msra.mxu0 %v742
      %754 = vmatpush.msra.mxu0 %v741
      %755 = vmatpush.msra.mxu0 %v740
      %756 = vmatpush.msra.mxu0 %v739
      %757 = vmatpush.msra.mxu0 %v738
      %758 = vmatpush.msra.mxu0 %v737
      %759 = vmatpush.msra.mxu0 %v736
      %760 = vmatpush.msra.mxu0 %v735
      %761 = vmatpush.msra.mxu0 %v734
      %762 = vmatpush.msra.mxu0 %v733
      %763 = vmatpush.msra.mxu0 %v732
      %764 = vmatmul.f32.gmra.mxu0 %v727
      %v765 = vpop.f32.mrf.mxu0
      %v766 = vadd.f32 0.0, %v765
      %767 = vmatmul.f32.gmra.mxu0 %v728
      %v768 = vpop.f32.mrf.mxu0
      %v769 = vadd.f32 0.0, %v768
      %770 = vmatmul.f32.gmra.mxu0 %v729
      %v771 = vpop.f32.mrf.mxu0
      %v772 = vadd.f32 0.0, %v771
      %773 = vmatmul.f32.gmra.mxu0 %v730
      %v774 = vpop.f32.mrf.mxu0
      %v775 = vadd.f32 0.0, %v774
      %776 = vdwg.mxu0
      %v777 = vadd.f32 %v716, %v766
      %v778 = vadd.f32 %v719, %v769
      %v779 = vadd.f32 %v722, %v772
      %v780 = vadd.f32 %v725, %v775
      %s781 = scalar_lea.vmem %s4, 1
      %v782 = vld [vmem:[%s781] sm:$0x1]
      %v784 = vperm.slane %v782, 0
      %v786 = vadd.f32 %v777, %v784
      %v787 = vadd.f32 %v778, %v784
      %v788 = vadd.f32 %v779, %v784
      %v789 = vadd.f32 %v780, %v784
      %v790 = vadd.f32 %v390, %v786
      %v791 = vadd.f32 %v391, %v787
      %v792 = vadd.f32 %v392, %v788
      %v793 = vadd.f32 %v393, %v789
      %vm794 = vcmp.ge.f32.partialorder %v790, 0.0
      %vm795 = vcmp.ge.f32.partialorder %v791, 0.0
      %vm796 = vcmp.ge.f32.partialorder %v792, 0.0
      %vm797 = vcmp.ge.f32.partialorder %v793, 0.0
      %v798 = vmul.f32 %v790, 0.1
      %v799 = vmul.f32 %v791, 0.1
      %v800 = vmul.f32 %v792, 0.1
      %v801 = vmul.f32 %v793, 0.1
      %v802 = vsel %vm794, %v790, %v798
      %v803 = vsel %vm795, %v791, %v799
      %v804 = vsel %vm796, %v792, %v800
      %v805 = vsel %vm797, %v793, %v801
      %v806 = vmul.f32 %v802, %v422
      %v807 = vmul.f32 %v803, %v423
      %v808 = vmul.f32 %v804, %v424
      %v809 = vmul.f32 %v805, %v425
      %810 = vst [vmem:[#allocation2 + $0x8] sm:$0xff] %v806
      %811 = vst [vmem:[#allocation2 + $0x10] sm:$0xff] %v807
      %812 = vst [vmem:[#allocation2 + $0x18] sm:$0xff] %v808
      %813 = vst [vmem:[#allocation2 + $0x20] sm:$0xff] %v809
      %v814 = vld [vmem:[#allocation2 + $0x5] sm:$0xff]
      %v815 = vld [vmem:[#allocation2 + $0xd] sm:$0xff]
      %v816 = vld [vmem:[#allocation2 + $0x15] sm:$0xff]
      %v817 = vld [vmem:[#allocation2 + $0x1d] sm:$0xff]
      %s818 = scalar_lea.vmem %s3, 768
      %v819 = vld [vmem:[%s818] sm:$0xff]
      %v820 = vld [vmem:[%s818 + $0x8] sm:$0xff]
      %v821 = vld [vmem:[%s818 + $0x10] sm:$0xff]
      %v822 = vld [vmem:[%s818 + $0x18] sm:$0xff]
      %v823 = vld [vmem:[%s818 + $0x20] sm:$0xff]
      %v824 = vld [vmem:[%s818 + $0x28] sm:$0xff]
      %v825 = vld [vmem:[%s818 + $0x30] sm:$0xff]
      %v826 = vld [vmem:[%s818 + $0x38] sm:$0xff]
      %v827 = vld [vmem:[%s818 + $0x40] sm:$0xff]
      %v828 = vld [vmem:[%s818 + $0x48] sm:$0xff]
      %v829 = vld [vmem:[%s818 + $0x50] sm:$0xff]
      %v830 = vld [vmem:[%s818 + $0x58] sm:$0xff]
      %v831 = vld [vmem:[%s818 + $0x60] sm:$0xff]
      %v832 = vld [vmem:[%s818 + $0x68] sm:$0xff]
      %v833 = vld [vmem:[%s818 + $0x70] sm:$0xff]
      %v834 = vld [vmem:[%s818 + $0x78] sm:$0xff]
      %v835 = vld [vmem:[#allocation2 + $0x8] sm:$0xff]
      %v836 = vld [vmem:[#allocation2 + $0x10] sm:$0xff]
      %v837 = vld [vmem:[#allocation2 + $0x18] sm:$0xff]
      %v838 = vld [vmem:[#allocation2 + $0x20] sm:$0xff]
      %s839 = scalar_lea.vmem %s3, 896
      %v840 = vld [vmem:[%s839] sm:$0xff]
      %v841 = vld [vmem:[%s839 + $0x8] sm:$0xff]
      %v842 = vld [vmem:[%s839 + $0x10] sm:$0xff]
      %v843 = vld [vmem:[%s839 + $0x18] sm:$0xff]
      %v844 = vld [vmem:[%s839 + $0x20] sm:$0xff]
      %v845 = vld [vmem:[%s839 + $0x28] sm:$0xff]
      %v846 = vld [vmem:[%s839 + $0x30] sm:$0xff]
      %v847 = vld [vmem:[%s839 + $0x38] sm:$0xff]
      %v848 = vld [vmem:[%s839 + $0x40] sm:$0xff]
      %v849 = vld [vmem:[%s839 + $0x48] sm:$0xff]
      %v850 = vld [vmem:[%s839 + $0x50] sm:$0xff]
      %v851 = vld [vmem:[%s839 + $0x58] sm:$0xff]
      %v852 = vld [vmem:[%s839 + $0x60] sm:$0xff]
      %v853 = vld [vmem:[%s839 + $0x68] sm:$0xff]
      %v854 = vld [vmem:[%s839 + $0x70] sm:$0xff]
      %v855 = vld [vmem:[%s839 + $0x78] sm:$0xff]
      %856 = vmatpush.msra.mxu0 %v855
      %857 = vmatpush.msra.mxu0 %v854
      %858 = vmatpush.msra.mxu0 %v853
      %859 = vmatpush.msra.mxu0 %v852
      %860 = vmatpush.msra.mxu0 %v851
      %861 = vmatpush.msra.mxu0 %v850
      %862 = vmatpush.msra.mxu0 %v849
      %863 = vmatpush.msra.mxu0 %v848
      %864 = vmatpush.msra.mxu0 %v847
      %865 = vmatpush.msra.mxu0 %v846
      %866 = vmatpush.msra.mxu0 %v845
      %867 = vmatpush.msra.mxu0 %v844
      %868 = vmatpush.msra.mxu0 %v843
      %869 = vmatpush.msra.mxu0 %v842
      %870 = vmatpush.msra.mxu0 %v841
      %871 = vmatpush.msra.mxu0 %v840
      %872 = vmatmul.f32.gmra.mxu0 %v835
      %v873 = vpop.f32.mrf.mxu0
      %v874 = vadd.f32 0.0, %v873
      %875 = vmatmul.f32.gmra.mxu0 %v836
      %v876 = vpop.f32.mrf.mxu0
      %v877 = vadd.f32 0.0, %v876
      %878 = vmatmul.f32.gmra.mxu0 %v837
      %v879 = vpop.f32.mrf.mxu0
      %v880 = vadd.f32 0.0, %v879
      %881 = vmatmul.f32.gmra.mxu0 %v838
      %v882 = vpop.f32.mrf.mxu0
      %v883 = vadd.f32 0.0, %v882
      %884 = vdwg.mxu0
      %885 = vmatpush.msra.mxu0 %v834
      %886 = vmatpush.msra.mxu0 %v833
      %887 = vmatpush.msra.mxu0 %v832
      %888 = vmatpush.msra.mxu0 %v831
      %889 = vmatpush.msra.mxu0 %v830
      %890 = vmatpush.msra.mxu0 %v829
      %891 = vmatpush.msra.mxu0 %v828
      %892 = vmatpush.msra.mxu0 %v827
      %893 = vmatpush.msra.mxu0 %v826
      %894 = vmatpush.msra.mxu0 %v825
      %895 = vmatpush.msra.mxu0 %v824
      %896 = vmatpush.msra.mxu0 %v823
      %897 = vmatpush.msra.mxu0 %v822
      %898 = vmatpush.msra.mxu0 %v821
      %899 = vmatpush.msra.mxu0 %v820
      %900 = vmatpush.msra.mxu0 %v819
      %901 = vmatmul.f32.gmra.mxu0 %v814
      %v902 = vpop.f32.mrf.mxu0
      %v903 = vadd.f32 %v874, %v902
      %904 = vmatmul.f32.gmra.mxu0 %v815
      %v905 = vpop.f32.mrf.mxu0
      %v906 = vadd.f32 %v877, %v905
      %907 = vmatmul.f32.gmra.mxu0 %v816
      %v908 = vpop.f32.mrf.mxu0
      %v909 = vadd.f32 %v880, %v908
      %910 = vmatmul.f32.gmra.mxu0 %v817
      %v911 = vpop.f32.mrf.mxu0
      %v912 = vadd.f32 %v883, %v911
      %913 = vdwg.mxu0
      %v914 = vld [vmem:[#allocation2 + $0xb] sm:$0xff]
      %v915 = vld [vmem:[#allocation2 + $0x13] sm:$0xff]
      %v916 = vld [vmem:[#allocation2 + $0x1b] sm:$0xff]
      %v917 = vld [vmem:[#allocation2 + $0x23] sm:$0xff]
      %s918 = scalar_lea.vmem %s3, 1024
      %v919 = vld [vmem:[%s918] sm:$0xff]
      %v920 = vld [vmem:[%s918 + $0x8] sm:$0xff]
      %v921 = vld [vmem:[%s918 + $0x10] sm:$0xff]
      %v922 = vld [vmem:[%s918 + $0x18] sm:$0xff]
      %v923 = vld [vmem:[%s918 + $0x20] sm:$0xff]
      %v924 = vld [vmem:[%s918 + $0x28] sm:$0xff]
      %v925 = vld [vmem:[%s918 + $0x30] sm:$0xff]
      %v926 = vld [vmem:[%s918 + $0x38] sm:$0xff]
      %v927 = vld [vmem:[%s918 + $0x40] sm:$0xff]
      %v928 = vld [vmem:[%s918 + $0x48] sm:$0xff]
      %v929 = vld [vmem:[%s918 + $0x50] sm:$0xff]
      %v930 = vld [vmem:[%s918 + $0x58] sm:$0xff]
      %v931 = vld [vmem:[%s918 + $0x60] sm:$0xff]
      %v932 = vld [vmem:[%s918 + $0x68] sm:$0xff]
      %v933 = vld [vmem:[%s918 + $0x70] sm:$0xff]
      %v934 = vld [vmem:[%s918 + $0x78] sm:$0xff]
      %935 = vmatpush.msra.mxu0 %v934
      %936 = vmatpush.msra.mxu0 %v933
      %937 = vmatpush.msra.mxu0 %v932
      %938 = vmatpush.msra.mxu0 %v931
      %939 = vmatpush.msra.mxu0 %v930
      %940 = vmatpush.msra.mxu0 %v929
      %941 = vmatpush.msra.mxu0 %v928
      %942 = vmatpush.msra.mxu0 %v927
      %943 = vmatpush.msra.mxu0 %v926
      %944 = vmatpush.msra.mxu0 %v925
      %945 = vmatpush.msra.mxu0 %v924
      %946 = vmatpush.msra.mxu0 %v923
      %947 = vmatpush.msra.mxu0 %v922
      %948 = vmatpush.msra.mxu0 %v921
      %949 = vmatpush.msra.mxu0 %v920
      %950 = vmatpush.msra.mxu0 %v919
      %951 = vmatmul.f32.gmra.mxu0 %v914
      %v952 = vpop.f32.mrf.mxu0
      %v953 = vadd.f32 0.0, %v952
      %954 = vmatmul.f32.gmra.mxu0 %v915
      %v955 = vpop.f32.mrf.mxu0
      %v956 = vadd.f32 0.0, %v955
      %957 = vmatmul.f32.gmra.mxu0 %v916
      %v958 = vpop.f32.mrf.mxu0
      %v959 = vadd.f32 0.0, %v958
      %960 = vmatmul.f32.gmra.mxu0 %v917
      %v961 = vpop.f32.mrf.mxu0
      %v962 = vadd.f32 0.0, %v961
      %963 = vdwg.mxu0
      %v964 = vadd.f32 %v903, %v953
      %v965 = vadd.f32 %v906, %v956
      %v966 = vadd.f32 %v909, %v959
      %v967 = vadd.f32 %v912, %v962
      %s968 = scalar_lea.vmem %s4, 2
      %v969 = vld [vmem:[%s968] sm:$0x1]
      %v971 = vperm.slane %v969, 0
      %v973 = vadd.f32 %v964, %v971
      %v974 = vadd.f32 %v965, %v971
      %v975 = vadd.f32 %v966, %v971
      %v976 = vadd.f32 %v967, %v971
      %vm977 = vcmp.ge.f32.partialorder %v973, 0.0
      %vm978 = vcmp.ge.f32.partialorder %v974, 0.0
      %vm979 = vcmp.ge.f32.partialorder %v975, 0.0
      %vm980 = vcmp.ge.f32.partialorder %v976, 0.0
      %v981 = vmul.f32 %v973, 0.1
      %v982 = vmul.f32 %v974, 0.1
      %v983 = vmul.f32 %v975, 0.1
      %v984 = vmul.f32 %v976, 0.1
      %v985 = vsel %vm977, %v973, %v981
      %v986 = vsel %vm978, %v974, %v982
      %v987 = vsel %vm979, %v975, %v983
      %v988 = vsel %vm980, %v976, %v984
      %v989 = vmul.f32 %v985, %v422
      %v990 = vmul.f32 %v986, %v423
      %v991 = vmul.f32 %v987, %v424
      %v992 = vmul.f32 %v988, %v425
      %993 = vst [vmem:[#allocation2 + $0x8] sm:$0xff] %v989
      %994 = vst [vmem:[#allocation2 + $0x10] sm:$0xff] %v990
      %995 = vst [vmem:[#allocation2 + $0x18] sm:$0xff] %v991
      %996 = vst [vmem:[#allocation2 + $0x20] sm:$0xff] %v992
      %v997 = vld [vmem:[#allocation2 + $0x7] sm:$0xff]
      %v998 = vld [vmem:[#allocation2 + $0xf] sm:$0xff]
      %v999 = vld [vmem:[#allocation2 + $0x17] sm:$0xff]
      %v1000 = vld [vmem:[#allocation2 + $0x1f] sm:$0xff]
      %s1001 = scalar_lea.vmem %s3, 1152
      %v1002 = vld [vmem:[%s1001] sm:$0xff]
      %v1003 = vld [vmem:[%s1001 + $0x8] sm:$0xff]
      %v1004 = vld [vmem:[%s1001 + $0x10] sm:$0xff]
      %v1005 = vld [vmem:[%s1001 + $0x18] sm:$0xff]
      %v1006 = vld [vmem:[%s1001 + $0x20] sm:$0xff]
      %v1007 = vld [vmem:[%s1001 + $0x28] sm:$0xff]
      %v1008 = vld [vmem:[%s1001 + $0x30] sm:$0xff]
      %v1009 = vld [vmem:[%s1001 + $0x38] sm:$0xff]
      %v1010 = vld [vmem:[%s1001 + $0x40] sm:$0xff]
      %v1011 = vld [vmem:[%s1001 + $0x48] sm:$0xff]
      %v1012 = vld [vmem:[%s1001 + $0x50] sm:$0xff]
      %v1013 = vld [vmem:[%s1001 + $0x58] sm:$0xff]
      %v1014 = vld [vmem:[%s1001 + $0x60] sm:$0xff]
      %v1015 = vld [vmem:[%s1001 + $0x68] sm:$0xff]
      %v1016 = vld [vmem:[%s1001 + $0x70] sm:$0xff]
      %v1017 = vld [vmem:[%s1001 + $0x78] sm:$0xff]
      %v1018 = vld [vmem:[#allocation2 + $0x8] sm:$0xff]
      %v1019 = vld [vmem:[#allocation2 + $0x10] sm:$0xff]
      %v1020 = vld [vmem:[#allocation2 + $0x18] sm:$0xff]
      %v1021 = vld [vmem:[#allocation2 + $0x20] sm:$0xff]
      %s1022 = scalar_lea.vmem %s3, 1280
      %v1023 = vld [vmem:[%s1022] sm:$0xff]
      %v1024 = vld [vmem:[%s1022 + $0x8] sm:$0xff]
      %v1025 = vld [vmem:[%s1022 + $0x10] sm:$0xff]
      %v1026 = vld [vmem:[%s1022 + $0x18] sm:$0xff]
      %v1027 = vld [vmem:[%s1022 + $0x20] sm:$0xff]
      %v1028 = vld [vmem:[%s1022 + $0x28] sm:$0xff]
      %v1029 = vld [vmem:[%s1022 + $0x30] sm:$0xff]
      %v1030 = vld [vmem:[%s1022 + $0x38] sm:$0xff]
      %v1031 = vld [vmem:[%s1022 + $0x40] sm:$0xff]
      %v1032 = vld [vmem:[%s1022 + $0x48] sm:$0xff]
      %v1033 = vld [vmem:[%s1022 + $0x50] sm:$0xff]
      %v1034 = vld [vmem:[%s1022 + $0x58] sm:$0xff]
      %v1035 = vld [vmem:[%s1022 + $0x60] sm:$0xff]
      %v1036 = vld [vmem:[%s1022 + $0x68] sm:$0xff]
      %v1037 = vld [vmem:[%s1022 + $0x70] sm:$0xff]
      %v1038 = vld [vmem:[%s1022 + $0x78] sm:$0xff]
      %1039 = vmatpush.msra.mxu0 %v1038
      %1040 = vmatpush.msra.mxu0 %v1037
      %1041 = vmatpush.msra.mxu0 %v1036
      %1042 = vmatpush.msra.mxu0 %v1035
      %1043 = vmatpush.msra.mxu0 %v1034
      %1044 = vmatpush.msra.mxu0 %v1033
      %1045 = vmatpush.msra.mxu0 %v1032
      %1046 = vmatpush.msra.mxu0 %v1031
      %1047 = vmatpush.msra.mxu0 %v1030
      %1048 = vmatpush.msra.mxu0 %v1029
      %1049 = vmatpush.msra.mxu0 %v1028
      %1050 = vmatpush.msra.mxu0 %v1027
      %1051 = vmatpush.msra.mxu0 %v1026
      %1052 = vmatpush.msra.mxu0 %v1025
      %1053 = vmatpush.msra.mxu0 %v1024
      %1054 = vmatpush.msra.mxu0 %v1023
      %1055 = vmatmul.f32.gmra.mxu0 %v1018
      %v1056 = vpop.f32.mrf.mxu0
      %1057 = vmatmul.f32.gmra.mxu0 %v1019
      %v1058 = vpop.f32.mrf.mxu0
      %v1059 = vadd.f32 0.0, %v1058
      %1060 = vmatmul.f32.gmra.mxu0 %v1020
      %v1061 = vpop.f32.mrf.mxu0
      %v1062 = vadd.f32 0.0, %v1061
      %1063 = vmatmul.f32.gmra.mxu0 %v1021
      %v1064 = vpop.f32.mrf.mxu0
      %1065 = vdwg.mxu0
      %1066 = vmatpush.msra.mxu0 %v1017
      %1067 = vmatpush.msra.mxu0 %v1016
      %1068 = vmatpush.msra.mxu0 %v1015
      %1069 = vmatpush.msra.mxu0 %v1014
      %1070 = vmatpush.msra.mxu0 %v1013
      %1071 = vmatpush.msra.mxu0 %v1012
      %1072 = vmatpush.msra.mxu0 %v1011
      %1073 = vmatpush.msra.mxu0 %v1010
      %1074 = vmatpush.msra.mxu0 %v1009
      %1075 = vmatpush.msra.mxu0 %v1008
      %1076 = vmatpush.msra.mxu0 %v1007
      %1077 = vmatpush.msra.mxu0 %v1006
      %1078 = vmatpush.msra.mxu0 %v1005
      %1079 = vmatpush.msra.mxu0 %v1004
      %1080 = vmatpush.msra.mxu0 %v1003
      %1081 = vmatpush.msra.mxu0 %v1002
      %1082 = vmatmul.f32.gmra.mxu0 %v997
      %v1083 = vpop.f32.mrf.mxu0
      %1084 = vmatmul.f32.gmra.mxu0 %v998
      %v1085 = vpop.f32.mrf.mxu0
      %v1086 = vadd.f32 %v1059, %v1085
      %1087 = vmatmul.f32.gmra.mxu0 %v999
      %v1088 = vpop.f32.mrf.mxu0
      %v1089 = vadd.f32 %v1062, %v1088
      %1090 = vmatmul.f32.gmra.mxu0 %v1000
      %v1091 = vpop.f32.mrf.mxu0
      %1092 = vdwg.mxu0
      %v1093 = vld [vmem:[#allocation2 + $0x9] sm:$0xff]
      %v1094 = vld [vmem:[#allocation2 + $0x11] sm:$0xff]
      %v1095 = vld [vmem:[#allocation2 + $0x19] sm:$0xff]
      %v1096 = vld [vmem:[#allocation2 + $0x21] sm:$0xff]
      %s1097 = scalar_lea.vmem %s3, 1408
      %v1098 = vld [vmem:[%s1097] sm:$0xff]
      %v1099 = vld [vmem:[%s1097 + $0x8] sm:$0xff]
      %v1100 = vld [vmem:[%s1097 + $0x10] sm:$0xff]
      %v1101 = vld [vmem:[%s1097 + $0x18] sm:$0xff]
      %v1102 = vld [vmem:[%s1097 + $0x20] sm:$0xff]
      %v1103 = vld [vmem:[%s1097 + $0x28] sm:$0xff]
      %v1104 = vld [vmem:[%s1097 + $0x30] sm:$0xff]
      %v1105 = vld [vmem:[%s1097 + $0x38] sm:$0xff]
      %v1106 = vld [vmem:[%s1097 + $0x40] sm:$0xff]
      %v1107 = vld [vmem:[%s1097 + $0x48] sm:$0xff]
      %v1108 = vld [vmem:[%s1097 + $0x50] sm:$0xff]
      %v1109 = vld [vmem:[%s1097 + $0x58] sm:$0xff]
      %v1110 = vld [vmem:[%s1097 + $0x60] sm:$0xff]
      %v1111 = vld [vmem:[%s1097 + $0x68] sm:$0xff]
      %v1112 = vld [vmem:[%s1097 + $0x70] sm:$0xff]
      %v1113 = vld [vmem:[%s1097 + $0x78] sm:$0xff]
      %1114 = vmatpush.msra.mxu0 %v1113
      %1115 = vmatpush.msra.mxu0 %v1112
      %1116 = vmatpush.msra.mxu0 %v1111
      %1117 = vmatpush.msra.mxu0 %v1110
      %1118 = vmatpush.msra.mxu0 %v1109
      %1119 = vmatpush.msra.mxu0 %v1108
      %1120 = vmatpush.msra.mxu0 %v1107
      %1121 = vmatpush.msra.mxu0 %v1106
      %1122 = vmatpush.msra.mxu0 %v1105
      %1123 = vmatpush.msra.mxu0 %v1104
      %1124 = vmatpush.msra.mxu0 %v1103
      %1125 = vmatpush.msra.mxu0 %v1102
      %1126 = vmatpush.msra.mxu0 %v1101
      %1127 = vmatpush.msra.mxu0 %v1100
      %1128 = vmatpush.msra.mxu0 %v1099
      %1129 = vmatpush.msra.mxu0 %v1098
      %1130 = vmatmul.f32.gmra.mxu0 %v1093
      %v1131 = vpop.f32.mrf.mxu0
      %1132 = vmatmul.f32.gmra.mxu0 %v1094
      %v1133 = vpop.f32.mrf.mxu0
      %v1134 = vadd.f32 0.0, %v1133
      %1135 = vmatmul.f32.gmra.mxu0 %v1095
      %v1136 = vpop.f32.mrf.mxu0
      %v1137 = vadd.f32 0.0, %v1136
      %1138 = vmatmul.f32.gmra.mxu0 %v1096
      %v1139 = vpop.f32.mrf.mxu0
      %1140 = vdwg.mxu0
      %v1141 = vadd.f32 %v1086, %v1134
      %v1142 = vadd.f32 %v1089, %v1137
      %s1143 = scalar_lea.vmem %s4, 3
      %v1144 = vld [vmem:[%s1143] sm:$0x1]
      %v1146 = vperm.slane %v1144, 0
      %v1148 = vadd.f32 %v1141, %v1146
      %v1149 = vadd.f32 %v1142, %v1146
      %v1150 = vadd.f32 %v791, %v1148
      %v1151 = vadd.f32 %v792, %v1149
      %v1152 = vadd.f32 %v1150, 0.0
      %v1153 = vadd.f32 %v1151, 0.0
      %1154 = vst [vmem:[#allocation2 + $0x8] sm:$0xff] %v438
      %1155 = vst [vmem:[#allocation2 + $0x10] sm:$0xff] %v439
      %1156 = vst [vmem:[#allocation2 + $0x18] sm:$0xff] %v440
      %1157 = vst [vmem:[#allocation2 + $0x20] sm:$0xff] %v441
      %v1158 = vld [vmem:[#allocation2 + $0x6] sm:$0xff]
      %v1159 = vld [vmem:[#allocation2 + $0xe] sm:$0xff]
      %v1160 = vld [vmem:[#allocation2 + $0x16] sm:$0xff]
      %v1161 = vld [vmem:[#allocation2 + $0x1e] sm:$0xff]
      %v1162 = vld [vmem:[%s5] sm:$0xff]
      %v1163 = vld [vmem:[%s5 + $0x8] sm:$0xff]
      %v1164 = vld [vmem:[%s5 + $0x10] sm:$0xff]
      %v1165 = vld [vmem:[%s5 + $0x18] sm:$0xff]
      %v1166 = vld [vmem:[%s5 + $0x20] sm:$0xff]
      %v1167 = vld [vmem:[%s5 + $0x28] sm:$0xff]
      %v1168 = vld [vmem:[%s5 + $0x30] sm:$0xff]
      %v1169 = vld [vmem:[%s5 + $0x38] sm:$0xff]
      %v1170 = vld [vmem:[%s5 + $0x40] sm:$0xff]
      %v1171 = vld [vmem:[%s5 + $0x48] sm:$0xff]
      %v1172 = vld [vmem:[%s5 + $0x50] sm:$0xff]
      %v1173 = vld [vmem:[%s5 + $0x58] sm:$0xff]
      %v1174 = vld [vmem:[%s5 + $0x60] sm:$0xff]
      %v1175 = vld [vmem:[%s5 + $0x68] sm:$0xff]
      %v1176 = vld [vmem:[%s5 + $0x70] sm:$0xff]
      %v1177 = vld [vmem:[%s5 + $0x78] sm:$0xff]
      %v1178 = vld [vmem:[#allocation2 + $0x7] sm:$0xff]
      %v1179 = vld [vmem:[#allocation2 + $0xf] sm:$0xff]
      %v1180 = vld [vmem:[#allocation2 + $0x17] sm:$0xff]
      %v1181 = vld [vmem:[#allocation2 + $0x1f] sm:$0xff]
      %s1182 = scalar_lea.vmem %s5, 128
      %v1183 = vld [vmem:[%s1182] sm:$0xff]
      %v1184 = vld [vmem:[%s1182 + $0x8] sm:$0xff]
      %v1185 = vld [vmem:[%s1182 + $0x10] sm:$0xff]
      %v1186 = vld [vmem:[%s1182 + $0x18] sm:$0xff]
      %v1187 = vld [vmem:[%s1182 + $0x20] sm:$0xff]
      %v1188 = vld [vmem:[%s1182 + $0x28] sm:$0xff]
      %v1189 = vld [vmem:[%s1182 + $0x30] sm:$0xff]
      %v1190 = vld [vmem:[%s1182 + $0x38] sm:$0xff]
      %v1191 = vld [vmem:[%s1182 + $0x40] sm:$0xff]
      %v1192 = vld [vmem:[%s1182 + $0x48] sm:$0xff]
      %v1193 = vld [vmem:[%s1182 + $0x50] sm:$0xff]
      %v1194 = vld [vmem:[%s1182 + $0x58] sm:$0xff]
      %v1195 = vld [vmem:[%s1182 + $0x60] sm:$0xff]
      %v1196 = vld [vmem:[%s1182 + $0x68] sm:$0xff]
      %v1197 = vld [vmem:[%s1182 + $0x70] sm:$0xff]
      %v1198 = vld [vmem:[%s1182 + $0x78] sm:$0xff]
      %1199 = vmatpush.msra.mxu0 %v1198
      %1200 = vmatpush.msra.mxu0 %v1197
      %1201 = vmatpush.msra.mxu0 %v1196
      %1202 = vmatpush.msra.mxu0 %v1195
      %1203 = vmatpush.msra.mxu0 %v1194
      %1204 = vmatpush.msra.mxu0 %v1193
      %1205 = vmatpush.msra.mxu0 %v1192
      %1206 = vmatpush.msra.mxu0 %v1191
      %1207 = vmatpush.msra.mxu0 %v1190
      %1208 = vmatpush.msra.mxu0 %v1189
      %1209 = vmatpush.msra.mxu0 %v1188
      %1210 = vmatpush.msra.mxu0 %v1187
      %1211 = vmatpush.msra.mxu0 %v1186
      %1212 = vmatpush.msra.mxu0 %v1185
      %1213 = vmatpush.msra.mxu0 %v1184
      %1214 = vmatpush.msra.mxu0 %v1183
      %1215 = vmatmul.f32.gmra.mxu0 %v1178
      %v1216 = vpop.f32.mrf.mxu0
      %v1217 = vadd.f32 0.0, %v1216
      %1218 = vmatmul.f32.gmra.mxu0 %v1179
      %v1219 = vpop.f32.mrf.mxu0
      %v1220 = vadd.f32 0.0, %v1219
      %1221 = vmatmul.f32.gmra.mxu0 %v1180
      %v1222 = vpop.f32.mrf.mxu0
      %v1223 = vadd.f32 0.0, %v1222
      %1224 = vmatmul.f32.gmra.mxu0 %v1181
      %v1225 = vpop.f32.mrf.mxu0
      %v1226 = vadd.f32 0.0, %v1225
      %1227 = vdwg.mxu0
      %1228 = vmatpush.msra.mxu0 %v1177
      %1229 = vmatpush.msra.mxu0 %v1176
      %1230 = vmatpush.msra.mxu0 %v1175
      %1231 = vmatpush.msra.mxu0 %v1174
      %1232 = vmatpush.msra.mxu0 %v1173
      %1233 = vmatpush.msra.mxu0 %v1172
      %1234 = vmatpush.msra.mxu0 %v1171
      %1235 = vmatpush.msra.mxu0 %v1170
      %1236 = vmatpush.msra.mxu0 %v1169
      %1237 = vmatpush.msra.mxu0 %v1168
      %1238 = vmatpush.msra.mxu0 %v1167
      %1239 = vmatpush.msra.mxu0 %v1166
      %1240 = vmatpush.msra.mxu0 %v1165
      %1241 = vmatpush.msra.mxu0 %v1164
      %1242 = vmatpush.msra.mxu0 %v1163
      %1243 = vmatpush.msra.mxu0 %v1162
      %1244 = vmatmul.f32.gmra.mxu0 %v1158
      %v1245 = vpop.f32.mrf.mxu0
      %v1246 = vadd.f32 %v1217, %v1245
      %1247 = vmatmul.f32.gmra.mxu0 %v1159
      %v1248 = vpop.f32.mrf.mxu0
      %v1249 = vadd.f32 %v1220, %v1248
      %1250 = vmatmul.f32.gmra.mxu0 %v1160
      %v1251 = vpop.f32.mrf.mxu0
      %v1252 = vadd.f32 %v1223, %v1251
      %1253 = vmatmul.f32.gmra.mxu0 %v1161
      %v1254 = vpop.f32.mrf.mxu0
      %v1255 = vadd.f32 %v1226, %v1254
      %1256 = vdwg.mxu0
      %v1257 = vld [vmem:[#allocation2 + $0x8] sm:$0xff]
      %v1258 = vld [vmem:[#allocation2 + $0x10] sm:$0xff]
      %v1259 = vld [vmem:[#allocation2 + $0x18] sm:$0xff]
      %v1260 = vld [vmem:[#allocation2 + $0x20] sm:$0xff]
      %s1261 = scalar_lea.vmem %s5, 256
      %v1262 = vld [vmem:[%s1261] sm:$0xff]
      %v1263 = vld [vmem:[%s1261 + $0x8] sm:$0xff]
      %v1264 = vld [vmem:[%s1261 + $0x10] sm:$0xff]
      %v1265 = vld [vmem:[%s1261 + $0x18] sm:$0xff]
      %v1266 = vld [vmem:[%s1261 + $0x20] sm:$0xff]
      %v1267 = vld [vmem:[%s1261 + $0x28] sm:$0xff]
      %v1268 = vld [vmem:[%s1261 + $0x30] sm:$0xff]
      %v1269 = vld [vmem:[%s1261 + $0x38] sm:$0xff]
      %v1270 = vld [vmem:[%s1261 + $0x40] sm:$0xff]
      %v1271 = vld [vmem:[%s1261 + $0x48] sm:$0xff]
      %v1272 = vld [vmem:[%s1261 + $0x50] sm:$0xff]
      %v1273 = vld [vmem:[%s1261 + $0x58] sm:$0xff]
      %v1274 = vld [vmem:[%s1261 + $0x60] sm:$0xff]
      %v1275 = vld [vmem:[%s1261 + $0x68] sm:$0xff]
      %v1276 = vld [vmem:[%s1261 + $0x70] sm:$0xff]
      %v1277 = vld [vmem:[%s1261 + $0x78] sm:$0xff]
      %1278 = vmatpush.msra.mxu0 %v1277
      %1279 = vmatpush.msra.mxu0 %v1276
      %1280 = vmatpush.msra.mxu0 %v1275
      %1281 = vmatpush.msra.mxu0 %v1274
      %1282 = vmatpush.msra.mxu0 %v1273
      %1283 = vmatpush.msra.mxu0 %v1272
      %1284 = vmatpush.msra.mxu0 %v1271
      %1285 = vmatpush.msra.mxu0 %v1270
      %1286 = vmatpush.msra.mxu0 %v1269
      %1287 = vmatpush.msra.mxu0 %v1268
      %1288 = vmatpush.msra.mxu0 %v1267
      %1289 = vmatpush.msra.mxu0 %v1266
      %1290 = vmatpush.msra.mxu0 %v1265
      %1291 = vmatpush.msra.mxu0 %v1264
      %1292 = vmatpush.msra.mxu0 %v1263
      %1293 = vmatpush.msra.mxu0 %v1262
      %1294 = vmatmul.f32.gmra.mxu0 %v1257
      %v1295 = vpop.f32.mrf.mxu0
      %v1296 = vadd.f32 0.0, %v1295
      %1297 = vmatmul.f32.gmra.mxu0 %v1258
      %v1298 = vpop.f32.mrf.mxu0
      %v1299 = vadd.f32 0.0, %v1298
      %1300 = vmatmul.f32.gmra.mxu0 %v1259
      %v1301 = vpop.f32.mrf.mxu0
      %v1302 = vadd.f32 0.0, %v1301
      %1303 = vmatmul.f32.gmra.mxu0 %v1260
      %v1304 = vpop.f32.mrf.mxu0
      %v1305 = vadd.f32 0.0, %v1304
      %1306 = vdwg.mxu0
      %v1307 = vadd.f32 %v1246, %v1296
      %v1308 = vadd.f32 %v1249, %v1299
      %v1309 = vadd.f32 %v1252, %v1302
      %v1310 = vadd.f32 %v1255, %v1305
      %v1311 = vld [vmem:[#allocation2 + $0x9] sm:$0xff]
      %v1312 = vld [vmem:[#allocation2 + $0x11] sm:$0xff]
      %v1313 = vld [vmem:[#allocation2 + $0x19] sm:$0xff]
      %v1314 = vld [vmem:[#allocation2 + $0x21] sm:$0xff]
      %s1315 = scalar_lea.vmem %s5, 384
      %v1316 = vld [vmem:[%s1315] sm:$0xff]
      %v1317 = vld [vmem:[%s1315 + $0x8] sm:$0xff]
      %v1318 = vld [vmem:[%s1315 + $0x10] sm:$0xff]
      %v1319 = vld [vmem:[%s1315 + $0x18] sm:$0xff]
      %v1320 = vld [vmem:[%s1315 + $0x20] sm:$0xff]
      %v1321 = vld [vmem:[%s1315 + $0x28] sm:$0xff]
      %v1322 = vld [vmem:[%s1315 + $0x30] sm:$0xff]
      %v1323 = vld [vmem:[%s1315 + $0x38] sm:$0xff]
      %v1324 = vld [vmem:[%s1315 + $0x40] sm:$0xff]
      %v1325 = vld [vmem:[%s1315 + $0x48] sm:$0xff]
      %v1326 = vld [vmem:[%s1315 + $0x50] sm:$0xff]
      %v1327 = vld [vmem:[%s1315 + $0x58] sm:$0xff]
      %v1328 = vld [vmem:[%s1315 + $0x60] sm:$0xff]
      %v1329 = vld [vmem:[%s1315 + $0x68] sm:$0xff]
      %v1330 = vld [vmem:[%s1315 + $0x70] sm:$0xff]
      %v1331 = vld [vmem:[%s1315 + $0x78] sm:$0xff]
      %1332 = vmatpush.msra.mxu0 %v1331
      %1333 = vmatpush.msra.mxu0 %v1330
      %1334 = vmatpush.msra.mxu0 %v1329
      %1335 = vmatpush.msra.mxu0 %v1328
      %1336 = vmatpush.msra.mxu0 %v1327
      %1337 = vmatpush.msra.mxu0 %v1326
      %1338 = vmatpush.msra.mxu0 %v1325
      %1339 = vmatpush.msra.mxu0 %v1324
      %1340 = vmatpush.msra.mxu0 %v1323
      %1341 = vmatpush.msra.mxu0 %v1322
      %1342 = vmatpush.msra.mxu0 %v1321
      %1343 = vmatpush.msra.mxu0 %v1320
      %1344 = vmatpush.msra.mxu0 %v1319
      %1345 = vmatpush.msra.mxu0 %v1318
      %1346 = vmatpush.msra.mxu0 %v1317
      %1347 = vmatpush.msra.mxu0 %v1316
      %1348 = vmatmul.f32.gmra.mxu0 %v1311
      %v1349 = vpop.f32.mrf.mxu0
      %v1350 = vadd.f32 0.0, %v1349
      %1351 = vmatmul.f32.gmra.mxu0 %v1312
      %v1352 = vpop.f32.mrf.mxu0
      %v1353 = vadd.f32 0.0, %v1352
      %1354 = vmatmul.f32.gmra.mxu0 %v1313
      %v1355 = vpop.f32.mrf.mxu0
      %v1356 = vadd.f32 0.0, %v1355
      %1357 = vmatmul.f32.gmra.mxu0 %v1314
      %v1358 = vpop.f32.mrf.mxu0
      %v1359 = vadd.f32 0.0, %v1358
      %1360 = vdwg.mxu0
      %v1361 = vadd.f32 %v1307, %v1350
      %v1362 = vadd.f32 %v1308, %v1353
      %v1363 = vadd.f32 %v1309, %v1356
      %v1364 = vadd.f32 %v1310, %v1359
      %v1365 = vld [vmem:[#allocation2 + $0xa] sm:$0xff]
      %v1366 = vld [vmem:[#allocation2 + $0x12] sm:$0xff]
      %v1367 = vld [vmem:[#allocation2 + $0x1a] sm:$0xff]
      %v1368 = vld [vmem:[#allocation2 + $0x22] sm:$0xff]
      %s1369 = scalar_lea.vmem %s5, 512
      %v1370 = vld [vmem:[%s1369] sm:$0xff]
      %v1371 = vld [vmem:[%s1369 + $0x8] sm:$0xff]
      %v1372 = vld [vmem:[%s1369 + $0x10] sm:$0xff]
      %v1373 = vld [vmem:[%s1369 + $0x18] sm:$0xff]
      %v1374 = vld [vmem:[%s1369 + $0x20] sm:$0xff]
      %v1375 = vld [vmem:[%s1369 + $0x28] sm:$0xff]
      %v1376 = vld [vmem:[%s1369 + $0x30] sm:$0xff]
      %v1377 = vld [vmem:[%s1369 + $0x38] sm:$0xff]
      %v1378 = vld [vmem:[%s1369 + $0x40] sm:$0xff]
      %v1379 = vld [vmem:[%s1369 + $0x48] sm:$0xff]
      %v1380 = vld [vmem:[%s1369 + $0x50] sm:$0xff]
      %v1381 = vld [vmem:[%s1369 + $0x58] sm:$0xff]
      %v1382 = vld [vmem:[%s1369 + $0x60] sm:$0xff]
      %v1383 = vld [vmem:[%s1369 + $0x68] sm:$0xff]
      %v1384 = vld [vmem:[%s1369 + $0x70] sm:$0xff]
      %v1385 = vld [vmem:[%s1369 + $0x78] sm:$0xff]
      %1386 = vmatpush.msra.mxu0 %v1385
      %1387 = vmatpush.msra.mxu0 %v1384
      %1388 = vmatpush.msra.mxu0 %v1383
      %1389 = vmatpush.msra.mxu0 %v1382
      %1390 = vmatpush.msra.mxu0 %v1381
      %1391 = vmatpush.msra.mxu0 %v1380
      %1392 = vmatpush.msra.mxu0 %v1379
      %1393 = vmatpush.msra.mxu0 %v1378
      %1394 = vmatpush.msra.mxu0 %v1377
      %1395 = vmatpush.msra.mxu0 %v1376
      %1396 = vmatpush.msra.mxu0 %v1375
      %1397 = vmatpush.msra.mxu0 %v1374
      %1398 = vmatpush.msra.mxu0 %v1373
      %1399 = vmatpush.msra.mxu0 %v1372
      %1400 = vmatpush.msra.mxu0 %v1371
      %1401 = vmatpush.msra.mxu0 %v1370
      %1402 = vmatmul.f32.gmra.mxu0 %v1365
      %v1403 = vpop.f32.mrf.mxu0
      %v1404 = vadd.f32 0.0, %v1403
      %1405 = vmatmul.f32.gmra.mxu0 %v1366
      %v1406 = vpop.f32.mrf.mxu0
      %v1407 = vadd.f32 0.0, %v1406
      %1408 = vmatmul.f32.gmra.mxu0 %v1367
      %v1409 = vpop.f32.mrf.mxu0
      %v1410 = vadd.f32 0.0, %v1409
      %1411 = vmatmul.f32.gmra.mxu0 %v1368
      %v1412 = vpop.f32.mrf.mxu0
      %v1413 = vadd.f32 0.0, %v1412
      %1414 = vdwg.mxu0
      %v1415 = vadd.f32 %v1361, %v1404
      %v1416 = vadd.f32 %v1362, %v1407
      %v1417 = vadd.f32 %v1363, %v1410
      %v1418 = vadd.f32 %v1364, %v1413
      %v1419 = vld [vmem:[%s6] sm:$0x1]
      %v1421 = vperm.slane %v1419, 0
      %v1423 = vadd.f32 %v1415, %v1421
      %v1424 = vadd.f32 %v1416, %v1421
      %v1425 = vadd.f32 %v1417, %v1421
      %v1426 = vadd.f32 %v1418, %v1421
      %v1427 = vadd.f32 %v390, %v1423
      %v1428 = vadd.f32 %v391, %v1424
      %v1429 = vadd.f32 %v392, %v1425
      %v1430 = vadd.f32 %v393, %v1426
      %vm1431 = vcmp.ge.f32.partialorder %v1427, 0.0
      %vm1432 = vcmp.ge.f32.partialorder %v1428, 0.0
      %vm1433 = vcmp.ge.f32.partialorder %v1429, 0.0
      %vm1434 = vcmp.ge.f32.partialorder %v1430, 0.0
      %v1435 = vmul.f32 %v1427, 0.1
      %v1436 = vmul.f32 %v1428, 0.1
      %v1437 = vmul.f32 %v1429, 0.1
      %v1438 = vmul.f32 %v1430, 0.1
      %v1439 = vsel %vm1431, %v1427, %v1435
      %v1440 = vsel %vm1432, %v1428, %v1436
      %v1441 = vsel %vm1433, %v1429, %v1437
      %v1442 = vsel %vm1434, %v1430, %v1438
      %v1443 = vmul.f32 %v1439, %v422
      %v1444 = vmul.f32 %v1440, %v423
      %v1445 = vmul.f32 %v1441, %v424
      %v1446 = vmul.f32 %v1442, %v425
      %1447 = vst [vmem:[#allocation2 + $0x8] sm:$0xff] %v1443
      %1448 = vst [vmem:[#allocation2 + $0x10] sm:$0xff] %v1444
      %1449 = vst [vmem:[#allocation2 + $0x18] sm:$0xff] %v1445
      %1450 = vst [vmem:[#allocation2 + $0x20] sm:$0xff] %v1446
      %v1451 = vld [vmem:[#allocation2 + $0x4] sm:$0xff]
      %v1452 = vld [vmem:[#allocation2 + $0xc] sm:$0xff]
      %v1453 = vld [vmem:[#allocation2 + $0x14] sm:$0xff]
      %v1454 = vld [vmem:[#allocation2 + $0x1c] sm:$0xff]
      %s1455 = scalar_lea.vmem %s5, 640
      %v1456 = vld [vmem:[%s1455] sm:$0xff]
      %v1457 = vld [vmem:[%s1455 + $0x8] sm:$0xff]
      %v1458 = vld [vmem:[%s1455 + $0x10] sm:$0xff]
      %v1459 = vld [vmem:[%s1455 + $0x18] sm:$0xff]
      %v1460 = vld [vmem:[%s1455 + $0x20] sm:$0xff]
      %v1461 = vld [vmem:[%s1455 + $0x28] sm:$0xff]
      %v1462 = vld [vmem:[%s1455 + $0x30] sm:$0xff]
      %v1463 = vld [vmem:[%s1455 + $0x38] sm:$0xff]
      %v1464 = vld [vmem:[%s1455 + $0x40] sm:$0xff]
      %v1465 = vld [vmem:[%s1455 + $0x48] sm:$0xff]
      %v1466 = vld [vmem:[%s1455 + $0x50] sm:$0xff]
      %v1467 = vld [vmem:[%s1455 + $0x58] sm:$0xff]
      %v1468 = vld [vmem:[%s1455 + $0x60] sm:$0xff]
      %v1469 = vld [vmem:[%s1455 + $0x68] sm:$0xff]
      %v1470 = vld [vmem:[%s1455 + $0x70] sm:$0xff]
      %v1471 = vld [vmem:[%s1455 + $0x78] sm:$0xff]
      %v1472 = vld [vmem:[#allocation2 + $0x6] sm:$0xff]
      %v1473 = vld [vmem:[#allocation2 + $0xe] sm:$0xff]
      %v1474 = vld [vmem:[#allocation2 + $0x16] sm:$0xff]
      %v1475 = vld [vmem:[#allocation2 + $0x1e] sm:$0xff]
      %s1476 = scalar_lea.vmem %s5, 768
      %v1477 = vld [vmem:[%s1476] sm:$0xff]
      %v1478 = vld [vmem:[%s1476 + $0x8] sm:$0xff]
      %v1479 = vld [vmem:[%s1476 + $0x10] sm:$0xff]
      %v1480 = vld [vmem:[%s1476 + $0x18] sm:$0xff]
      %v1481 = vld [vmem:[%s1476 + $0x20] sm:$0xff]
      %v1482 = vld [vmem:[%s1476 + $0x28] sm:$0xff]
      %v1483 = vld [vmem:[%s1476 + $0x30] sm:$0xff]
      %v1484 = vld [vmem:[%s1476 + $0x38] sm:$0xff]
      %v1485 = vld [vmem:[%s1476 + $0x40] sm:$0xff]
      %v1486 = vld [vmem:[%s1476 + $0x48] sm:$0xff]
      %v1487 = vld [vmem:[%s1476 + $0x50] sm:$0xff]
      %v1488 = vld [vmem:[%s1476 + $0x58] sm:$0xff]
      %v1489 = vld [vmem:[%s1476 + $0x60] sm:$0xff]
      %v1490 = vld [vmem:[%s1476 + $0x68] sm:$0xff]
      %v1491 = vld [vmem:[%s1476 + $0x70] sm:$0xff]
      %v1492 = vld [vmem:[%s1476 + $0x78] sm:$0xff]
      %1493 = vmatpush.msra.mxu0 %v1492
      %1494 = vmatpush.msra.mxu0 %v1491
      %1495 = vmatpush.msra.mxu0 %v1490
      %1496 = vmatpush.msra.mxu0 %v1489
      %1497 = vmatpush.msra.mxu0 %v1488
      %1498 = vmatpush.msra.mxu0 %v1487
      %1499 = vmatpush.msra.mxu0 %v1486
      %1500 = vmatpush.msra.mxu0 %v1485
      %1501 = vmatpush.msra.mxu0 %v1484
      %1502 = vmatpush.msra.mxu0 %v1483
      %1503 = vmatpush.msra.mxu0 %v1482
      %1504 = vmatpush.msra.mxu0 %v1481
      %1505 = vmatpush.msra.mxu0 %v1480
      %1506 = vmatpush.msra.mxu0 %v1479
      %1507 = vmatpush.msra.mxu0 %v1478
      %1508 = vmatpush.msra.mxu0 %v1477
      %1509 = vmatmul.f32.gmra.mxu0 %v1472
      %v1510 = vpop.f32.mrf.mxu0
      %1511 = vmatmul.f32.gmra.mxu0 %v1473
      %v1512 = vpop.f32.mrf.mxu0
      %v1513 = vadd.f32 0.0, %v1512
      %1514 = vmatmul.f32.gmra.mxu0 %v1474
      %v1515 = vpop.f32.mrf.mxu0
      %v1516 = vadd.f32 0.0, %v1515
      %1517 = vmatmul.f32.gmra.mxu0 %v1475
      %v1518 = vpop.f32.mrf.mxu0
      %1519 = vdwg.mxu0
      %1520 = vmatpush.msra.mxu0 %v1471
      %1521 = vmatpush.msra.mxu0 %v1470
      %1522 = vmatpush.msra.mxu0 %v1469
      %1523 = vmatpush.msra.mxu0 %v1468
      %1524 = vmatpush.msra.mxu0 %v1467
      %1525 = vmatpush.msra.mxu0 %v1466
      %1526 = vmatpush.msra.mxu0 %v1465
      %1527 = vmatpush.msra.mxu0 %v1464
      %1528 = vmatpush.msra.mxu0 %v1463
      %1529 = vmatpush.msra.mxu0 %v1462
      %1530 = vmatpush.msra.mxu0 %v1461
      %1531 = vmatpush.msra.mxu0 %v1460
      %1532 = vmatpush.msra.mxu0 %v1459
      %1533 = vmatpush.msra.mxu0 %v1458
      %1534 = vmatpush.msra.mxu0 %v1457
      %1535 = vmatpush.msra.mxu0 %v1456
      %1536 = vmatmul.f32.gmra.mxu0 %v1451
      %v1537 = vpop.f32.mrf.mxu0
      %1538 = vmatmul.f32.gmra.mxu0 %v1452
      %v1539 = vpop.f32.mrf.mxu0
      %v1540 = vadd.f32 %v1513, %v1539
      %1541 = vmatmul.f32.gmra.mxu0 %v1453
      %v1542 = vpop.f32.mrf.mxu0
      %v1543 = vadd.f32 %v1516, %v1542
      %1544 = vmatmul.f32.gmra.mxu0 %v1454
      %v1545 = vpop.f32.mrf.mxu0
      %1546 = vdwg.mxu0
      %v1547 = vld [vmem:[#allocation2 + $0x8] sm:$0xff]
      %v1548 = vld [vmem:[#allocation2 + $0x10] sm:$0xff]
      %v1549 = vld [vmem:[#allocation2 + $0x18] sm:$0xff]
      %v1550 = vld [vmem:[#allocation2 + $0x20] sm:$0xff]
      %s1551 = scalar_lea.vmem %s5, 896
      %v1552 = vld [vmem:[%s1551] sm:$0xff]
      %v1553 = vld [vmem:[%s1551 + $0x8] sm:$0xff]
      %v1554 = vld [vmem:[%s1551 + $0x10] sm:$0xff]
      %v1555 = vld [vmem:[%s1551 + $0x18] sm:$0xff]
      %v1556 = vld [vmem:[%s1551 + $0x20] sm:$0xff]
      %v1557 = vld [vmem:[%s1551 + $0x28] sm:$0xff]
      %v1558 = vld [vmem:[%s1551 + $0x30] sm:$0xff]
      %v1559 = vld [vmem:[%s1551 + $0x38] sm:$0xff]
      %v1560 = vld [vmem:[%s1551 + $0x40] sm:$0xff]
      %v1561 = vld [vmem:[%s1551 + $0x48] sm:$0xff]
      %v1562 = vld [vmem:[%s1551 + $0x50] sm:$0xff]
      %v1563 = vld [vmem:[%s1551 + $0x58] sm:$0xff]
      %v1564 = vld [vmem:[%s1551 + $0x60] sm:$0xff]
      %v1565 = vld [vmem:[%s1551 + $0x68] sm:$0xff]
      %v1566 = vld [vmem:[%s1551 + $0x70] sm:$0xff]
      %v1567 = vld [vmem:[%s1551 + $0x78] sm:$0xff]
      %1568 = vmatpush.msra.mxu0 %v1567
      %1569 = vmatpush.msra.mxu0 %v1566
      %1570 = vmatpush.msra.mxu0 %v1565
      %1571 = vmatpush.msra.mxu0 %v1564
      %1572 = vmatpush.msra.mxu0 %v1563
      %1573 = vmatpush.msra.mxu0 %v1562
      %1574 = vmatpush.msra.mxu0 %v1561
      %1575 = vmatpush.msra.mxu0 %v1560
      %1576 = vmatpush.msra.mxu0 %v1559
      %1577 = vmatpush.msra.mxu0 %v1558
      %1578 = vmatpush.msra.mxu0 %v1557
      %1579 = vmatpush.msra.mxu0 %v1556
      %1580 = vmatpush.msra.mxu0 %v1555
      %1581 = vmatpush.msra.mxu0 %v1554
      %1582 = vmatpush.msra.mxu0 %v1553
      %1583 = vmatpush.msra.mxu0 %v1552
      %1584 = vmatmul.f32.gmra.mxu0 %v1547
      %v1585 = vpop.f32.mrf.mxu0
      %1586 = vmatmul.f32.gmra.mxu0 %v1548
      %v1587 = vpop.f32.mrf.mxu0
      %v1588 = vadd.f32 0.0, %v1587
      %1589 = vmatmul.f32.gmra.mxu0 %v1549
      %v1590 = vpop.f32.mrf.mxu0
      %v1591 = vadd.f32 0.0, %v1590
      %1592 = vmatmul.f32.gmra.mxu0 %v1550
      %v1593 = vpop.f32.mrf.mxu0
      %1594 = vdwg.mxu0
      %v1595 = vadd.f32 %v1540, %v1588
      %v1596 = vadd.f32 %v1543, %v1591
      %v1597 = vld [vmem:[#allocation2 + $0xa] sm:$0xff]
      %v1598 = vld [vmem:[#allocation2 + $0x12] sm:$0xff]
      %v1599 = vld [vmem:[#allocation2 + $0x1a] sm:$0xff]
      %v1600 = vld [vmem:[#allocation2 + $0x22] sm:$0xff]
      %s1601 = scalar_lea.vmem %s5, 1024
      %v1602 = vld [vmem:[%s1601] sm:$0xff]
      %v1603 = vld [vmem:[%s1601 + $0x8] sm:$0xff]
      %v1604 = vld [vmem:[%s1601 + $0x10] sm:$0xff]
      %v1605 = vld [vmem:[%s1601 + $0x18] sm:$0xff]
      %v1606 = vld [vmem:[%s1601 + $0x20] sm:$0xff]
      %v1607 = vld [vmem:[%s1601 + $0x28] sm:$0xff]
      %v1608 = vld [vmem:[%s1601 + $0x30] sm:$0xff]
      %v1609 = vld [vmem:[%s1601 + $0x38] sm:$0xff]
      %v1610 = vld [vmem:[%s1601 + $0x40] sm:$0xff]
      %v1611 = vld [vmem:[%s1601 + $0x48] sm:$0xff]
      %v1612 = vld [vmem:[%s1601 + $0x50] sm:$0xff]
      %v1613 = vld [vmem:[%s1601 + $0x58] sm:$0xff]
      %v1614 = vld [vmem:[%s1601 + $0x60] sm:$0xff]
      %v1615 = vld [vmem:[%s1601 + $0x68] sm:$0xff]
      %v1616 = vld [vmem:[%s1601 + $0x70] sm:$0xff]
      %v1617 = vld [vmem:[%s1601 + $0x78] sm:$0xff]
      %1618 = vmatpush.msra.mxu0 %v1617
      %1619 = vmatpush.msra.mxu0 %v1616
      %1620 = vmatpush.msra.mxu0 %v1615
      %1621 = vmatpush.msra.mxu0 %v1614
      %1622 = vmatpush.msra.mxu0 %v1613
      %1623 = vmatpush.msra.mxu0 %v1612
      %1624 = vmatpush.msra.mxu0 %v1611
      %1625 = vmatpush.msra.mxu0 %v1610
      %1626 = vmatpush.msra.mxu0 %v1609
      %1627 = vmatpush.msra.mxu0 %v1608
      %1628 = vmatpush.msra.mxu0 %v1607
      %1629 = vmatpush.msra.mxu0 %v1606
      %1630 = vmatpush.msra.mxu0 %v1605
      %1631 = vmatpush.msra.mxu0 %v1604
      %1632 = vmatpush.msra.mxu0 %v1603
      %1633 = vmatpush.msra.mxu0 %v1602
      %1634 = vmatmul.f32.gmra.mxu0 %v1597
      %v1635 = vpop.f32.mrf.mxu0
      %1636 = vmatmul.f32.gmra.mxu0 %v1598
      %v1637 = vpop.f32.mrf.mxu0
      %v1638 = vadd.f32 0.0, %v1637
      %1639 = vmatmul.f32.gmra.mxu0 %v1599
      %v1640 = vpop.f32.mrf.mxu0
      %v1641 = vadd.f32 0.0, %v1640
      %1642 = vmatmul.f32.gmra.mxu0 %v1600
      %v1643 = vpop.f32.mrf.mxu0
      %1644 = vdwg.mxu0
      %v1645 = vadd.f32 %v1595, %v1638
      %v1646 = vadd.f32 %v1596, %v1641
      %v1647 = vld [vmem:[#allocation2 + $0xc] sm:$0xff]
      %v1648 = vld [vmem:[#allocation2 + $0x14] sm:$0xff]
      %v1649 = vld [vmem:[#allocation2 + $0x1c] sm:$0xff]
      %v1650 = vld [vmem:[#allocation2 + $0x24] sm:$0xff]
      %s1651 = scalar_lea.vmem %s5, 1152
      %v1652 = vld [vmem:[%s1651] sm:$0xff]
      %v1653 = vld [vmem:[%s1651 + $0x8] sm:$0xff]
      %v1654 = vld [vmem:[%s1651 + $0x10] sm:$0xff]
      %v1655 = vld [vmem:[%s1651 + $0x18] sm:$0xff]
      %v1656 = vld [vmem:[%s1651 + $0x20] sm:$0xff]
      %v1657 = vld [vmem:[%s1651 + $0x28] sm:$0xff]
      %v1658 = vld [vmem:[%s1651 + $0x30] sm:$0xff]
      %v1659 = vld [vmem:[%s1651 + $0x38] sm:$0xff]
      %v1660 = vld [vmem:[%s1651 + $0x40] sm:$0xff]
      %v1661 = vld [vmem:[%s1651 + $0x48] sm:$0xff]
      %v1662 = vld [vmem:[%s1651 + $0x50] sm:$0xff]
      %v1663 = vld [vmem:[%s1651 + $0x58] sm:$0xff]
      %v1664 = vld [vmem:[%s1651 + $0x60] sm:$0xff]
      %v1665 = vld [vmem:[%s1651 + $0x68] sm:$0xff]
      %v1666 = vld [vmem:[%s1651 + $0x70] sm:$0xff]
      %v1667 = vld [vmem:[%s1651 + $0x78] sm:$0xff]
      %1668 = vmatpush.msra.mxu0 %v1667
      %1669 = vmatpush.msra.mxu0 %v1666
      %1670 = vmatpush.msra.mxu0 %v1665
      %1671 = vmatpush.msra.mxu0 %v1664
      %1672 = vmatpush.msra.mxu0 %v1663
      %1673 = vmatpush.msra.mxu0 %v1662
      %1674 = vmatpush.msra.mxu0 %v1661
      %1675 = vmatpush.msra.mxu0 %v1660
      %1676 = vmatpush.msra.mxu0 %v1659
      %1677 = vmatpush.msra.mxu0 %v1658
      %1678 = vmatpush.msra.mxu0 %v1657
      %1679 = vmatpush.msra.mxu0 %v1656
      %1680 = vmatpush.msra.mxu0 %v1655
      %1681 = vmatpush.msra.mxu0 %v1654
      %1682 = vmatpush.msra.mxu0 %v1653
      %1683 = vmatpush.msra.mxu0 %v1652
      %1684 = vmatmul.f32.gmra.mxu0 %v1647
      %v1685 = vpop.f32.mrf.mxu0
      %1686 = vmatmul.f32.gmra.mxu0 %v1648
      %v1687 = vpop.f32.mrf.mxu0
      %v1688 = vadd.f32 0.0, %v1687
      %1689 = vmatmul.f32.gmra.mxu0 %v1649
      %v1690 = vpop.f32.mrf.mxu0
      %v1691 = vadd.f32 0.0, %v1690
      %1692 = vmatmul.f32.gmra.mxu0 %v1650
      %v1693 = vpop.f32.mrf.mxu0
      %1694 = vdwg.mxu0
      %v1695 = vadd.f32 %v1645, %v1688
      %v1696 = vadd.f32 %v1646, %v1691
      %s1697 = scalar_lea.vmem %s6, 1
      %v1698 = vld [vmem:[%s1697] sm:$0x1]
      %v1700 = vperm.slane %v1698, 0
      %v1702 = vadd.f32 %v1695, %v1700
      %v1703 = vadd.f32 %v1696, %v1700
      %v1704 = vadd.f32 %v1428, %v1702
      %v1705 = vadd.f32 %v1429, %v1703
      %v1706 = vadd.f32 %v1152, %v1704
      %v1707 = vadd.f32 %v1153, %v1705
      %v1708 = vmul.f32 %v1706, 0.5
      %v1709 = vmul.f32 %v1707, 0.5
      %vm1710 = vcmask 31744
      %1711 = vst.msk [vmem:[%s378] sm:$0xff] %vm1710, %v1708
      %1712 = vst.msk [vmem:[%s378 + $0x8] sm:$0xff] %vm1710, %v1709
      %s1713 = smul.u32 2, %s23
      %p1714 = scmp.lt.s32.totalorder %s22, 1
      %s1715 = scalar_select %p1714, %s22, 1
      %p1716 = scmp.lt.s32.totalorder %s1713, 3
      %s1717 = scalar_select %p1716, %s1713, 3
      %s1718 = smul.addr %s1715, 4
      %s1719 = sadd.s32 %s1717, %s1718
      %s1720 = smul.addr %s1719, 8
      %s1721 = scalar_lea.vmem %s7, %s1720
      // Predicated region
      $region49: #{_lambda_.3} parent=47 // pred_check
        %p1722 = pneg %p218
      $region50: #{_lambda_.3} parent=47 // pred_check_branch
        %1724 = sbr.rel (%p1722) target = $region52
      $region51: #{_lambda_.3} parent=47 // pred_region
        %s1725 = smul.u32 2, %s23
      $region52: #{_lambda_.3} parent=47 // pred_fallthru
        _
    $region48: #{_lambda_.3} parent=5 // pred_fallthru
      _
    %p1726 = scmp.le.s32.totalorder 2, %s13
    // Predicated region
    $region53: #{_lambda_.3} parent=5 // pred_check
      %p1727 = pneg %p1726
    $region54: #{_lambda_.3} parent=5 // pred_check_branch
      %1729 = sbr.rel (%p1727) target = $region56
    $region55: #{_lambda_.3} parent=5 // pred_region
      %s1730 = ssub.s32 %s13, 2
      // Predicated region
      $region57: #{_lambda_.3} parent=55 // pred_check
        %p1731 = pneg %p224
      $region58: #{_lambda_.3} parent=55 // pred_check_branch
        %1733 = sbr.rel (%p1731) target = $region60
      $region59: #{_lambda_.3} parent=55 // pred_region
        %s1734 = smul.u32 2, %s25
        %p1735 = scmp.lt.s32.totalorder %s24, 1
        %s1736 = scalar_select %p1735, %s24, 1
        %p1737 = scmp.lt.s32.totalorder %s1734, 3
        %s1738 = scalar_select %p1737, %s1734, 3
        %s1739 = smul.addr %s1736, 4
        %s1740 = sadd.s32 %s1738, %s1739
        %s1741 = smul.addr %s1740, 8
        %s1742 = scalar_lea.vmem %s7, %s1741
      $region60: #{_lambda_.3} parent=55 // pred_fallthru
        _
    $region56: #{_lambda_.3} parent=5 // pred_fallthru
      _
  $region6: #{_lambda_.3} parent=0 // loop_footer
    %s17 = sadd.s32 1, %s13
  $region7: #{_lambda_.3} parent=0 // loop_footer_branch
    %12 = sbr.rel target = $region3
  $region8: #{_lambda_.3} parent=0 // loop_exit
    _

</llo_original>
